<compile_context>
chip_gen: v6e
topology: v6e:2x2x1
jax: 0.10.0
libtpu: 0.0.40
codegen_flags: <defaults>
</compile_context>

<pallas_src>
import functools

import jax
import jax.numpy as jnp
from jax import lax
from jax.experimental import pallas as pl
from jax.experimental.pallas import tpu as pltpu

BN_EPS = 1e-5
LANE = 128
SUBLANE = 16          # bf16 sublane tile (also a multiple of the f32 tile of 8)


def _round_up(x, m):
    return (x + m - 1) // m * m


# ---------------- shared in-kernel conv tile (in-kernel im2col) ---------------
def _conv_tile(x_ref, w_ref, row_block, *, KH, KW, C_in, C_pad, TR, OWp, stride):
    """Conv of TR output rows x OWp output cols as KH*KW shifted MXU matmuls.

    x_ref: (1, Hp_pad, Wp_pad, C_in) bf16  (full padded image of one batch elem)
    w_ref: (KH, KW, C_in, C_pad) bf16
    returns f32 (TR*OWp, C_pad) accumulator.
    """
    acc = jnp.zeros((TR * OWp, C_pad), jnp.float32)
    row0 = row_block * (TR * stride)
    for kh in range(KH):               # static unroll: KH*KW is small
        for kw in range(KW):
            if stride == 1:
                xs = x_ref[0, pl.ds(row0 + kh, TR), pl.ds(kw, OWp), :]
            else:
                xs = x_ref[0, pl.ds(row0 + kh, TR, stride),
                           pl.ds(kw, OWp, stride), :]
            # OWp is a multiple of 16 -> this reshape is layout-trivial.
            acc = acc + jnp.dot(xs.reshape(TR * OWp, C_in), w_ref[kh, kw],
                                preferred_element_type=jnp.float32)
    return acc


# ---------------- Phase 1: per-batch per-channel sum / sum-of-squares ---------
def _conv_stats_kernel(x_ref, w_ref, stats_ref, *, KH, KW, C_in, C_pad,
                       TR, OWp, OH, OW, stride, need_mask):
    r = pl.program_id(1)

    @pl.when(r == 0)
    def _init():
        stats_ref[...] = jnp.zeros_like(stats_ref)

    acc = _conv_tile(x_ref, w_ref, r, KH=KH, KW=KW, C_in=C_in, C_pad=C_pad,
                     TR=TR, OWp=OWp, stride=stride)

    if need_mask:
        # Exclude padded output rows/cols (they can see real edge pixels).
        flat = lax.broadcasted_iota(jnp.int32, (TR * OWp, 1), 0)
        valid = ((r * TR + flat // OWp) < OH) & ((flat % OWp) < OW)
        masked = jnp.where(valid, acc, 0.0)
    else:
        masked = acc

    # Row-slice accumulation on the resident stats block: row0 = sum, row1 = sumsq.
    stats_ref[0:1, :] = stats_ref[0:1, :] + jnp.sum(masked, axis=0, keepdims=True)
    stats_ref[1:2, :] = stats_ref[1:2, :] + jnp.sum(masked * acc, axis=0,
                                                    keepdims=True)


# ---------------- Phase 2: recompute conv, apply BN affine --------------------
def _conv_bn_apply_kernel(x_ref, w_ref, scale_ref, shift_ref, out_ref, *,
                          KH, KW, C_in, C_pad, TR, OWp, stride):
    acc = _conv_tile(x_ref, w_ref, pl.program_id(1), KH=KH, KW=KW, C_in=C_in,
                     C_pad=C_pad, TR=TR, OWp=OWp, stride=stride)
    out_ref[0] = acc * scale_ref[...] + shift_ref[...]


# ---------------- Wrapper ------------------------------------------------------
def conv_br_forward(x, weight, gamma, beta, *, stride, padding, target_rows=1024):
    """x: [N, C_in, H, W] (NCHW).  weight: [C_out, C_in, KH, KW]."""
    N, C_in, H, W = x.shape
    C_out, _, KH, KW = weight.shape
    OH = (H + 2 * padding - KH) // stride + 1
    OW = (W + 2 * padding - KW) // stride + 1
    C_pad = _round_up(C_out, LANE)
    OWp = _round_up(OW, SUBLANE)

    # ~target_rows flat output rows per grid step (review: 1024-2048; keep the
    # lower end so double-buffered blocks also fit v7x's smaller VMEM).
    TR = max(1, min(OH, target_rows // OWp))
    n_rt = -(-OH // TR)
    OH_pad = n_rt * TR
    need_mask = (OH_pad != OH) or (OWp != OW)

    Hp = H + 2 * padding
    Wp = W + 2 * padding
    Hp_pad = max(Hp, (OH_pad - 1) * stride + KH)
    Wp_pad = max(Wp, (OWp - 1) * stride + KW)

    # Single layout pass: NCHW f32 -> zero-padded NHWC bf16 (half-width in HBM).
    # TODO(synk): for very large spatial inputs, switch the x BlockSpec to
    # halo-row tiles (manual DMA) instead of one full image per batch element.
    x_nhwc = jnp.transpose(x, (0, 2, 3, 1)).astype(jnp.bfloat16)
    x_p = jnp.pad(x_nhwc, ((0, 0),
                           (padding, Hp_pad - H - padding),
                           (padding, Wp_pad - W - padding),
                           (0, 0)))

    # Weights -> [KH, KW, C_in, C_pad] bf16 (lane-dense in C_out).
    w_p = jnp.pad(jnp.transpose(weight, (2, 3, 1, 0)).astype(jnp.bfloat16),
                  ((0, 0), (0, 0), (0, 0), (0, C_pad - C_out)))

    # Explicit VMEM budget (layout-padded footprint, capped for v7x's 64 MiB).
    x_vmem = Hp_pad * _round_up(Wp_pad, SUBLANE) * _round_up(C_in, LANE) * 2
    w_vmem = KH * KW * _round_up(C_in, SUBLANE) * C_pad * 2
    o_vmem = TR * OWp * C_pad * 4
    est = 2 * x_vmem + w_vmem + 3 * o_vmem + (2 << 20)
    vmem_limit = int(min(64 * 2 ** 20, max(32 * 2 ** 20, 2 * est)))

    grid = (N, n_rt)
    x_spec = pl.BlockSpec((1, Hp_pad, Wp_pad, C_in), lambda n, r: (n, 0, 0, 0))
    w_spec = pl.BlockSpec((KH, KW, C_in, C_pad), lambda n, r: (0, 0, 0, 0))

    # ---- Phase 1: statistics ---------------------------------------------------
    stats = pl.pallas_call(
        functools.partial(_conv_stats_kernel, KH=KH, KW=KW, C_in=C_in,
                          C_pad=C_pad, TR=TR, OWp=OWp, OH=OH, OW=OW,
                          stride=stride, need_mask=need_mask),
        out_shape=jax.ShapeDtypeStruct((N * 8, C_pad), jnp.float32),
        grid=grid,
        in_specs=[x_spec, w_spec],
        out_specs=pl.BlockSpec((8, C_pad), lambda n, r: (n, 0)),
        compiler_params=pltpu.CompilerParams(
            dimension_semantics=("parallel", "arbitrary"),
            vmem_limit_bytes=vmem_limit),
    )(x_p, w_p)

    stats = stats.reshape(N, 8, C_pad)
    m = float(N * OH * OW)
    mean = jnp.sum(stats[:, 0, :], axis=0) / m
    var = jnp.sum(stats[:, 1, :], axis=0) / m - mean * mean   # biased (training BN)
    # TODO(synk): E[x^2]-E[x]^2 in f32 loses precision when |mean| >> std;
    # switch to per-tile mean-shifted accumulation if that regime matters.
    gamma_p = jnp.pad(gamma.astype(jnp.float32), (0, C_pad - C_out))
    beta_p = jnp.pad(beta.astype(jnp.float32), (0, C_pad - C_out))
    scale_vec = gamma_p * lax.rsqrt(var + BN_EPS)
    shift_vec = beta_p - mean * scale_vec
    scale = scale_vec.reshape(1, C_pad)
    shift = shift_vec.reshape(1, C_pad)

    # ---- Phase 2: recompute conv (MXU is idle in this mem-bound op; cheaper
    # than an HBM f32 intermediate) and apply y = conv*scale + shift. -----------
    out_flat = pl.pallas_call(
        functools.partial(_conv_bn_apply_kernel, KH=KH, KW=KW, C_in=C_in,
                          C_pad=C_pad, TR=TR, OWp=OWp, stride=stride),
        out_shape=jax.ShapeDtypeStruct((N, OH_pad * OWp, C_pad), jnp.float32),
        grid=grid,
        in_specs=[x_spec, w_spec,
                  pl.BlockSpec((1, C_pad), lambda n, r: (0, 0)),
                  pl.BlockSpec((1, C_pad), lambda n, r: (0, 0))],
        out_specs=pl.BlockSpec((1, TR * OWp, C_pad), lambda n, r: (n, r, 0)),
        compiler_params=pltpu.CompilerParams(
            dimension_semantics=("parallel", "parallel"),
            vmem_limit_bytes=vmem_limit),
    )(x_p, w_p, scale, shift)

    out = out_flat.reshape(N, OH_pad, OWp, C_pad)[:, :OH, :OW, :C_out]
    # TODO(synk): keep NHWC (and optionally bf16) output when the consumer
    # allows; the transpose back to NCHW is layout plumbing for PyTorch parity.
    return jnp.transpose(out, (0, 3, 1, 2))


# ---------------- Reference (training-mode Conv+BN, no ReLU) -------------------
def _reference(x, weight, gamma, beta, *, stride, padding):
    y = lax.conv_general_dilated(
        x.astype(jnp.float32), weight.astype(jnp.float32),
        window_strides=(stride, stride),
        padding=((padding, padding), (padding, padding)),
        dimension_numbers=("NCHW", "OIHW", "NCHW"),
    )
    mean = jnp.mean(y, axis=(0, 2, 3), keepdims=True)
    var = jnp.mean((y - mean) ** 2, axis=(0, 2, 3), keepdims=True)
    yhat = (y - mean) * lax.rsqrt(var + BN_EPS)
    return yhat * gamma.reshape(1, -1, 1, 1) + beta.reshape(1, -1, 1, 1)


if __name__ == "__main__":
    def run_case(N, C_in, H, W, C_out, ksize, stride, padding, key):
        kx, kw, kg, kb = jax.random.split(key, 4)
        x = jax.random.normal(kx, (N, C_in, H, W), dtype=jnp.float32)
        weight = 0.1 * jax.random.normal(kw, (C_out, C_in, ksize, ksize),
                                         dtype=jnp.float32)
        gamma = 1.0 + 0.1 * jax.random.normal(kg, (C_out,), dtype=jnp.float32)
        beta = 0.1 * jax.random.normal(kb, (C_out,), dtype=jnp.float32)

        out = conv_br_forward(x, weight, gamma, beta,
                              stride=stride, padding=padding)
        out = jax.block_until_ready(out)
        OH = (H + 2 * padding - ksize) // stride + 1
        OW = (W + 2 * padding - ksize) // stride + 1
        assert out.shape == (N, C_out, OH, OW)

        # Tight check vs. a reference that sees the same bf16-quantized inputs
        # (kernel accumulates in f32, so only summation-order noise remains).
        xq = x.astype(jnp.bfloat16).astype(jnp.float32)
        wq = weight.astype(jnp.bfloat16).astype(jnp.float32)
        ref_q = _reference(xq, wq, gamma, beta, stride=stride, padding=padding)
        assert jnp.allclose(out, ref_q, atol=5e-3, rtol=5e-3), \
            "mismatch vs bf16-input ref"

        # Loose check vs. the full-f32 reference (bf16 input quantization only).
        ref_f = _reference(x, weight, gamma, beta, stride=stride, padding=padding)
        assert jnp.allclose(out, ref_f, atol=5e-2, rtol=5e-2), \
            "mismatch vs f32 ref"

    key = jax.random.PRNGKey(0)
    k1, k2 = jax.random.split(key)
    # ConvBR(4, 8, 3, stride=1, padding=1), training-mode BN (main config).
    run_case(2, 4, 16, 16, 8, 3, 1, 1, k1)
    # Small odd shape: exercises the padded output-row/col masking path.
    run_case(1, 4, 10, 10, 8, 3, 1, 1, k2)

    print("KERNEL_OK")
</pallas_src>

<mosaic_0001>
module attributes {stable_mosaic.version = 11 : i64} {
  func.func @_conv_stats_kernel(%arg0: i32, %arg1: i32, %arg2: memref<1x18x18x4xbf16, #tpu.memory_space<vmem>>, %arg3: memref<3x3x4x128xbf16, #tpu.memory_space<vmem>>, %arg4: memref<8x128xf32, #tpu.memory_space<vmem>>) attributes {dimension_semantics = [#tpu.dimension_semantics<parallel>, #tpu.dimension_semantics<arbitrary>], iteration_bounds = array<i64: 2, 1>, scalar_prefetch = 0 : i64, scratch_operands = 0 : i64, tpu.core_type = #tpu.core_type<tc>, window_params = [{transform_indices = @transform_0, window_bounds = array<i64: 1, 18, 18, 4>}, {pipeline_mode = #tpu.pipeline_mode<synchronous>, transform_indices = @transform_1, window_bounds = array<i64: 3, 3, 4, 128>}, {transform_indices = @transform_2, window_bounds = array<i64: 8, 128>}]} {
    %c0_i32 = arith.constant 0 : i32
    %0 = arith.cmpi eq, %arg1, %c0_i32 : i32
    %1 = arith.extui %0 : i1 to i32
    %c0_i32_0 = arith.constant 0 : i32
    %2 = arith.cmpi ne, %1, %c0_i32_0 : i32
    scf.if %2 {
      %cst_87 = arith.constant 0.000000e+00 : f32
      %97 = vector.broadcast %cst_87 : f32 to vector<8x128xf32>
      %c0_88 = arith.constant 0 : index
      %c0_89 = arith.constant 0 : index
      %98 = vector.load %arg4[%c0_88, %c0_89] : memref<8x128xf32, #tpu.memory_space<vmem>>, vector<8x128xf32>
      tpu.vector_store %arg4[%c0_88, %c0_89], %97 {strides = array<i32>} : memref<8x128xf32, #tpu.memory_space<vmem>>, vector<8x128xf32>,
    } else {
    }
    %cst = arith.constant 0.000000e+00 : f32
    %3 = vector.broadcast %cst : f32 to vector<256x128xf32>
    %c16_i32 = arith.constant 16 : i32
    %4 = arith.muli %arg1, %c16_i32 : i32
    %c0_i32_1 = arith.constant 0 : i32
    %5 = arith.addi %4, %c0_i32_1 : i32
    %c0 = arith.constant 0 : index
    %6 = arith.index_cast %5 : i32 to index
    %c0_2 = arith.constant 0 : index
    %c0_3 = arith.constant 0 : index
    %7 = vector.load %arg2[%c0, %6, %c0_2, %c0_3] : memref<1x18x18x4xbf16, #tpu.memory_space<vmem>>, vector<1x16x16x4xbf16>
    %8 = vector.shape_cast %7 : vector<1x16x16x4xbf16> to vector<16x16x4xbf16>
    %9 = vector.shape_cast %8 : vector<16x16x4xbf16> to vector<256x4xbf16>
    %c0_4 = arith.constant 0 : index
    %c0_5 = arith.constant 0 : index
    %c0_6 = arith.constant 0 : index
    %c0_7 = arith.constant 0 : index
    %10 = vector.load %arg3[%c0_4, %c0_5, %c0_6, %c0_7] : memref<3x3x4x128xbf16, #tpu.memory_space<vmem>>, vector<1x1x4x128xbf16>
    %11 = vector.shape_cast %10 : vector<1x1x4x128xbf16> to vector<4x128xbf16>
    %cst_8 = arith.constant dense<0.000000e+00> : vector<256x128xf32>
    %12 = tpu.matmul %9, %11, %cst_8 {dimension_numbers = #tpu.dot_dimension_numbers<[1], [0], [0], [1], [0, 0, 1, 1], [], []>} : vector<256x4xbf16>, vector<4x128xbf16>, vector<256x128xf32> -> vector<256x128xf32>
    %13 = arith.addf %3, %12 : vector<256x128xf32>
    %c0_i32_9 = arith.constant 0 : i32
    %14 = arith.addi %4, %c0_i32_9 : i32
    %c0_10 = arith.constant 0 : index
    %15 = arith.index_cast %14 : i32 to index
    %c1 = arith.constant 1 : index
    %c0_11 = arith.constant 0 : index
    %16 = vector.load %arg2[%c0_10, %15, %c1, %c0_11] : memref<1x18x18x4xbf16, #tpu.memory_space<vmem>>, vector<1x16x16x4xbf16>
    %17 = vector.shape_cast %16 : vector<1x16x16x4xbf16> to vector<16x16x4xbf16>
    %18 = vector.shape_cast %17 : vector<16x16x4xbf16> to vector<256x4xbf16>
    %c0_12 = arith.constant 0 : index
    %c1_13 = arith.constant 1 : index
    %c0_14 = arith.constant 0 : index
    %c0_15 = arith.constant 0 : index
    %19 = vector.load %arg3[%c0_12, %c1_13, %c0_14, %c0_15] : memref<3x3x4x128xbf16, #tpu.memory_space<vmem>>, vector<1x1x4x128xbf16>
    %20 = vector.shape_cast %19 : vector<1x1x4x128xbf16> to vector<4x128xbf16>
    %cst_16 = arith.constant dense<0.000000e+00> : vector<256x128xf32>
    %21 = tpu.matmul %18, %20, %cst_16 {dimension_numbers = #tpu.dot_dimension_numbers<[1], [0], [0], [1], [0, 0, 1, 1], [], []>} : vector<256x4xbf16>, vector<4x128xbf16>, vector<256x128xf32> -> vector<256x128xf32>
    %22 = arith.addf %13, %21 : vector<256x128xf32>
    %c0_i32_17 = arith.constant 0 : i32
    %23 = arith.addi %4, %c0_i32_17 : i32
    %c0_18 = arith.constant 0 : index
    %24 = arith.index_cast %23 : i32 to index
    %c2 = arith.constant 2 : index
    %c0_19 = arith.constant 0 : index
    %25 = vector.load %arg2[%c0_18, %24, %c2, %c0_19] : memref<1x18x18x4xbf16, #tpu.memory_space<vmem>>, vector<1x16x16x4xbf16>
    %26 = vector.shape_cast %25 : vector<1x16x16x4xbf16> to vector<16x16x4xbf16>
    %27 = vector.shape_cast %26 : vector<16x16x4xbf16> to vector<256x4xbf16>
    %c0_20 = arith.constant 0 : index
    %c2_21 = arith.constant 2 : index
    %c0_22 = arith.constant 0 : index
    %c0_23 = arith.constant 0 : index
    %28 = vector.load %arg3[%c0_20, %c2_21, %c0_22, %c0_23] : memref<3x3x4x128xbf16, #tpu.memory_space<vmem>>, vector<1x1x4x128xbf16>
    %29 = vector.shape_cast %28 : vector<1x1x4x128xbf16> to vector<4x128xbf16>
    %cst_24 = arith.constant dense<0.000000e+00> : vector<256x128xf32>
    %30 = tpu.matmul %27, %29, %cst_24 {dimension_numbers = #tpu.dot_dimension_numbers<[1], [0], [0], [1], [0, 0, 1, 1], [], []>} : vector<256x4xbf16>, vector<4x128xbf16>, vector<256x128xf32> -> vector<256x128xf32>
    %31 = arith.addf %22, %30 : vector<256x128xf32>
    %c1_i32 = arith.constant 1 : i32
    %32 = arith.addi %4, %c1_i32 : i32
    %c0_25 = arith.constant 0 : index
    %33 = arith.index_cast %32 : i32 to index
    %c0_26 = arith.constant 0 : index
    %c0_27 = arith.constant 0 : index
    %34 = vector.load %arg2[%c0_25, %33, %c0_26, %c0_27] : memref<1x18x18x4xbf16, #tpu.memory_space<vmem>>, vector<1x16x16x4xbf16>
    %35 = vector.shape_cast %34 : vector<1x16x16x4xbf16> to vector<16x16x4xbf16>
    %36 = vector.shape_cast %35 : vector<16x16x4xbf16> to vector<256x4xbf16>
    %c1_28 = arith.constant 1 : index
    %c0_29 = arith.constant 0 : index
    %c0_30 = arith.constant 0 : index
    %c0_31 = arith.constant 0 : index
    %37 = vector.load %arg3[%c1_28, %c0_29, %c0_30, %c0_31] : memref<3x3x4x128xbf16, #tpu.memory_space<vmem>>, vector<1x1x4x128xbf16>
    %38 = vector.shape_cast %37 : vector<1x1x4x128xbf16> to vector<4x128xbf16>
    %cst_32 = arith.constant dense<0.000000e+00> : vector<256x128xf32>
    %39 = tpu.matmul %36, %38, %cst_32 {dimension_numbers = #tpu.dot_dimension_numbers<[1], [0], [0], [1], [0, 0, 1, 1], [], []>} : vector<256x4xbf16>, vector<4x128xbf16>, vector<256x128xf32> -> vector<256x128xf32>
    %40 = arith.addf %31, %39 : vector<256x128xf32>
    %c1_i32_33 = arith.constant 1 : i32
    %41 = arith.addi %4, %c1_i32_33 : i32
    %c0_34 = arith.constant 0 : index
    %42 = arith.index_cast %41 : i32 to index
    %c1_35 = arith.constant 1 : index
    %c0_36 = arith.constant 0 : index
    %43 = vector.load %arg2[%c0_34, %42, %c1_35, %c0_36] : memref<1x18x18x4xbf16, #tpu.memory_space<vmem>>, vector<1x16x16x4xbf16>
    %44 = vector.shape_cast %43 : vector<1x16x16x4xbf16> to vector<16x16x4xbf16>
    %45 = vector.shape_cast %44 : vector<16x16x4xbf16> to vector<256x4xbf16>
    %c1_37 = arith.constant 1 : index
    %c1_38 = arith.constant 1 : index
    %c0_39 = arith.constant 0 : index
    %c0_40 = arith.constant 0 : index
    %46 = vector.load %arg3[%c1_37, %c1_38, %c0_39, %c0_40] : memref<3x3x4x128xbf16, #tpu.memory_space<vmem>>, vector<1x1x4x128xbf16>
    %47 = vector.shape_cast %46 : vector<1x1x4x128xbf16> to vector<4x128xbf16>
    %cst_41 = arith.constant dense<0.000000e+00> : vector<256x128xf32>
    %48 = tpu.matmul %45, %47, %cst_41 {dimension_numbers = #tpu.dot_dimension_numbers<[1], [0], [0], [1], [0, 0, 1, 1], [], []>} : vector<256x4xbf16>, vector<4x128xbf16>, vector<256x128xf32> -> vector<256x128xf32>
    %49 = arith.addf %40, %48 : vector<256x128xf32>
    %c1_i32_42 = arith.constant 1 : i32
    %50 = arith.addi %4, %c1_i32_42 : i32
    %c0_43 = arith.constant 0 : index
    %51 = arith.index_cast %50 : i32 to index
    %c2_44 = arith.constant 2 : index
    %c0_45 = arith.constant 0 : index
    %52 = vector.load %arg2[%c0_43, %51, %c2_44, %c0_45] : memref<1x18x18x4xbf16, #tpu.memory_space<vmem>>, vector<1x16x16x4xbf16>
    %53 = vector.shape_cast %52 : vector<1x16x16x4xbf16> to vector<16x16x4xbf16>
    %54 = vector.shape_cast %53 : vector<16x16x4xbf16> to vector<256x4xbf16>
    %c1_46 = arith.constant 1 : index
    %c2_47 = arith.constant 2 : index
    %c0_48 = arith.constant 0 : index
    %c0_49 = arith.constant 0 : index
    %55 = vector.load %arg3[%c1_46, %c2_47, %c0_48, %c0_49] : memref<3x3x4x128xbf16, #tpu.memory_space<vmem>>, vector<1x1x4x128xbf16>
    %56 = vector.shape_cast %55 : vector<1x1x4x128xbf16> to vector<4x128xbf16>
    %cst_50 = arith.constant dense<0.000000e+00> : vector<256x128xf32>
    %57 = tpu.matmul %54, %56, %cst_50 {dimension_numbers = #tpu.dot_dimension_numbers<[1], [0], [0], [1], [0, 0, 1, 1], [], []>} : vector<256x4xbf16>, vector<4x128xbf16>, vector<256x128xf32> -> vector<256x128xf32>
    %58 = arith.addf %49, %57 : vector<256x128xf32>
    %c2_i32 = arith.constant 2 : i32
    %59 = arith.addi %4, %c2_i32 : i32
    %c0_51 = arith.constant 0 : index
    %60 = arith.index_cast %59 : i32 to index
    %c0_52 = arith.constant 0 : index
    %c0_53 = arith.constant 0 : index
    %61 = vector.load %arg2[%c0_51, %60, %c0_52, %c0_53] : memref<1x18x18x4xbf16, #tpu.memory_space<vmem>>, vector<1x16x16x4xbf16>
    %62 = vector.shape_cast %61 : vector<1x16x16x4xbf16> to vector<16x16x4xbf16>
    %63 = vector.shape_cast %62 : vector<16x16x4xbf16> to vector<256x4xbf16>
    %c2_54 = arith.constant 2 : index
    %c0_55 = arith.constant 0 : index
    %c0_56 = arith.constant 0 : index
    %c0_57 = arith.constant 0 : index
    %64 = vector.load %arg3[%c2_54, %c0_55, %c0_56, %c0_57] : memref<3x3x4x128xbf16, #tpu.memory_space<vmem>>, vector<1x1x4x128xbf16>
    %65 = vector.shape_cast %64 : vector<1x1x4x128xbf16> to vector<4x128xbf16>
    %cst_58 = arith.constant dense<0.000000e+00> : vector<256x128xf32>
    %66 = tpu.matmul %63, %65, %cst_58 {dimension_numbers = #tpu.dot_dimension_numbers<[1], [0], [0], [1], [0, 0, 1, 1], [], []>} : vector<256x4xbf16>, vector<4x128xbf16>, vector<256x128xf32> -> vector<256x128xf32>
    %67 = arith.addf %58, %66 : vector<256x128xf32>
    %c2_i32_59 = arith.constant 2 : i32
    %68 = arith.addi %4, %c2_i32_59 : i32
    %c0_60 = arith.constant 0 : index
    %69 = arith.index_cast %68 : i32 to index
    %c1_61 = arith.constant 1 : index
    %c0_62 = arith.constant 0 : index
    %70 = vector.load %arg2[%c0_60, %69, %c1_61, %c0_62] : memref<1x18x18x4xbf16, #tpu.memory_space<vmem>>, vector<1x16x16x4xbf16>
    %71 = vector.shape_cast %70 : vector<1x16x16x4xbf16> to vector<16x16x4xbf16>
    %72 = vector.shape_cast %71 : vector<16x16x4xbf16> to vector<256x4xbf16>
    %c2_63 = arith.constant 2 : index
    %c1_64 = arith.constant 1 : index
    %c0_65 = arith.constant 0 : index
    %c0_66 = arith.constant 0 : index
    %73 = vector.load %arg3[%c2_63, %c1_64, %c0_65, %c0_66] : memref<3x3x4x128xbf16, #tpu.memory_space<vmem>>, vector<1x1x4x128xbf16>
    %74 = vector.shape_cast %73 : vector<1x1x4x128xbf16> to vector<4x128xbf16>
    %cst_67 = arith.constant dense<0.000000e+00> : vector<256x128xf32>
    %75 = tpu.matmul %72, %74, %cst_67 {dimension_numbers = #tpu.dot_dimension_numbers<[1], [0], [0], [1], [0, 0, 1, 1], [], []>} : vector<256x4xbf16>, vector<4x128xbf16>, vector<256x128xf32> -> vector<256x128xf32>
    %76 = arith.addf %67, %75 : vector<256x128xf32>
    %c2_i32_68 = arith.constant 2 : i32
    %77 = arith.addi %4, %c2_i32_68 : i32
    %c0_69 = arith.constant 0 : index
    %78 = arith.index_cast %77 : i32 to index
    %c2_70 = arith.constant 2 : index
    %c0_71 = arith.constant 0 : index
    %79 = vector.load %arg2[%c0_69, %78, %c2_70, %c0_71] : memref<1x18x18x4xbf16, #tpu.memory_space<vmem>>, vector<1x16x16x4xbf16>
    %80 = vector.shape_cast %79 : vector<1x16x16x4xbf16> to vector<16x16x4xbf16>
    %81 = vector.shape_cast %80 : vector<16x16x4xbf16> to vector<256x4xbf16>
    %c2_72 = arith.constant 2 : index
    %c2_73 = arith.constant 2 : index
    %c0_74 = arith.constant 0 : index
    %c0_75 = arith.constant 0 : index
    %82 = vector.load %arg3[%c2_72, %c2_73, %c0_74, %c0_75] : memref<3x3x4x128xbf16, #tpu.memory_space<vmem>>, vector<1x1x4x128xbf16>
    %83 = vector.shape_cast %82 : vector<1x1x4x128xbf16> to vector<4x128xbf16>
    %cst_76 = arith.constant dense<0.000000e+00> : vector<256x128xf32>
    %84 = tpu.matmul %81, %83, %cst_76 {dimension_numbers = #tpu.dot_dimension_numbers<[1], [0], [0], [1], [0, 0, 1, 1], [], []>} : vector<256x4xbf16>, vector<4x128xbf16>, vector<256x128xf32> -> vector<256x128xf32>
    %85 = arith.addf %76, %84 : vector<256x128xf32>
    %c0_77 = arith.constant 0 : index
    %c0_78 = arith.constant 0 : index
    %86 = vector.load %arg4[%c0_77, %c0_78] : memref<8x128xf32, #tpu.memory_space<vmem>>, vector<1x128xf32>
    %cst_79 = arith.constant dense<0.000000e+00> : vector<128xf32>
    %87 = vector.multi_reduction <add>, %85, %cst_79 [0] : vector<256x128xf32> to vector<128xf32>
    %88 = vector.shape_cast %87 : vector<128xf32> to vector<1x128xf32>
    %89 = arith.addf %86, %88 : vector<1x128xf32>
    %c0_80 = arith.constant 0 : index
    %c0_81 = arith.constant 0 : index
    %90 = vector.load %arg4[%c0_80, %c0_81] : memref<8x128xf32, #tpu.memory_space<vmem>>, vector<1x128xf32>
    tpu.vector_store %arg4[%c0_80, %c0_81], %89 {strides = array<i32>} : memref<8x128xf32, #tpu.memory_space<vmem>>, vector<1x128xf32>,
    %c1_82 = arith.constant 1 : index
    %c0_83 = arith.constant 0 : index
    %91 = vector.load %arg4[%c1_82, %c0_83] : memref<8x128xf32, #tpu.memory_space<vmem>>, vector<1x128xf32>
    %92 = arith.mulf %85, %85 : vector<256x128xf32>
    %cst_84 = arith.constant dense<0.000000e+00> : vector<128xf32>
    %93 = vector.multi_reduction <add>, %92, %cst_84 [0] : vector<256x128xf32> to vector<128xf32>
    %94 = vector.shape_cast %93 : vector<128xf32> to vector<1x128xf32>
    %95 = arith.addf %91, %94 : vector<1x128xf32>
    %c1_85 = arith.constant 1 : index
    %c0_86 = arith.constant 0 : index
    %96 = vector.load %arg4[%c1_85, %c0_86] : memref<8x128xf32, #tpu.memory_space<vmem>>, vector<1x128xf32>
    tpu.vector_store %arg4[%c1_85, %c0_86], %95 {strides = array<i32>} : memref<8x128xf32, #tpu.memory_space<vmem>>, vector<1x128xf32>,
    return
  }
  func.func @transform_0(%arg0: i32, %arg1: i32) -> (i32, i32, i32, i32) {
    %c0_i32 = arith.constant 0 : i32
    %c0_i32_0 = arith.constant 0 : i32
    %c0_i32_1 = arith.constant 0 : i32
    %c0_i32_2 = arith.constant 0 : i32
    return %arg0, %c0_i32, %c0_i32_0, %c0_i32_1 : i32, i32, i32, i32
  }
  func.func @transform_1(%arg0: i32, %arg1: i32) -> (i32, i32, i32, i32) {
    %c0_i32 = arith.constant 0 : i32
    %c0_i32_0 = arith.constant 0 : i32
    %c0_i32_1 = arith.constant 0 : i32
    %c0_i32_2 = arith.constant 0 : i32
    %c0_i32_3 = arith.constant 0 : i32
    return %c0_i32, %c0_i32_0, %c0_i32_1, %c0_i32_2 : i32, i32, i32, i32
  }
  func.func @transform_2(%arg0: i32, %arg1: i32) -> (i32, i32) {
    %c0_i32 = arith.constant 0 : i32
    %c0_i32_0 = arith.constant 0 : i32
    return %arg0, %c0_i32 : i32, i32
  }
}

</mosaic_0001>

<llo_original>
// kernel: tpu_custom_call.1
$region0: #{tpu_custom_call.1}
  #allocation0 [shape = 'u32[]', space=smem, size = 0x4, offset = 0x4, fixed_abs, tag = 'smem constant byte address 0x4 - core index']
  #allocation1 [shape = 'u32[144,128]{1,0:T(1,128)}', space=vmem, size = 0x12000, scoped, tag = 'internal scratch']
  %s0 = inlined_call_operand.vmem [shape: bf16[2,18,18,4], index: 0, kind: input, shape index: {}]
  %s1 = inlined_call_operand.vmem [shape: bf16[3,3,4,128], index: 1, kind: input, shape index: {}]
  %s2 = inlined_call_operand.hbm [shape: f32[16,128], index: 2, kind: output, shape index: {}]
  %s3 = sld [smem:[#allocation0]]
  $region45: #{tpu_custom_call.1} parent=0
    _
  %s5 = ssub.s32 1, %s3
  %s6 = scalar_select 0, %s5, %s3
  $region1: #{tpu_custom_call.1} parent=0
    #allocation2 [shape = 'u8[8192]{0}', space=vmem, size = 0x2000, scoped, tag = 'output window, operand 0']
    #allocation3 [shape = 's32[2]{0}', space=sflag, size = 0x8, scoped, tag = 'scoped memory for tpu_custom_call.1']
    %7 = vsyncpa [#allocation3], 0
    %s8 = scalar_lea.sflag [#allocation3], 1
    %9 = vsyncpa %s8, 0
    loop: start=0, step=1, limit=4
    $region2: #{tpu_custom_call.1} parent=1 // loop_pre_header
      _
    $region3: #{tpu_custom_call.1} parent=1 // loop_header
      %s11 = sphi 0, %s15
      %p12 = scmp.ge.s32.totalorder %s11, 4
      %s18 = sphi 0, %s30
      %s19 = sphi 0, %s26
      %s20 = sphi 0, %s18
      %s21 = sphi 0, %s19
      %s22 = sphi 0, %s20
      %s23 = sphi 0, %s21
      %s33 = sphi 0, %s35
      %s36 = sphi 0, %s33
      %s37 = sphi 0, %s36
      %s53 = sphi 0, %s37
      %s57 = sphi 0, %s57
      %s59 = sphi 0, %s57
      %s60 = sphi 0, %s59
      %s74 = sphi 0, %s60
      %s80 = sphi 0, %s82
      %s83 = sphi 0, %s80
      %s84 = sphi 0, %s83
      %s100 = sphi 0, %s84
    $region4: #{tpu_custom_call.1} parent=1 // loop_header_branch
      %14 = sbr.rel (%p12) target = $region8
    $region5: #{tpu_custom_call.1} parent=1 // loop_body
      %s16 = ssub.s32 %s11, 1
      %s17 = ssub.s32 %s11, 2
      %s24 = sadd.s32 1, %s19
      %p25 = scmp.ge.s32.totalorder %s24, 1
      %s26 = scalar_select %p25, 0, %s24
      %s27 = sadd.s32 1, %s18
      %s28 = scalar_select %p25, %s27, %s18
      %p29 = scmp.ge.s32.totalorder %s28, 2
      %s30 = scalar_select %p29, 0, %s28
      %s31 = ssub.s32 %s18, %s30
      %p32 = scmp.eq.s32.totalorder %s31, 0
      %s34 = sadd.s32 %s33, 1
      %s35 = scalar_select %p32, %s33, %s34
      %p38 = pneg %p32
      %p39 = scmp.eq.s32.totalorder %s11, 1
      %p40 = por %p38, %p39
      %p41 = scmp.ne.s32.totalorder %s33, %s36
      %p42 = scmp.eq.s32.totalorder %s11, 0
      %p43 = por %p41, %p42
      %p44 = scmp.ne.s32.totalorder %s33, %s36
      %p45 = scmp.eq.s32.totalorder %s16, 1
      %p46 = por %p44, %p45
      %p47 = scmp.ne.s32.totalorder %s36, %s37
      %p48 = scmp.eq.s32.totalorder %s16, 0
      %p49 = por %p47, %p48
      %p50 = scmp.ne.s32.totalorder %s36, %s37
      %p51 = scmp.eq.s32.totalorder %s17, 1
      %p52 = por %p50, %p51
      %p54 = scmp.ne.s32.totalorder %s37, %s53
      %p55 = scmp.eq.s32.totalorder %s17, 0
      %p56 = por %p54, %p55
      %s58 = sadd.s32 %s57, 1
      %p61 = scmp.eq.s32.totalorder %s11, 1
      %p62 = scmp.ne.s32.totalorder %s57, %s59
      %p63 = scmp.eq.s32.totalorder %s11, 0
      %p64 = por %p62, %p63
      %p65 = scmp.ne.s32.totalorder %s57, %s59
      %p66 = scmp.eq.s32.totalorder %s16, 1
      %p67 = por %p65, %p66
      %p68 = scmp.ne.s32.totalorder %s59, %s60
      %p69 = scmp.eq.s32.totalorder %s16, 0
      %p70 = por %p68, %p69
      %p71 = scmp.ne.s32.totalorder %s59, %s60
      %p72 = scmp.eq.s32.totalorder %s17, 1
      %p73 = por %p71, %p72
      %p75 = scmp.ne.s32.totalorder %s60, %s74
      %p76 = scmp.eq.s32.totalorder %s17, 0
      %p77 = por %p75, %p76
      %s78 = ssub.s32 %s18, %s30
      %p79 = scmp.eq.s32.totalorder %s78, 0
      %s81 = sadd.s32 %s80, 1
      %s82 = scalar_select %p79, %s80, %s81
      %p85 = pneg %p79
      %p86 = scmp.eq.s32.totalorder %s11, 1
      %p87 = por %p85, %p86
      %p88 = scmp.ne.s32.totalorder %s80, %s83
      %p89 = scmp.eq.s32.totalorder %s11, 0
      %p90 = por %p88, %p89
      %p91 = scmp.ne.s32.totalorder %s80, %s83
      %p92 = scmp.eq.s32.totalorder %s16, 1
      %p93 = por %p91, %p92
      %p94 = scmp.ne.s32.totalorder %s83, %s84
      %p95 = scmp.eq.s32.totalorder %s16, 0
      %p96 = por %p94, %p95
      %p97 = scmp.ne.s32.totalorder %s83, %s84
      %p98 = scmp.eq.s32.totalorder %s17, 1
      %p99 = por %p97, %p98
      %p101 = scmp.ne.s32.totalorder %s84, %s100
      %p102 = scmp.eq.s32.totalorder %s17, 0
      %p103 = por %p101, %p102
      %p104 = scmp.le.s32.totalorder 1, %s11
      %p105 = scmp.lt.s32.totalorder %s11, 3
      %p106 = pnand %p104, %p105
      %p107 = pneg %p106
      // Predicated region
      $region9: #{tpu_custom_call.1} parent=5 // pred_check
        _
      $region10: #{tpu_custom_call.1} parent=5 // pred_check_branch
        %109 = sbr.rel (%p106) target = $region12
      $region11: #{tpu_custom_call.1} parent=5 // pred_region
        %s110 = ssub.s32 %s11, 1
        // Predicated region
        $region13: #{tpu_custom_call.1} parent=11 // pred_check
          %p111 = pneg %p70
        $region14: #{tpu_custom_call.1} parent=11 // pred_check_branch
          %113 = sbr.rel (%p111) target = $region16
        $region15: #{tpu_custom_call.1} parent=11 // pred_region
          _
        $region16: #{tpu_custom_call.1} parent=11 // pred_fallthru
          _
      $region12: #{tpu_custom_call.1} parent=5 // pred_fallthru
        _
      %p114 = scmp.lt.s32.totalorder %s11, 2
      // Predicated region
      $region17: #{tpu_custom_call.1} parent=5 // pred_check
        %p115 = pneg %p114
      $region18: #{tpu_custom_call.1} parent=5 // pred_check_branch
        %117 = sbr.rel (%p115) target = $region20
      $region19: #{tpu_custom_call.1} parent=5 // pred_region
        // Predicated region
        $region21: #{tpu_custom_call.1} parent=19 // pred_check
          %p118 = pneg %p43
        $region22: #{tpu_custom_call.1} parent=19 // pred_check_branch
          %120 = sbr.rel (%p118) target = $region24
        $region23: #{tpu_custom_call.1} parent=19 // pred_region
          %p121 = scmp.lt.s32.totalorder %s18, 1
          %s122 = scalar_select %p121, %s18, 1
          %s123 = smul.addr %s122, 54
          %s124 = smul.addr %s123, 4
          %s125 = scalar_lea.vmem %s0, %s124
        $region24: #{tpu_custom_call.1} parent=19 // pred_fallthru
          _
      $region20: #{tpu_custom_call.1} parent=5 // pred_fallthru
        _
      %p126 = scmp.le.s32.totalorder 1, %s11
      %p127 = scmp.lt.s32.totalorder %s11, 3
      %p128 = pnand %p126, %p127
      %p129 = pneg %p128
      // Predicated region
      $region25: #{tpu_custom_call.1} parent=5 // pred_check
        _
      $region26: #{tpu_custom_call.1} parent=5 // pred_check_branch
        %131 = sbr.rel (%p128) target = $region28
      $region27: #{tpu_custom_call.1} parent=5 // pred_region
        %s132 = ssub.s32 %s11, 1
        %p133 = scmp.lt.s32.totalorder %s20, 1
        %s134 = scalar_select %p133, %s20, 1
        %s135 = smul.addr %s134, 54
        %s136 = smul.addr %s135, 4
        %s137 = scalar_lea.vmem %s0, %s136
        %p138 = pneg %p49
        %p139 = pneg %p46
        %p140 = pneg %p70
        %p141 = pneg %p67
        %p142 = pneg %p96
        %p143 = pneg %p93
        %s144 = sand.u32 %s83, 1
        %s145 = scalar_lea.sflag [#allocation3], %s144
        %s146 = sand.u32 %s83, 1
        %s147 = smul.addr %s146, 8
        %s148 = scalar_lea.vmem [#allocation2], %s147
        %p149 = scmp.lt.s32.totalorder %s20, 1
        %s150 = scalar_select %p149, %s20, 1
        %s151 = smul.addr %s150, 54
        %s152 = smul.addr %s151, 4
        %s153 = scalar_lea.vmem %s0, %s152
        %p155 = scmp.eq.s32.totalorder %s21, 0
        // Predicated region
        $region29: #{tpu_custom_call.1} parent=27 // pred_check
          %p156 = pneg %p155
        $region30: #{tpu_custom_call.1} parent=27 // pred_check_branch
          %158 = sbr.rel (%p156) target = $region32
        $region31: #{tpu_custom_call.1} parent=27 // pred_region
          %159 = vst [vmem:[%s148] sm:$0xff] 0.0
        $region32: #{tpu_custom_call.1} parent=27 // pred_fallthru
          _
        %s160 = smul.u32 %s21, 16
        %s161 = smul.u32 %s160, 3
        %s162 = smul.addr %s161, 4
        %s163 = scalar_lea.vmem %s153, %s162
        %v164 = vld [vmem:[%s163] sm:$0xf]
        %v165 = vld [vmem:[%s163 + $0x4] sm:$0xf]
        %v166 = vld [vmem:[%s163 + $0xc] sm:$0xf]
        %v167 = vld [vmem:[%s163 + $0x10] sm:$0xf]
        %v168 = vld [vmem:[%s163 + $0x18] sm:$0xf]
        %v169 = vld [vmem:[%s163 + $0x1c] sm:$0xf]
        %v170 = vld [vmem:[%s163 + $0x24] sm:$0xf]
        %v171 = vld [vmem:[%s163 + $0x28] sm:$0xf]
        %v172 = vld [vmem:[%s163 + $0x30] sm:$0xf]
        %v173 = vld [vmem:[%s163 + $0x34] sm:$0xf]
        %v174 = vld [vmem:[%s163 + $0x3c] sm:$0xf]
        %v175 = vld [vmem:[%s163 + $0x40] sm:$0xf]
        %v176 = vld [vmem:[%s163 + $0x48] sm:$0xf]
        %v177 = vld [vmem:[%s163 + $0x4c] sm:$0xf]
        %v178 = vld [vmem:[%s163 + $0x54] sm:$0xf]
        %v179 = vld [vmem:[%s163 + $0x58] sm:$0xf]
        %v180 = vld [vmem:[%s163 + $0x60] sm:$0xf]
        %v181 = vld [vmem:[%s163 + $0x64] sm:$0xf]
        %v182 = vld [vmem:[%s163 + $0x6c] sm:$0xf]
        %v183 = vld [vmem:[%s163 + $0x70] sm:$0xf]
        %v184 = vld [vmem:[%s163 + $0x78] sm:$0xf]
        %v185 = vld [vmem:[%s163 + $0x7c] sm:$0xf]
        %v186 = vld [vmem:[%s163 + $0x84] sm:$0xf]
        %v187 = vld [vmem:[%s163 + $0x88] sm:$0xf]
        %v188 = vld [vmem:[%s163 + $0x90] sm:$0xf]
        %v189 = vld [vmem:[%s163 + $0x94] sm:$0xf]
        %v190 = vld [vmem:[%s163 + $0x9c] sm:$0xf]
        %v191 = vld [vmem:[%s163 + $0xa0] sm:$0xf]
        %v192 = vld [vmem:[%s163 + $0xa8] sm:$0xf]
        %v193 = vld [vmem:[%s163 + $0xac] sm:$0xf]
        %v194 = vld [vmem:[%s163 + $0xb4] sm:$0xf]
        %v195 = vld [vmem:[%s163 + $0xb8] sm:$0xf]
        %v196 = vld [vmem:[%s1] sm:$0x3]
        %v197 = vld [vmem:[%s163 + $0x8] sm:$0x1]
        %v198 = vld [vmem:[%s163 + $0x14] sm:$0x1]
        %v199 = vld [vmem:[%s163 + $0x20] sm:$0x1]
        %v200 = vld [vmem:[%s163 + $0x2c] sm:$0x1]
        %v201 = vld [vmem:[%s163 + $0x38] sm:$0x1]
        %v202 = vld [vmem:[%s163 + $0x44] sm:$0x1]
        %v203 = vld [vmem:[%s163 + $0x50] sm:$0x1]
        %v204 = vld [vmem:[%s163 + $0x5c] sm:$0x1]
        %v205 = vld [vmem:[%s163 + $0x68] sm:$0x1]
        %v206 = vld [vmem:[%s163 + $0x74] sm:$0x1]
        %v207 = vld [vmem:[%s163 + $0x80] sm:$0x1]
        %v208 = vld [vmem:[%s163 + $0x8c] sm:$0x1]
        %v209 = vld [vmem:[%s163 + $0x98] sm:$0x1]
        %v210 = vld [vmem:[%s163 + $0xa4] sm:$0x1]
        %v211 = vld [vmem:[%s163 + $0xb0] sm:$0x1]
        %v212 = vld [vmem:[%s163 + $0xbc] sm:$0x1]
        %vm213 = vsmask.f32 3328
        %vm214 = vsmask.f32 7440
        %vm215 = vmor %vm213, %vm214
        %v217 = vshrl.u32 %v164, 16
        %v219 = vrot.slane %v217, 4
        %v220 = vshll.u32 %v164, 16
        %v222 = vrot.slane %v220, 5
        %v223 = vor.u32 %v219, %v222
        %v224 = vrot.slane %v223, 4
        %v226 = vshll.u32 %v165, 16
        %v228 = vrot.slane %v226, 5
        %v229 = vsel %vm215, %v224, %v228
        %v230 = vshrl.u32 %v165, 16
        %v232 = vrot.slane %v230, 4
        %v233 = vor.u32 %v232, %v228
        %v234 = vrot.slane %v233, 4
        %v236 = vshll.u32 %v197, 16
        %v238 = vrot.slane %v236, 5
        %v239 = vsel %vm215, %v234, %v238
        %v241 = vshrl.u32 %v166, 16
        %v243 = vrot.slane %v241, 4
        %v244 = vshll.u32 %v166, 16
        %v246 = vrot.slane %v244, 5
        %v247 = vor.u32 %v243, %v246
        %v248 = vrot.slane %v247, 4
        %v250 = vshll.u32 %v167, 16
        %v252 = vrot.slane %v250, 5
        %v253 = vsel %vm215, %v248, %v252
        %v254 = vshrl.u32 %v167, 16
        %v256 = vrot.slane %v254, 4
        %v257 = vor.u32 %v256, %v252
        %v258 = vrot.slane %v257, 4
        %v260 = vshll.u32 %v198, 16
        %v262 = vrot.slane %v260, 5
        %v263 = vsel %vm215, %v258, %v262
        %v265 = vshrl.u32 %v168, 16
        %v267 = vrot.slane %v265, 4
        %v268 = vshll.u32 %v168, 16
        %v270 = vrot.slane %v268, 5
        %v271 = vor.u32 %v267, %v270
        %v272 = vrot.slane %v271, 4
        %v274 = vshll.u32 %v169, 16
        %v276 = vrot.slane %v274, 5
        %v277 = vsel %vm215, %v272, %v276
        %v278 = vshrl.u32 %v169, 16
        %v280 = vrot.slane %v278, 4
        %v281 = vor.u32 %v280, %v276
        %v282 = vrot.slane %v281, 4
        %v284 = vshll.u32 %v199, 16
        %v286 = vrot.slane %v284, 5
        %v287 = vsel %vm215, %v282, %v286
        %v289 = vshrl.u32 %v170, 16
        %v291 = vrot.slane %v289, 4
        %v292 = vshll.u32 %v170, 16
        %v294 = vrot.slane %v292, 5
        %v295 = vor.u32 %v291, %v294
        %v296 = vrot.slane %v295, 4
        %v298 = vshll.u32 %v171, 16
        %v300 = vrot.slane %v298, 5
        %v301 = vsel %vm215, %v296, %v300
        %v302 = vshrl.u32 %v171, 16
        %v304 = vrot.slane %v302, 4
        %v305 = vor.u32 %v304, %v300
        %v306 = vrot.slane %v305, 4
        %v308 = vshll.u32 %v200, 16
        %v310 = vrot.slane %v308, 5
        %v311 = vsel %vm215, %v306, %v310
        %v313 = vshrl.u32 %v172, 16
        %v315 = vrot.slane %v313, 4
        %v316 = vshll.u32 %v172, 16
        %v318 = vrot.slane %v316, 5
        %v319 = vor.u32 %v315, %v318
        %v320 = vrot.slane %v319, 4
        %v322 = vshll.u32 %v173, 16
        %v324 = vrot.slane %v322, 5
        %v325 = vsel %vm215, %v320, %v324
        %v326 = vshrl.u32 %v173, 16
        %v328 = vrot.slane %v326, 4
        %v329 = vor.u32 %v328, %v324
        %v330 = vrot.slane %v329, 4
        %v332 = vshll.u32 %v201, 16
        %v334 = vrot.slane %v332, 5
        %v335 = vsel %vm215, %v330, %v334
        %v337 = vshrl.u32 %v174, 16
        %v339 = vrot.slane %v337, 4
        %v340 = vshll.u32 %v174, 16
        %v342 = vrot.slane %v340, 5
        %v343 = vor.u32 %v339, %v342
        %v344 = vrot.slane %v343, 4
        %v346 = vshll.u32 %v175, 16
        %v348 = vrot.slane %v346, 5
        %v349 = vsel %vm215, %v344, %v348
        %v350 = vshrl.u32 %v175, 16
        %v352 = vrot.slane %v350, 4
        %v353 = vor.u32 %v352, %v348
        %v354 = vrot.slane %v353, 4
        %v356 = vshll.u32 %v202, 16
        %v358 = vrot.slane %v356, 5
        %v359 = vsel %vm215, %v354, %v358
        %v361 = vshrl.u32 %v176, 16
        %v363 = vrot.slane %v361, 4
        %v364 = vshll.u32 %v176, 16
        %v366 = vrot.slane %v364, 5
        %v367 = vor.u32 %v363, %v366
        %v368 = vrot.slane %v367, 4
        %v370 = vshll.u32 %v177, 16
        %v372 = vrot.slane %v370, 5
        %v373 = vsel %vm215, %v368, %v372
        %v374 = vshrl.u32 %v177, 16
        %v376 = vrot.slane %v374, 4
        %v377 = vor.u32 %v376, %v372
        %v378 = vrot.slane %v377, 4
        %v380 = vshll.u32 %v203, 16
        %v382 = vrot.slane %v380, 5
        %v383 = vsel %vm215, %v378, %v382
        %v385 = vshrl.u32 %v178, 16
        %v387 = vrot.slane %v385, 4
        %v388 = vshll.u32 %v178, 16
        %v390 = vrot.slane %v388, 5
        %v391 = vor.u32 %v387, %v390
        %v392 = vrot.slane %v391, 4
        %v394 = vshll.u32 %v179, 16
        %v396 = vrot.slane %v394, 5
        %v397 = vsel %vm215, %v392, %v396
        %v398 = vshrl.u32 %v179, 16
        %v400 = vrot.slane %v398, 4
        %v401 = vor.u32 %v400, %v396
        %v402 = vrot.slane %v401, 4
        %v404 = vshll.u32 %v204, 16
        %v406 = vrot.slane %v404, 5
        %v407 = vsel %vm215, %v402, %v406
        %v409 = vshrl.u32 %v180, 16
        %v411 = vrot.slane %v409, 4
        %v412 = vshll.u32 %v180, 16
        %v414 = vrot.slane %v412, 5
        %v415 = vor.u32 %v411, %v414
        %v416 = vrot.slane %v415, 4
        %v418 = vshll.u32 %v181, 16
        %v420 = vrot.slane %v418, 5
        %v421 = vsel %vm215, %v416, %v420
        %v422 = vshrl.u32 %v181, 16
        %v424 = vrot.slane %v422, 4
        %v425 = vor.u32 %v424, %v420
        %v426 = vrot.slane %v425, 4
        %v428 = vshll.u32 %v205, 16
        %v430 = vrot.slane %v428, 5
        %v431 = vsel %vm215, %v426, %v430
        %v433 = vshrl.u32 %v182, 16
        %v435 = vrot.slane %v433, 4
        %v436 = vshll.u32 %v182, 16
        %v438 = vrot.slane %v436, 5
        %v439 = vor.u32 %v435, %v438
        %v440 = vrot.slane %v439, 4
        %v442 = vshll.u32 %v183, 16
        %v444 = vrot.slane %v442, 5
        %v445 = vsel %vm215, %v440, %v444
        %v446 = vshrl.u32 %v183, 16
        %v448 = vrot.slane %v446, 4
        %v449 = vor.u32 %v448, %v444
        %v450 = vrot.slane %v449, 4
        %v452 = vshll.u32 %v206, 16
        %v454 = vrot.slane %v452, 5
        %v455 = vsel %vm215, %v450, %v454
        %v457 = vshrl.u32 %v184, 16
        %v459 = vrot.slane %v457, 4
        %v460 = vshll.u32 %v184, 16
        %v462 = vrot.slane %v460, 5
        %v463 = vor.u32 %v459, %v462
        %v464 = vrot.slane %v463, 4
        %v466 = vshll.u32 %v185, 16
        %v468 = vrot.slane %v466, 5
        %v469 = vsel %vm215, %v464, %v468
        %v470 = vshrl.u32 %v185, 16
        %v472 = vrot.slane %v470, 4
        %v473 = vor.u32 %v472, %v468
        %v474 = vrot.slane %v473, 4
        %v476 = vshll.u32 %v207, 16
        %v478 = vrot.slane %v476, 5
        %v479 = vsel %vm215, %v474, %v478
        %v481 = vshrl.u32 %v186, 16
        %v483 = vrot.slane %v481, 4
        %v484 = vshll.u32 %v186, 16
        %v486 = vrot.slane %v484, 5
        %v487 = vor.u32 %v483, %v486
        %v488 = vrot.slane %v487, 4
        %v490 = vshll.u32 %v187, 16
        %v492 = vrot.slane %v490, 5
        %v493 = vsel %vm215, %v488, %v492
        %v494 = vshrl.u32 %v187, 16
        %v496 = vrot.slane %v494, 4
        %v497 = vor.u32 %v496, %v492
        %v498 = vrot.slane %v497, 4
        %v500 = vshll.u32 %v208, 16
        %v502 = vrot.slane %v500, 5
        %v503 = vsel %vm215, %v498, %v502
        %v505 = vshrl.u32 %v188, 16
        %v507 = vrot.slane %v505, 4
        %v508 = vshll.u32 %v188, 16
        %v510 = vrot.slane %v508, 5
        %v511 = vor.u32 %v507, %v510
        %v512 = vrot.slane %v511, 4
        %v514 = vshll.u32 %v189, 16
        %v516 = vrot.slane %v514, 5
        %v517 = vsel %vm215, %v512, %v516
        %v518 = vshrl.u32 %v189, 16
        %v520 = vrot.slane %v518, 4
        %v521 = vor.u32 %v520, %v516
        %v522 = vrot.slane %v521, 4
        %v524 = vshll.u32 %v209, 16
        %v526 = vrot.slane %v524, 5
        %v527 = vsel %vm215, %v522, %v526
        %v529 = vshrl.u32 %v190, 16
        %v531 = vrot.slane %v529, 4
        %v532 = vshll.u32 %v190, 16
        %v534 = vrot.slane %v532, 5
        %v535 = vor.u32 %v531, %v534
        %v536 = vrot.slane %v535, 4
        %v538 = vshll.u32 %v191, 16
        %v540 = vrot.slane %v538, 5
        %v541 = vsel %vm215, %v536, %v540
        %v542 = vshrl.u32 %v191, 16
        %v544 = vrot.slane %v542, 4
        %v545 = vor.u32 %v544, %v540
        %v546 = vrot.slane %v545, 4
        %v548 = vshll.u32 %v210, 16
        %v550 = vrot.slane %v548, 5
        %v551 = vsel %vm215, %v546, %v550
        %v553 = vshrl.u32 %v192, 16
        %v555 = vrot.slane %v553, 4
        %v556 = vshll.u32 %v192, 16
        %v558 = vrot.slane %v556, 5
        %v559 = vor.u32 %v555, %v558
        %v560 = vrot.slane %v559, 4
        %v562 = vshll.u32 %v193, 16
        %v564 = vrot.slane %v562, 5
        %v565 = vsel %vm215, %v560, %v564
        %v566 = vshrl.u32 %v193, 16
        %v568 = vrot.slane %v566, 4
        %v569 = vor.u32 %v568, %v564
        %v570 = vrot.slane %v569, 4
        %v572 = vshll.u32 %v211, 16
        %v574 = vrot.slane %v572, 5
        %v575 = vsel %vm215, %v570, %v574
        %v577 = vshrl.u32 %v194, 16
        %v579 = vrot.slane %v577, 4
        %v580 = vshll.u32 %v194, 16
        %v582 = vrot.slane %v580, 5
        %v583 = vor.u32 %v579, %v582
        %v584 = vrot.slane %v583, 4
        %v586 = vshll.u32 %v195, 16
        %v588 = vrot.slane %v586, 5
        %v589 = vsel %vm215, %v584, %v588
        %v590 = vshrl.u32 %v195, 16
        %v592 = vrot.slane %v590, 4
        %v593 = vor.u32 %v592, %v588
        %v594 = vrot.slane %v593, 4
        %v596 = vshll.u32 %v212, 16
        %v598 = vrot.slane %v596, 5
        %v599 = vsel %vm215, %v594, %v598
        %s600 = scalar_lea.vmem %s1, 2
        %v601 = vld [vmem:[%s600] sm:$0x3]
        %v602 = vunpack.c.l.b16 %v229
        %v603 = vunpack.c.l.b16 %v239
        %v604 = vunpack.c.l.b16 %v253
        %v605 = vunpack.c.l.b16 %v263
        %v606 = vunpack.c.l.b16 %v277
        %v607 = vunpack.c.l.b16 %v287
        %v608 = vunpack.c.l.b16 %v301
        %v609 = vunpack.c.l.b16 %v311
        %v610 = vunpack.c.l.b16 %v325
        %v611 = vunpack.c.l.b16 %v335
        %v612 = vunpack.c.l.b16 %v349
        %v613 = vunpack.c.l.b16 %v359
        %v614 = vunpack.c.l.b16 %v373
        %v615 = vunpack.c.l.b16 %v383
        %v616 = vunpack.c.l.b16 %v397
        %v617 = vunpack.c.l.b16 %v407
        %v618 = vunpack.c.l.b16 %v421
        %v619 = vunpack.c.l.b16 %v431
        %v620 = vunpack.c.l.b16 %v445
        %v621 = vunpack.c.l.b16 %v455
        %v622 = vunpack.c.l.b16 %v469
        %v623 = vunpack.c.l.b16 %v479
        %v624 = vunpack.c.l.b16 %v493
        %v625 = vunpack.c.l.b16 %v503
        %v626 = vunpack.c.l.b16 %v517
        %v627 = vunpack.c.l.b16 %v527
        %v628 = vunpack.c.l.b16 %v541
        %v629 = vunpack.c.l.b16 %v551
        %v630 = vunpack.c.l.b16 %v565
        %v631 = vunpack.c.l.b16 %v575
        %v632 = vunpack.c.l.b16 %v589
        %v633 = vunpack.c.l.b16 %v599
        %v634 = vpack.c.b16 %v603, %v602
        %v635 = vpack.c.b16 %v605, %v604
        %v636 = vpack.c.b16 %v607, %v606
        %v637 = vpack.c.b16 %v609, %v608
        %v638 = vpack.c.b16 %v611, %v610
        %v639 = vpack.c.b16 %v613, %v612
        %v640 = vpack.c.b16 %v615, %v614
        %v641 = vpack.c.b16 %v617, %v616
        %v642 = vpack.c.b16 %v619, %v618
        %v643 = vpack.c.b16 %v621, %v620
        %v644 = vpack.c.b16 %v623, %v622
        %v645 = vpack.c.b16 %v625, %v624
        %v646 = vpack.c.b16 %v627, %v626
        %v647 = vpack.c.b16 %v629, %v628
        %v648 = vpack.c.b16 %v631, %v630
        %v649 = vpack.c.b16 %v633, %v632
        %vm650 = vcmask 31744
        %v652 = vsel %vm650, %v634, 0
        %v655 = vsel %vm650, %v635, 0
        %v658 = vsel %vm650, %v636, 0
        %v661 = vsel %vm650, %v637, 0
        %v664 = vsel %vm650, %v638, 0
        %v667 = vsel %vm650, %v639, 0
        %v670 = vsel %vm650, %v640, 0
        %v673 = vsel %vm650, %v641, 0
        %v676 = vsel %vm650, %v642, 0
        %v679 = vsel %vm650, %v643, 0
        %v682 = vsel %vm650, %v644, 0
        %v685 = vsel %vm650, %v645, 0
        %v688 = vsel %vm650, %v646, 0
        %v691 = vsel %vm650, %v647, 0
        %v694 = vsel %vm650, %v648, 0
        %v697 = vsel %vm650, %v649, 0
        %vm699 = vcmask 1041408
        %v701 = vsel %vm699, %v601, 0
        %703 = vmatprep.subr.bf16.mxu0 0
        %704 = vmatpush1.bf16.msra.mxu0 0
        %705 = vmatprep.subr.bf16.mxu0 0
        %706 = vmatpush1.bf16.msra.mxu0 0
        %707 = vmatprep.subr.bf16.mxu0 0
        %708 = vmatpush1.bf16.msra.mxu0 0
        %709 = vmatprep.subr.bf16.mxu0 0
        %710 = vmatpush1.bf16.msra.mxu0 0
        %711 = vmatprep.subr.bf16.mxu0 0
        %712 = vmatpush1.bf16.msra.mxu0 0
        %713 = vmatprep.subr.bf16.mxu0 0
        %714 = vmatpush1.bf16.msra.mxu0 0
        %715 = vmatprep.subr.bf16.mxu0 0
        %716 = vmatpush1.bf16.msra.mxu0 0
        %717 = vmatprep.subr.bf16.mxu0 0
        %718 = vmatpush1.bf16.msra.mxu0 %v701
        %719 = vmatprep.subr.bf16.mxu0 0
        %720 = vmatpush2.bf16.msra.mxu0 0
        %721 = vmatprep.subr.bf16.mxu0 0
        %722 = vmatpush2.bf16.msra.mxu0 0
        %723 = vmatprep.subr.bf16.mxu0 0
        %724 = vmatpush2.bf16.msra.mxu0 0
        %725 = vmatprep.subr.bf16.mxu0 0
        %726 = vmatpush2.bf16.msra.mxu0 0
        %727 = vmatprep.subr.bf16.mxu0 0
        %728 = vmatpush2.bf16.msra.mxu0 0
        %729 = vmatprep.subr.bf16.mxu0 0
        %730 = vmatpush2.bf16.msra.mxu0 0
        %731 = vmatprep.subr.bf16.mxu0 0
        %732 = vmatpush2.bf16.msra.mxu0 0
        %733 = vmatprep.subr.bf16.mxu0 0
        %734 = vmatpush2.bf16.msra.mxu0 0
        %735 = vmatprep.mubr.bf16.mxu0 0
        %736 = vmatmul.mubr.bf16.gmra.mxu0 %v652
        %v737 = vpop.f32.mrf.mxu0
        %v738 = vadd.f32 0.0, %v737
        %v739 = vpop.f32.mrf.mxu0
        %v740 = vpop.f32.mrf.mxu0
        %v741 = vadd.f32 0.0, %v740
        %v742 = vpop.f32.mrf.mxu0
        %743 = vmatprep.mubr.bf16.mxu0 0
        %744 = vmatmul.mubr.bf16.gmra.mxu0 %v655
        %v745 = vpop.f32.mrf.mxu0
        %v746 = vadd.f32 0.0, %v745
        %v747 = vpop.f32.mrf.mxu0
        %v748 = vpop.f32.mrf.mxu0
        %v749 = vadd.f32 0.0, %v748
        %v750 = vpop.f32.mrf.mxu0
        %751 = vmatprep.mubr.bf16.mxu0 0
        %752 = vmatmul.mubr.bf16.gmra.mxu0 %v658
        %v753 = vpop.f32.mrf.mxu0
        %v754 = vadd.f32 0.0, %v753
        %v755 = vpop.f32.mrf.mxu0
        %v756 = vpop.f32.mrf.mxu0
        %v757 = vadd.f32 0.0, %v756
        %v758 = vpop.f32.mrf.mxu0
        %759 = vmatprep.mubr.bf16.mxu0 0
        %760 = vmatmul.mubr.bf16.gmra.mxu0 %v661
        %v761 = vpop.f32.mrf.mxu0
        %v762 = vadd.f32 0.0, %v761
        %v763 = vpop.f32.mrf.mxu0
        %v764 = vpop.f32.mrf.mxu0
        %v765 = vadd.f32 0.0, %v764
        %v766 = vpop.f32.mrf.mxu0
        %767 = vmatprep.mubr.bf16.mxu0 0
        %768 = vmatmul.mubr.bf16.gmra.mxu0 %v664
        %v769 = vpop.f32.mrf.mxu0
        %v770 = vadd.f32 0.0, %v769
        %v771 = vpop.f32.mrf.mxu0
        %v772 = vpop.f32.mrf.mxu0
        %v773 = vadd.f32 0.0, %v772
        %v774 = vpop.f32.mrf.mxu0
        %775 = vmatprep.mubr.bf16.mxu0 0
        %776 = vmatmul.mubr.bf16.gmra.mxu0 %v667
        %v777 = vpop.f32.mrf.mxu0
        %v778 = vadd.f32 0.0, %v777
        %v779 = vpop.f32.mrf.mxu0
        %v780 = vpop.f32.mrf.mxu0
        %v781 = vadd.f32 0.0, %v780
        %v782 = vpop.f32.mrf.mxu0
        %783 = vmatprep.mubr.bf16.mxu0 0
        %784 = vmatmul.mubr.bf16.gmra.mxu0 %v670
        %v785 = vpop.f32.mrf.mxu0
        %v786 = vadd.f32 0.0, %v785
        %v787 = vpop.f32.mrf.mxu0
        %v788 = vpop.f32.mrf.mxu0
        %v789 = vadd.f32 0.0, %v788
        %v790 = vpop.f32.mrf.mxu0
        %791 = vmatprep.mubr.bf16.mxu0 0
        %792 = vmatmul.mubr.bf16.gmra.mxu0 %v673
        %v793 = vpop.f32.mrf.mxu0
        %v794 = vadd.f32 0.0, %v793
        %v795 = vpop.f32.mrf.mxu0
        %v796 = vpop.f32.mrf.mxu0
        %v797 = vadd.f32 0.0, %v796
        %v798 = vpop.f32.mrf.mxu0
        %799 = vmatprep.mubr.bf16.mxu0 0
        %800 = vmatmul.mubr.bf16.gmra.mxu0 %v676
        %v801 = vpop.f32.mrf.mxu0
        %v802 = vadd.f32 0.0, %v801
        %v803 = vpop.f32.mrf.mxu0
        %v804 = vpop.f32.mrf.mxu0
        %v805 = vadd.f32 0.0, %v804
        %v806 = vpop.f32.mrf.mxu0
        %807 = vmatprep.mubr.bf16.mxu0 0
        %808 = vmatmul.mubr.bf16.gmra.mxu0 %v679
        %v809 = vpop.f32.mrf.mxu0
        %v810 = vadd.f32 0.0, %v809
        %v811 = vpop.f32.mrf.mxu0
        %v812 = vpop.f32.mrf.mxu0
        %v813 = vadd.f32 0.0, %v812
        %v814 = vpop.f32.mrf.mxu0
        %815 = vmatprep.mubr.bf16.mxu0 0
        %816 = vmatmul.mubr.bf16.gmra.mxu0 %v682
        %v817 = vpop.f32.mrf.mxu0
        %v818 = vadd.f32 0.0, %v817
        %v819 = vpop.f32.mrf.mxu0
        %v820 = vpop.f32.mrf.mxu0
        %v821 = vadd.f32 0.0, %v820
        %v822 = vpop.f32.mrf.mxu0
        %823 = vmatprep.mubr.bf16.mxu0 0
        %824 = vmatmul.mubr.bf16.gmra.mxu0 %v685
        %v825 = vpop.f32.mrf.mxu0
        %v826 = vadd.f32 0.0, %v825
        %v827 = vpop.f32.mrf.mxu0
        %v828 = vpop.f32.mrf.mxu0
        %v829 = vadd.f32 0.0, %v828
        %v830 = vpop.f32.mrf.mxu0
        %831 = vmatprep.mubr.bf16.mxu0 0
        %832 = vmatmul.mubr.bf16.gmra.mxu0 %v688
        %v833 = vpop.f32.mrf.mxu0
        %v834 = vadd.f32 0.0, %v833
        %v835 = vpop.f32.mrf.mxu0
        %v836 = vpop.f32.mrf.mxu0
        %v837 = vadd.f32 0.0, %v836
        %v838 = vpop.f32.mrf.mxu0
        %839 = vmatprep.mubr.bf16.mxu0 0
        %840 = vmatmul.mubr.bf16.gmra.mxu0 %v691
        %v841 = vpop.f32.mrf.mxu0
        %v842 = vadd.f32 0.0, %v841
        %v843 = vpop.f32.mrf.mxu0
        %v844 = vpop.f32.mrf.mxu0
        %v845 = vadd.f32 0.0, %v844
        %v846 = vpop.f32.mrf.mxu0
        %847 = vmatprep.mubr.bf16.mxu0 0
        %848 = vmatmul.mubr.bf16.gmra.mxu0 %v694
        %v849 = vpop.f32.mrf.mxu0
        %v850 = vadd.f32 0.0, %v849
        %v851 = vpop.f32.mrf.mxu0
        %v852 = vpop.f32.mrf.mxu0
        %v853 = vadd.f32 0.0, %v852
        %v854 = vpop.f32.mrf.mxu0
        %855 = vmatprep.mubr.bf16.mxu0 0
        %856 = vmatmul.mubr.bf16.gmra.mxu0 %v697
        %v857 = vpop.f32.mrf.mxu0
        %v858 = vadd.f32 0.0, %v857
        %v859 = vpop.f32.mrf.mxu0
        %v860 = vpop.f32.mrf.mxu0
        %v861 = vadd.f32 0.0, %v860
        %v862 = vpop.f32.mrf.mxu0
        %863 = vdwg.mxu0
        %v896 = vunpack.c.l.b16 %v164
        %v897 = vunpack.c.l.b16 %v165
        %v898 = vunpack.c.l.b16 %v166
        %v899 = vunpack.c.l.b16 %v167
        %v900 = vunpack.c.l.b16 %v168
        %v901 = vunpack.c.l.b16 %v169
        %v902 = vunpack.c.l.b16 %v170
        %v903 = vunpack.c.l.b16 %v171
        %v904 = vunpack.c.l.b16 %v172
        %v905 = vunpack.c.l.b16 %v173
        %v906 = vunpack.c.l.b16 %v174
        %v907 = vunpack.c.l.b16 %v175
        %v908 = vunpack.c.l.b16 %v176
        %v909 = vunpack.c.l.b16 %v177
        %v910 = vunpack.c.l.b16 %v178
        %v911 = vunpack.c.l.b16 %v179
        %v912 = vunpack.c.l.b16 %v180
        %v913 = vunpack.c.l.b16 %v181
        %v914 = vunpack.c.l.b16 %v182
        %v915 = vunpack.c.l.b16 %v183
        %v916 = vunpack.c.l.b16 %v184
        %v917 = vunpack.c.l.b16 %v185
        %v918 = vunpack.c.l.b16 %v186
        %v919 = vunpack.c.l.b16 %v187
        %v920 = vunpack.c.l.b16 %v188
        %v921 = vunpack.c.l.b16 %v189
        %v922 = vunpack.c.l.b16 %v190
        %v923 = vunpack.c.l.b16 %v191
        %v924 = vunpack.c.l.b16 %v192
        %v925 = vunpack.c.l.b16 %v193
        %v926 = vunpack.c.l.b16 %v194
        %v927 = vunpack.c.l.b16 %v195
        %v928 = vpack.c.b16 %v897, %v896
        %v929 = vpack.c.b16 %v899, %v898
        %v930 = vpack.c.b16 %v901, %v900
        %v931 = vpack.c.b16 %v903, %v902
        %v932 = vpack.c.b16 %v905, %v904
        %v933 = vpack.c.b16 %v907, %v906
        %v934 = vpack.c.b16 %v909, %v908
        %v935 = vpack.c.b16 %v911, %v910
        %v936 = vpack.c.b16 %v913, %v912
        %v937 = vpack.c.b16 %v915, %v914
        %v938 = vpack.c.b16 %v917, %v916
        %v939 = vpack.c.b16 %v919, %v918
        %v940 = vpack.c.b16 %v921, %v920
        %v941 = vpack.c.b16 %v923, %v922
        %v942 = vpack.c.b16 %v925, %v924
        %v943 = vpack.c.b16 %v927, %v926
        %v945 = vsel %vm650, %v928, 0
        %v948 = vsel %vm650, %v929, 0
        %v951 = vsel %vm650, %v930, 0
        %v954 = vsel %vm650, %v931, 0
        %v957 = vsel %vm650, %v932, 0
        %v960 = vsel %vm650, %v933, 0
        %v963 = vsel %vm650, %v934, 0
        %v966 = vsel %vm650, %v935, 0
        %v969 = vsel %vm650, %v936, 0
        %v972 = vsel %vm650, %v937, 0
        %v975 = vsel %vm650, %v938, 0
        %v978 = vsel %vm650, %v939, 0
        %v981 = vsel %vm650, %v940, 0
        %v984 = vsel %vm650, %v941, 0
        %v987 = vsel %vm650, %v942, 0
        %v990 = vsel %vm650, %v943, 0
        %v993 = vsel %vm699, %v196, 0
        %995 = vmatprep.subr.bf16.mxu0 0
        %996 = vmatpush1.bf16.msra.mxu0 0
        %997 = vmatprep.subr.bf16.mxu0 0
        %998 = vmatpush1.bf16.msra.mxu0 0
        %999 = vmatprep.subr.bf16.mxu0 0
        %1000 = vmatpush1.bf16.msra.mxu0 0
        %1001 = vmatprep.subr.bf16.mxu0 0
        %1002 = vmatpush1.bf16.msra.mxu0 0
        %1003 = vmatprep.subr.bf16.mxu0 0
        %1004 = vmatpush1.bf16.msra.mxu0 0
        %1005 = vmatprep.subr.bf16.mxu0 0
        %1006 = vmatpush1.bf16.msra.mxu0 0
        %1007 = vmatprep.subr.bf16.mxu0 0
        %1008 = vmatpush1.bf16.msra.mxu0 0
        %1009 = vmatprep.subr.bf16.mxu0 0
        %1010 = vmatpush1.bf16.msra.mxu0 %v993
        %1011 = vmatprep.subr.bf16.mxu0 0
        %1012 = vmatpush2.bf16.msra.mxu0 0
        %1013 = vmatprep.subr.bf16.mxu0 0
        %1014 = vmatpush2.bf16.msra.mxu0 0
        %1015 = vmatprep.subr.bf16.mxu0 0
        %1016 = vmatpush2.bf16.msra.mxu0 0
        %1017 = vmatprep.subr.bf16.mxu0 0
        %1018 = vmatpush2.bf16.msra.mxu0 0
        %1019 = vmatprep.subr.bf16.mxu0 0
        %1020 = vmatpush2.bf16.msra.mxu0 0
        %1021 = vmatprep.subr.bf16.mxu0 0
        %1022 = vmatpush2.bf16.msra.mxu0 0
        %1023 = vmatprep.subr.bf16.mxu0 0
        %1024 = vmatpush2.bf16.msra.mxu0 0
        %1025 = vmatprep.subr.bf16.mxu0 0
        %1026 = vmatpush2.bf16.msra.mxu0 0
        %1027 = vmatprep.mubr.bf16.mxu0 0
        %1028 = vmatmul.mubr.bf16.gmra.mxu0 %v945
        %v1029 = vpop.f32.mrf.mxu0
        %v1030 = vadd.f32 %v738, %v1029
        %v1031 = vpop.f32.mrf.mxu0
        %v1032 = vpop.f32.mrf.mxu0
        %v1033 = vadd.f32 %v741, %v1032
        %v1034 = vpop.f32.mrf.mxu0
        %1035 = vmatprep.mubr.bf16.mxu0 0
        %1036 = vmatmul.mubr.bf16.gmra.mxu0 %v948
        %v1037 = vpop.f32.mrf.mxu0
        %v1038 = vadd.f32 %v746, %v1037
        %v1039 = vpop.f32.mrf.mxu0
        %v1040 = vpop.f32.mrf.mxu0
        %v1041 = vadd.f32 %v749, %v1040
        %v1042 = vpop.f32.mrf.mxu0
        %1043 = vmatprep.mubr.bf16.mxu0 0
        %1044 = vmatmul.mubr.bf16.gmra.mxu0 %v951
        %v1045 = vpop.f32.mrf.mxu0
        %v1046 = vadd.f32 %v754, %v1045
        %v1047 = vpop.f32.mrf.mxu0
        %v1048 = vpop.f32.mrf.mxu0
        %v1049 = vadd.f32 %v757, %v1048
        %v1050 = vpop.f32.mrf.mxu0
        %1051 = vmatprep.mubr.bf16.mxu0 0
        %1052 = vmatmul.mubr.bf16.gmra.mxu0 %v954
        %v1053 = vpop.f32.mrf.mxu0
        %v1054 = vadd.f32 %v762, %v1053
        %v1055 = vpop.f32.mrf.mxu0
        %v1056 = vpop.f32.mrf.mxu0
        %v1057 = vadd.f32 %v765, %v1056
        %v1058 = vpop.f32.mrf.mxu0
        %1059 = vmatprep.mubr.bf16.mxu0 0
        %1060 = vmatmul.mubr.bf16.gmra.mxu0 %v957
        %v1061 = vpop.f32.mrf.mxu0
        %v1062 = vadd.f32 %v770, %v1061
        %v1063 = vpop.f32.mrf.mxu0
        %v1064 = vpop.f32.mrf.mxu0
        %v1065 = vadd.f32 %v773, %v1064
        %v1066 = vpop.f32.mrf.mxu0
        %1067 = vmatprep.mubr.bf16.mxu0 0
        %1068 = vmatmul.mubr.bf16.gmra.mxu0 %v960
        %v1069 = vpop.f32.mrf.mxu0
        %v1070 = vadd.f32 %v778, %v1069
        %v1071 = vpop.f32.mrf.mxu0
        %v1072 = vpop.f32.mrf.mxu0
        %v1073 = vadd.f32 %v781, %v1072
        %v1074 = vpop.f32.mrf.mxu0
        %1075 = vmatprep.mubr.bf16.mxu0 0
        %1076 = vmatmul.mubr.bf16.gmra.mxu0 %v963
        %v1077 = vpop.f32.mrf.mxu0
        %v1078 = vadd.f32 %v786, %v1077
        %v1079 = vpop.f32.mrf.mxu0
        %v1080 = vpop.f32.mrf.mxu0
        %v1081 = vadd.f32 %v789, %v1080
        %v1082 = vpop.f32.mrf.mxu0
        %1083 = vmatprep.mubr.bf16.mxu0 0
        %1084 = vmatmul.mubr.bf16.gmra.mxu0 %v966
        %v1085 = vpop.f32.mrf.mxu0
        %v1086 = vadd.f32 %v794, %v1085
        %v1087 = vpop.f32.mrf.mxu0
        %v1088 = vpop.f32.mrf.mxu0
        %v1089 = vadd.f32 %v797, %v1088
        %v1090 = vpop.f32.mrf.mxu0
        %1091 = vmatprep.mubr.bf16.mxu0 0
        %1092 = vmatmul.mubr.bf16.gmra.mxu0 %v969
        %v1093 = vpop.f32.mrf.mxu0
        %v1094 = vadd.f32 %v802, %v1093
        %v1095 = vpop.f32.mrf.mxu0
        %v1096 = vpop.f32.mrf.mxu0
        %v1097 = vadd.f32 %v805, %v1096
        %v1098 = vpop.f32.mrf.mxu0
        %1099 = vmatprep.mubr.bf16.mxu0 0
        %1100 = vmatmul.mubr.bf16.gmra.mxu0 %v972
        %v1101 = vpop.f32.mrf.mxu0
        %v1102 = vadd.f32 %v810, %v1101
        %v1103 = vpop.f32.mrf.mxu0
        %v1104 = vpop.f32.mrf.mxu0
        %v1105 = vadd.f32 %v813, %v1104
        %v1106 = vpop.f32.mrf.mxu0
        %1107 = vmatprep.mubr.bf16.mxu0 0
        %1108 = vmatmul.mubr.bf16.gmra.mxu0 %v975
        %v1109 = vpop.f32.mrf.mxu0
        %v1110 = vadd.f32 %v818, %v1109
        %v1111 = vpop.f32.mrf.mxu0
        %v1112 = vpop.f32.mrf.mxu0
        %v1113 = vadd.f32 %v821, %v1112
        %v1114 = vpop.f32.mrf.mxu0
        %1115 = vmatprep.mubr.bf16.mxu0 0
        %1116 = vmatmul.mubr.bf16.gmra.mxu0 %v978
        %v1117 = vpop.f32.mrf.mxu0
        %v1118 = vadd.f32 %v826, %v1117
        %v1119 = vpop.f32.mrf.mxu0
        %v1120 = vpop.f32.mrf.mxu0
        %v1121 = vadd.f32 %v829, %v1120
        %v1122 = vpop.f32.mrf.mxu0
        %1123 = vmatprep.mubr.bf16.mxu0 0
        %1124 = vmatmul.mubr.bf16.gmra.mxu0 %v981
        %v1125 = vpop.f32.mrf.mxu0
        %v1126 = vadd.f32 %v834, %v1125
        %v1127 = vpop.f32.mrf.mxu0
        %v1128 = vpop.f32.mrf.mxu0
        %v1129 = vadd.f32 %v837, %v1128
        %v1130 = vpop.f32.mrf.mxu0
        %1131 = vmatprep.mubr.bf16.mxu0 0
        %1132 = vmatmul.mubr.bf16.gmra.mxu0 %v984
        %v1133 = vpop.f32.mrf.mxu0
        %v1134 = vadd.f32 %v842, %v1133
        %v1135 = vpop.f32.mrf.mxu0
        %v1136 = vpop.f32.mrf.mxu0
        %v1137 = vadd.f32 %v845, %v1136
        %v1138 = vpop.f32.mrf.mxu0
        %1139 = vmatprep.mubr.bf16.mxu0 0
        %1140 = vmatmul.mubr.bf16.gmra.mxu0 %v987
        %v1141 = vpop.f32.mrf.mxu0
        %v1142 = vadd.f32 %v850, %v1141
        %v1143 = vpop.f32.mrf.mxu0
        %v1144 = vpop.f32.mrf.mxu0
        %v1145 = vadd.f32 %v853, %v1144
        %v1146 = vpop.f32.mrf.mxu0
        %1147 = vmatprep.mubr.bf16.mxu0 0
        %1148 = vmatmul.mubr.bf16.gmra.mxu0 %v990
        %v1149 = vpop.f32.mrf.mxu0
        %v1150 = vadd.f32 %v858, %v1149
        %v1151 = vpop.f32.mrf.mxu0
        %v1152 = vpop.f32.mrf.mxu0
        %v1153 = vadd.f32 %v861, %v1152
        %v1154 = vpop.f32.mrf.mxu0
        %1155 = vdwg.mxu0
        %v1156 = vld [vmem:[%s163] sm:$0xe]
        %v1157 = vld [vmem:[%s163 + $0xc] sm:$0xe]
        %v1158 = vld [vmem:[%s163 + $0x18] sm:$0xe]
        %v1159 = vld [vmem:[%s163 + $0x24] sm:$0xe]
        %v1160 = vld [vmem:[%s163 + $0x30] sm:$0xe]
        %v1161 = vld [vmem:[%s163 + $0x3c] sm:$0xe]
        %v1162 = vld [vmem:[%s163 + $0x48] sm:$0xe]
        %v1163 = vld [vmem:[%s163 + $0x54] sm:$0xe]
        %v1164 = vld [vmem:[%s163 + $0x60] sm:$0xe]
        %v1165 = vld [vmem:[%s163 + $0x6c] sm:$0xe]
        %v1166 = vld [vmem:[%s163 + $0x78] sm:$0xe]
        %v1167 = vld [vmem:[%s163 + $0x84] sm:$0xe]
        %v1168 = vld [vmem:[%s163 + $0x90] sm:$0xe]
        %v1169 = vld [vmem:[%s163 + $0x9c] sm:$0xe]
        %v1170 = vld [vmem:[%s163 + $0xa8] sm:$0xe]
        %v1171 = vld [vmem:[%s163 + $0xb4] sm:$0xe]
        %vm1204 = vcmask 1042432
        %vm1205 = vcmask 1046532
        %vm1206 = vmor %vm1204, %vm1205
        %v1207 = vrot.slane %v1156, 5
        %v1208 = vrot.slane %v1207, 4
        %v1209 = vrot.slane %v165, 5
        %v1210 = vsel %vm1206, %v1208, %v1209
        %v1211 = vrot.slane %v1209, 4
        %v1212 = vrot.slane %v197, 5
        %v1213 = vsel %vm1206, %v1211, %v1212
        %v1214 = vrot.slane %v1157, 5
        %v1215 = vrot.slane %v1214, 4
        %v1216 = vrot.slane %v167, 5
        %v1217 = vsel %vm1206, %v1215, %v1216
        %v1218 = vrot.slane %v1216, 4
        %v1219 = vrot.slane %v198, 5
        %v1220 = vsel %vm1206, %v1218, %v1219
        %v1221 = vrot.slane %v1158, 5
        %v1222 = vrot.slane %v1221, 4
        %v1223 = vrot.slane %v169, 5
        %v1224 = vsel %vm1206, %v1222, %v1223
        %v1225 = vrot.slane %v1223, 4
        %v1226 = vrot.slane %v199, 5
        %v1227 = vsel %vm1206, %v1225, %v1226
        %v1228 = vrot.slane %v1159, 5
        %v1229 = vrot.slane %v1228, 4
        %v1230 = vrot.slane %v171, 5
        %v1231 = vsel %vm1206, %v1229, %v1230
        %v1232 = vrot.slane %v1230, 4
        %v1233 = vrot.slane %v200, 5
        %v1234 = vsel %vm1206, %v1232, %v1233
        %v1235 = vrot.slane %v1160, 5
        %v1236 = vrot.slane %v1235, 4
        %v1237 = vrot.slane %v173, 5
        %v1238 = vsel %vm1206, %v1236, %v1237
        %v1239 = vrot.slane %v1237, 4
        %v1240 = vrot.slane %v201, 5
        %v1241 = vsel %vm1206, %v1239, %v1240
        %v1242 = vrot.slane %v1161, 5
        %v1243 = vrot.slane %v1242, 4
        %v1244 = vrot.slane %v175, 5
        %v1245 = vsel %vm1206, %v1243, %v1244
        %v1246 = vrot.slane %v1244, 4
        %v1247 = vrot.slane %v202, 5
        %v1248 = vsel %vm1206, %v1246, %v1247
        %v1249 = vrot.slane %v1162, 5
        %v1250 = vrot.slane %v1249, 4
        %v1251 = vrot.slane %v177, 5
        %v1252 = vsel %vm1206, %v1250, %v1251
        %v1253 = vrot.slane %v1251, 4
        %v1254 = vrot.slane %v203, 5
        %v1255 = vsel %vm1206, %v1253, %v1254
        %v1256 = vrot.slane %v1163, 5
        %v1257 = vrot.slane %v1256, 4
        %v1258 = vrot.slane %v179, 5
        %v1259 = vsel %vm1206, %v1257, %v1258
        %v1260 = vrot.slane %v1258, 4
        %v1261 = vrot.slane %v204, 5
        %v1262 = vsel %vm1206, %v1260, %v1261
        %v1263 = vrot.slane %v1164, 5
        %v1264 = vrot.slane %v1263, 4
        %v1265 = vrot.slane %v181, 5
        %v1266 = vsel %vm1206, %v1264, %v1265
        %v1267 = vrot.slane %v1265, 4
        %v1268 = vrot.slane %v205, 5
        %v1269 = vsel %vm1206, %v1267, %v1268
        %v1270 = vrot.slane %v1165, 5
        %v1271 = vrot.slane %v1270, 4
        %v1272 = vrot.slane %v183, 5
        %v1273 = vsel %vm1206, %v1271, %v1272
        %v1274 = vrot.slane %v1272, 4
        %v1275 = vrot.slane %v206, 5
        %v1276 = vsel %vm1206, %v1274, %v1275
        %v1277 = vrot.slane %v1166, 5
        %v1278 = vrot.slane %v1277, 4
        %v1279 = vrot.slane %v185, 5
        %v1280 = vsel %vm1206, %v1278, %v1279
        %v1281 = vrot.slane %v1279, 4
        %v1282 = vrot.slane %v207, 5
        %v1283 = vsel %vm1206, %v1281, %v1282
        %v1284 = vrot.slane %v1167, 5
        %v1285 = vrot.slane %v1284, 4
        %v1286 = vrot.slane %v187, 5
        %v1287 = vsel %vm1206, %v1285, %v1286
        %v1288 = vrot.slane %v1286, 4
        %v1289 = vrot.slane %v208, 5
        %v1290 = vsel %vm1206, %v1288, %v1289
        %v1291 = vrot.slane %v1168, 5
        %v1292 = vrot.slane %v1291, 4
        %v1293 = vrot.slane %v189, 5
        %v1294 = vsel %vm1206, %v1292, %v1293
        %v1295 = vrot.slane %v1293, 4
        %v1296 = vrot.slane %v209, 5
        %v1297 = vsel %vm1206, %v1295, %v1296
        %v1298 = vrot.slane %v1169, 5
        %v1299 = vrot.slane %v1298, 4
        %v1300 = vrot.slane %v191, 5
        %v1301 = vsel %vm1206, %v1299, %v1300
        %v1302 = vrot.slane %v1300, 4
        %v1303 = vrot.slane %v210, 5
        %v1304 = vsel %vm1206, %v1302, %v1303
        %v1305 = vrot.slane %v1170, 5
        %v1306 = vrot.slane %v1305, 4
        %v1307 = vrot.slane %v193, 5
        %v1308 = vsel %vm1206, %v1306, %v1307
        %v1309 = vrot.slane %v1307, 4
        %v1310 = vrot.slane %v211, 5
        %v1311 = vsel %vm1206, %v1309, %v1310
        %v1312 = vrot.slane %v1171, 5
        %v1313 = vrot.slane %v1312, 4
        %v1314 = vrot.slane %v195, 5
        %v1315 = vsel %vm1206, %v1313, %v1314
        %v1316 = vrot.slane %v1314, 4
        %v1317 = vrot.slane %v212, 5
        %v1318 = vsel %vm1206, %v1316, %v1317
        %s1319 = scalar_lea.vmem %s1, 4
        %v1320 = vld [vmem:[%s1319] sm:$0x3]
        %v1321 = vunpack.c.l.b16 %v1210
        %v1322 = vunpack.c.l.b16 %v1213
        %v1323 = vunpack.c.l.b16 %v1217
        %v1324 = vunpack.c.l.b16 %v1220
        %v1325 = vunpack.c.l.b16 %v1224
        %v1326 = vunpack.c.l.b16 %v1227
        %v1327 = vunpack.c.l.b16 %v1231
        %v1328 = vunpack.c.l.b16 %v1234
        %v1329 = vunpack.c.l.b16 %v1238
        %v1330 = vunpack.c.l.b16 %v1241
        %v1331 = vunpack.c.l.b16 %v1245
        %v1332 = vunpack.c.l.b16 %v1248
        %v1333 = vunpack.c.l.b16 %v1252
        %v1334 = vunpack.c.l.b16 %v1255
        %v1335 = vunpack.c.l.b16 %v1259
        %v1336 = vunpack.c.l.b16 %v1262
        %v1337 = vunpack.c.l.b16 %v1266
        %v1338 = vunpack.c.l.b16 %v1269
        %v1339 = vunpack.c.l.b16 %v1273
        %v1340 = vunpack.c.l.b16 %v1276
        %v1341 = vunpack.c.l.b16 %v1280
        %v1342 = vunpack.c.l.b16 %v1283
        %v1343 = vunpack.c.l.b16 %v1287
        %v1344 = vunpack.c.l.b16 %v1290
        %v1345 = vunpack.c.l.b16 %v1294
        %v1346 = vunpack.c.l.b16 %v1297
        %v1347 = vunpack.c.l.b16 %v1301
        %v1348 = vunpack.c.l.b16 %v1304
        %v1349 = vunpack.c.l.b16 %v1308
        %v1350 = vunpack.c.l.b16 %v1311
        %v1351 = vunpack.c.l.b16 %v1315
        %v1352 = vunpack.c.l.b16 %v1318
        %v1353 = vpack.c.b16 %v1322, %v1321
        %v1354 = vpack.c.b16 %v1324, %v1323
        %v1355 = vpack.c.b16 %v1326, %v1325
        %v1356 = vpack.c.b16 %v1328, %v1327
        %v1357 = vpack.c.b16 %v1330, %v1329
        %v1358 = vpack.c.b16 %v1332, %v1331
        %v1359 = vpack.c.b16 %v1334, %v1333
        %v1360 = vpack.c.b16 %v1336, %v1335
        %v1361 = vpack.c.b16 %v1338, %v1337
        %v1362 = vpack.c.b16 %v1340, %v1339
        %v1363 = vpack.c.b16 %v1342, %v1341
        %v1364 = vpack.c.b16 %v1344, %v1343
        %v1365 = vpack.c.b16 %v1346, %v1345
        %v1366 = vpack.c.b16 %v1348, %v1347
        %v1367 = vpack.c.b16 %v1350, %v1349
        %v1368 = vpack.c.b16 %v1352, %v1351
        %v1370 = vsel %vm650, %v1353, 0
        %v1373 = vsel %vm650, %v1354, 0
        %v1376 = vsel %vm650, %v1355, 0
        %v1379 = vsel %vm650, %v1356, 0
        %v1382 = vsel %vm650, %v1357, 0
        %v1385 = vsel %vm650, %v1358, 0
        %v1388 = vsel %vm650, %v1359, 0
        %v1391 = vsel %vm650, %v1360, 0
        %v1394 = vsel %vm650, %v1361, 0
        %v1397 = vsel %vm650, %v1362, 0
        %v1400 = vsel %vm650, %v1363, 0
        %v1403 = vsel %vm650, %v1364, 0
        %v1406 = vsel %vm650, %v1365, 0
        %v1409 = vsel %vm650, %v1366, 0
        %v1412 = vsel %vm650, %v1367, 0
        %v1415 = vsel %vm650, %v1368, 0
        %v1418 = vsel %vm699, %v1320, 0
        %1420 = vmatprep.subr.bf16.mxu0 0
        %1421 = vmatpush1.bf16.msra.mxu0 0
        %1422 = vmatprep.subr.bf16.mxu0 0
        %1423 = vmatpush1.bf16.msra.mxu0 0
        %1424 = vmatprep.subr.bf16.mxu0 0
        %1425 = vmatpush1.bf16.msra.mxu0 0
        %1426 = vmatprep.subr.bf16.mxu0 0
        %1427 = vmatpush1.bf16.msra.mxu0 0
        %1428 = vmatprep.subr.bf16.mxu0 0
        %1429 = vmatpush1.bf16.msra.mxu0 0
        %1430 = vmatprep.subr.bf16.mxu0 0
        %1431 = vmatpush1.bf16.msra.mxu0 0
        %1432 = vmatprep.subr.bf16.mxu0 0
        %1433 = vmatpush1.bf16.msra.mxu0 0
        %1434 = vmatprep.subr.bf16.mxu0 0
        %1435 = vmatpush1.bf16.msra.mxu0 %v1418
        %1436 = vmatprep.subr.bf16.mxu0 0
        %1437 = vmatpush2.bf16.msra.mxu0 0
        %1438 = vmatprep.subr.bf16.mxu0 0
        %1439 = vmatpush2.bf16.msra.mxu0 0
        %1440 = vmatprep.subr.bf16.mxu0 0
        %1441 = vmatpush2.bf16.msra.mxu0 0
        %1442 = vmatprep.subr.bf16.mxu0 0
        %1443 = vmatpush2.bf16.msra.mxu0 0
        %1444 = vmatprep.subr.bf16.mxu0 0
        %1445 = vmatpush2.bf16.msra.mxu0 0
        %1446 = vmatprep.subr.bf16.mxu0 0
        %1447 = vmatpush2.bf16.msra.mxu0 0
        %1448 = vmatprep.subr.bf16.mxu0 0
        %1449 = vmatpush2.bf16.msra.mxu0 0
        %1450 = vmatprep.subr.bf16.mxu0 0
        %1451 = vmatpush2.bf16.msra.mxu0 0
        %1452 = vmatprep.mubr.bf16.mxu0 0
        %1453 = vmatmul.mubr.bf16.gmra.mxu0 %v1370
        %v1454 = vpop.f32.mrf.mxu0
        %v1455 = vadd.f32 0.0, %v1454
        %v1456 = vpop.f32.mrf.mxu0
        %v1457 = vpop.f32.mrf.mxu0
        %v1458 = vadd.f32 0.0, %v1457
        %v1459 = vpop.f32.mrf.mxu0
        %1460 = vmatprep.mubr.bf16.mxu0 0
        %1461 = vmatmul.mubr.bf16.gmra.mxu0 %v1373
        %v1462 = vpop.f32.mrf.mxu0
        %v1463 = vadd.f32 0.0, %v1462
        %v1464 = vpop.f32.mrf.mxu0
        %v1465 = vpop.f32.mrf.mxu0
        %v1466 = vadd.f32 0.0, %v1465
        %v1467 = vpop.f32.mrf.mxu0
        %1468 = vmatprep.mubr.bf16.mxu0 0
        %1469 = vmatmul.mubr.bf16.gmra.mxu0 %v1376
        %v1470 = vpop.f32.mrf.mxu0
        %v1471 = vadd.f32 0.0, %v1470
        %v1472 = vpop.f32.mrf.mxu0
        %v1473 = vpop.f32.mrf.mxu0
        %v1474 = vadd.f32 0.0, %v1473
        %v1475 = vpop.f32.mrf.mxu0
        %1476 = vmatprep.mubr.bf16.mxu0 0
        %1477 = vmatmul.mubr.bf16.gmra.mxu0 %v1379
        %v1478 = vpop.f32.mrf.mxu0
        %v1479 = vadd.f32 0.0, %v1478
        %v1480 = vpop.f32.mrf.mxu0
        %v1481 = vpop.f32.mrf.mxu0
        %v1482 = vadd.f32 0.0, %v1481
        %v1483 = vpop.f32.mrf.mxu0
        %1484 = vmatprep.mubr.bf16.mxu0 0
        %1485 = vmatmul.mubr.bf16.gmra.mxu0 %v1382
        %v1486 = vpop.f32.mrf.mxu0
        %v1487 = vadd.f32 0.0, %v1486
        %v1488 = vpop.f32.mrf.mxu0
        %v1489 = vpop.f32.mrf.mxu0
        %v1490 = vadd.f32 0.0, %v1489
        %v1491 = vpop.f32.mrf.mxu0
        %1492 = vmatprep.mubr.bf16.mxu0 0
        %1493 = vmatmul.mubr.bf16.gmra.mxu0 %v1385
        %v1494 = vpop.f32.mrf.mxu0
        %v1495 = vadd.f32 0.0, %v1494
        %v1496 = vpop.f32.mrf.mxu0
        %v1497 = vpop.f32.mrf.mxu0
        %v1498 = vadd.f32 0.0, %v1497
        %v1499 = vpop.f32.mrf.mxu0
        %1500 = vmatprep.mubr.bf16.mxu0 0
        %1501 = vmatmul.mubr.bf16.gmra.mxu0 %v1388
        %v1502 = vpop.f32.mrf.mxu0
        %v1503 = vadd.f32 0.0, %v1502
        %v1504 = vpop.f32.mrf.mxu0
        %v1505 = vpop.f32.mrf.mxu0
        %v1506 = vadd.f32 0.0, %v1505
        %v1507 = vpop.f32.mrf.mxu0
        %1508 = vmatprep.mubr.bf16.mxu0 0
        %1509 = vmatmul.mubr.bf16.gmra.mxu0 %v1391
        %v1510 = vpop.f32.mrf.mxu0
        %v1511 = vadd.f32 0.0, %v1510
        %v1512 = vpop.f32.mrf.mxu0
        %v1513 = vpop.f32.mrf.mxu0
        %v1514 = vadd.f32 0.0, %v1513
        %v1515 = vpop.f32.mrf.mxu0
        %1516 = vmatprep.mubr.bf16.mxu0 0
        %1517 = vmatmul.mubr.bf16.gmra.mxu0 %v1394
        %v1518 = vpop.f32.mrf.mxu0
        %v1519 = vadd.f32 0.0, %v1518
        %v1520 = vpop.f32.mrf.mxu0
        %v1521 = vpop.f32.mrf.mxu0
        %v1522 = vadd.f32 0.0, %v1521
        %v1523 = vpop.f32.mrf.mxu0
        %1524 = vmatprep.mubr.bf16.mxu0 0
        %1525 = vmatmul.mubr.bf16.gmra.mxu0 %v1397
        %v1526 = vpop.f32.mrf.mxu0
        %v1527 = vadd.f32 0.0, %v1526
        %v1528 = vpop.f32.mrf.mxu0
        %v1529 = vpop.f32.mrf.mxu0
        %v1530 = vadd.f32 0.0, %v1529
        %v1531 = vpop.f32.mrf.mxu0
        %1532 = vmatprep.mubr.bf16.mxu0 0
        %1533 = vmatmul.mubr.bf16.gmra.mxu0 %v1400
        %v1534 = vpop.f32.mrf.mxu0
        %v1535 = vadd.f32 0.0, %v1534
        %v1536 = vpop.f32.mrf.mxu0
        %v1537 = vpop.f32.mrf.mxu0
        %v1538 = vadd.f32 0.0, %v1537
        %v1539 = vpop.f32.mrf.mxu0
        %1540 = vmatprep.mubr.bf16.mxu0 0
        %1541 = vmatmul.mubr.bf16.gmra.mxu0 %v1403
        %v1542 = vpop.f32.mrf.mxu0
        %v1543 = vadd.f32 0.0, %v1542
        %v1544 = vpop.f32.mrf.mxu0
        %v1545 = vpop.f32.mrf.mxu0
        %v1546 = vadd.f32 0.0, %v1545
        %v1547 = vpop.f32.mrf.mxu0
        %1548 = vmatprep.mubr.bf16.mxu0 0
        %1549 = vmatmul.mubr.bf16.gmra.mxu0 %v1406
        %v1550 = vpop.f32.mrf.mxu0
        %v1551 = vadd.f32 0.0, %v1550
        %v1552 = vpop.f32.mrf.mxu0
        %v1553 = vpop.f32.mrf.mxu0
        %v1554 = vadd.f32 0.0, %v1553
        %v1555 = vpop.f32.mrf.mxu0
        %1556 = vmatprep.mubr.bf16.mxu0 0
        %1557 = vmatmul.mubr.bf16.gmra.mxu0 %v1409
        %v1558 = vpop.f32.mrf.mxu0
        %v1559 = vadd.f32 0.0, %v1558
        %v1560 = vpop.f32.mrf.mxu0
        %v1561 = vpop.f32.mrf.mxu0
        %v1562 = vadd.f32 0.0, %v1561
        %v1563 = vpop.f32.mrf.mxu0
        %1564 = vmatprep.mubr.bf16.mxu0 0
        %1565 = vmatmul.mubr.bf16.gmra.mxu0 %v1412
        %v1566 = vpop.f32.mrf.mxu0
        %v1567 = vadd.f32 0.0, %v1566
        %v1568 = vpop.f32.mrf.mxu0
        %v1569 = vpop.f32.mrf.mxu0
        %v1570 = vadd.f32 0.0, %v1569
        %v1571 = vpop.f32.mrf.mxu0
        %1572 = vmatprep.mubr.bf16.mxu0 0
        %1573 = vmatmul.mubr.bf16.gmra.mxu0 %v1415
        %v1574 = vpop.f32.mrf.mxu0
        %v1575 = vadd.f32 0.0, %v1574
        %v1576 = vpop.f32.mrf.mxu0
        %v1577 = vpop.f32.mrf.mxu0
        %v1578 = vadd.f32 0.0, %v1577
        %v1579 = vpop.f32.mrf.mxu0
        %1580 = vdwg.mxu0
        %v1581 = vadd.f32 %v1030, %v1455
        %v1582 = vadd.f32 %v1033, %v1458
        %v1583 = vadd.f32 %v1038, %v1463
        %v1584 = vadd.f32 %v1041, %v1466
        %v1585 = vadd.f32 %v1046, %v1471
        %v1586 = vadd.f32 %v1049, %v1474
        %v1587 = vadd.f32 %v1054, %v1479
        %v1588 = vadd.f32 %v1057, %v1482
        %v1589 = vadd.f32 %v1062, %v1487
        %v1590 = vadd.f32 %v1065, %v1490
        %v1591 = vadd.f32 %v1070, %v1495
        %v1592 = vadd.f32 %v1073, %v1498
        %v1593 = vadd.f32 %v1078, %v1503
        %v1594 = vadd.f32 %v1081, %v1506
        %v1595 = vadd.f32 %v1086, %v1511
        %v1596 = vadd.f32 %v1089, %v1514
        %v1597 = vadd.f32 %v1094, %v1519
        %v1598 = vadd.f32 %v1097, %v1522
        %v1599 = vadd.f32 %v1102, %v1527
        %v1600 = vadd.f32 %v1105, %v1530
        %v1601 = vadd.f32 %v1110, %v1535
        %v1602 = vadd.f32 %v1113, %v1538
        %v1603 = vadd.f32 %v1118, %v1543
        %v1604 = vadd.f32 %v1121, %v1546
        %v1605 = vadd.f32 %v1126, %v1551
        %v1606 = vadd.f32 %v1129, %v1554
        %v1607 = vadd.f32 %v1134, %v1559
        %v1608 = vadd.f32 %v1137, %v1562
        %v1609 = vadd.f32 %v1142, %v1567
        %v1610 = vadd.f32 %v1145, %v1570
        %v1611 = vadd.f32 %v1150, %v1575
        %v1612 = vadd.f32 %v1153, %v1578
        %s1613 = sadd.s32 %s160, 1
        %s1614 = smul.u32 %s1613, 3
        %s1615 = smul.addr %s1614, 4
        %s1616 = scalar_lea.vmem %s153, %s1615
        %v1617 = vld [vmem:[%s1616] sm:$0xf]
        %v1618 = vld [vmem:[%s1616 + $0x4] sm:$0xf]
        %v1619 = vld [vmem:[%s1616 + $0xc] sm:$0xf]
        %v1620 = vld [vmem:[%s1616 + $0x10] sm:$0xf]
        %v1621 = vld [vmem:[%s1616 + $0x18] sm:$0xf]
        %v1622 = vld [vmem:[%s1616 + $0x1c] sm:$0xf]
        %v1623 = vld [vmem:[%s1616 + $0x24] sm:$0xf]
        %v1624 = vld [vmem:[%s1616 + $0x28] sm:$0xf]
        %v1625 = vld [vmem:[%s1616 + $0x30] sm:$0xf]
        %v1626 = vld [vmem:[%s1616 + $0x34] sm:$0xf]
        %v1627 = vld [vmem:[%s1616 + $0x3c] sm:$0xf]
        %v1628 = vld [vmem:[%s1616 + $0x40] sm:$0xf]
        %v1629 = vld [vmem:[%s1616 + $0x48] sm:$0xf]
        %v1630 = vld [vmem:[%s1616 + $0x4c] sm:$0xf]
        %v1631 = vld [vmem:[%s1616 + $0x54] sm:$0xf]
        %v1632 = vld [vmem:[%s1616 + $0x58] sm:$0xf]
        %v1633 = vld [vmem:[%s1616 + $0x60] sm:$0xf]
        %v1634 = vld [vmem:[%s1616 + $0x64] sm:$0xf]
        %v1635 = vld [vmem:[%s1616 + $0x6c] sm:$0xf]
        %v1636 = vld [vmem:[%s1616 + $0x70] sm:$0xf]
        %v1637 = vld [vmem:[%s1616 + $0x78] sm:$0xf]
        %v1638 = vld [vmem:[%s1616 + $0x7c] sm:$0xf]
        %v1639 = vld [vmem:[%s1616 + $0x84] sm:$0xf]
        %v1640 = vld [vmem:[%s1616 + $0x88] sm:$0xf]
        %v1641 = vld [vmem:[%s1616 + $0x90] sm:$0xf]
        %v1642 = vld [vmem:[%s1616 + $0x94] sm:$0xf]
        %v1643 = vld [vmem:[%s1616 + $0x9c] sm:$0xf]
        %v1644 = vld [vmem:[%s1616 + $0xa0] sm:$0xf]
        %v1645 = vld [vmem:[%s1616 + $0xa8] sm:$0xf]
        %v1646 = vld [vmem:[%s1616 + $0xac] sm:$0xf]
        %v1647 = vld [vmem:[%s1616 + $0xb4] sm:$0xf]
        %v1648 = vld [vmem:[%s1616 + $0xb8] sm:$0xf]
        %s1649 = scalar_lea.vmem %s1, 6
        %v1650 = vld [vmem:[%s1649] sm:$0x3]
        %v1683 = vunpack.c.l.b16 %v1617
        %v1684 = vunpack.c.l.b16 %v1618
        %v1685 = vunpack.c.l.b16 %v1619
        %v1686 = vunpack.c.l.b16 %v1620
        %v1687 = vunpack.c.l.b16 %v1621
        %v1688 = vunpack.c.l.b16 %v1622
        %v1689 = vunpack.c.l.b16 %v1623
        %v1690 = vunpack.c.l.b16 %v1624
        %v1691 = vunpack.c.l.b16 %v1625
        %v1692 = vunpack.c.l.b16 %v1626
        %v1693 = vunpack.c.l.b16 %v1627
        %v1694 = vunpack.c.l.b16 %v1628
        %v1695 = vunpack.c.l.b16 %v1629
        %v1696 = vunpack.c.l.b16 %v1630
        %v1697 = vunpack.c.l.b16 %v1631
        %v1698 = vunpack.c.l.b16 %v1632
        %v1699 = vunpack.c.l.b16 %v1633
        %v1700 = vunpack.c.l.b16 %v1634
        %v1701 = vunpack.c.l.b16 %v1635
        %v1702 = vunpack.c.l.b16 %v1636
        %v1703 = vunpack.c.l.b16 %v1637
        %v1704 = vunpack.c.l.b16 %v1638
        %v1705 = vunpack.c.l.b16 %v1639
        %v1706 = vunpack.c.l.b16 %v1640
        %v1707 = vunpack.c.l.b16 %v1641
        %v1708 = vunpack.c.l.b16 %v1642
        %v1709 = vunpack.c.l.b16 %v1643
        %v1710 = vunpack.c.l.b16 %v1644
        %v1711 = vunpack.c.l.b16 %v1645
        %v1712 = vunpack.c.l.b16 %v1646
        %v1713 = vunpack.c.l.b16 %v1647
        %v1714 = vunpack.c.l.b16 %v1648
        %v1715 = vpack.c.b16 %v1684, %v1683
        %v1716 = vpack.c.b16 %v1686, %v1685
        %v1717 = vpack.c.b16 %v1688, %v1687
        %v1718 = vpack.c.b16 %v1690, %v1689
        %v1719 = vpack.c.b16 %v1692, %v1691
        %v1720 = vpack.c.b16 %v1694, %v1693
        %v1721 = vpack.c.b16 %v1696, %v1695
        %v1722 = vpack.c.b16 %v1698, %v1697
        %v1723 = vpack.c.b16 %v1700, %v1699
        %v1724 = vpack.c.b16 %v1702, %v1701
        %v1725 = vpack.c.b16 %v1704, %v1703
        %v1726 = vpack.c.b16 %v1706, %v1705
        %v1727 = vpack.c.b16 %v1708, %v1707
        %v1728 = vpack.c.b16 %v1710, %v1709
        %v1729 = vpack.c.b16 %v1712, %v1711
        %v1730 = vpack.c.b16 %v1714, %v1713
        %v1732 = vsel %vm650, %v1715, 0
        %v1735 = vsel %vm650, %v1716, 0
        %v1738 = vsel %vm650, %v1717, 0
        %v1741 = vsel %vm650, %v1718, 0
        %v1744 = vsel %vm650, %v1719, 0
        %v1747 = vsel %vm650, %v1720, 0
        %v1750 = vsel %vm650, %v1721, 0
        %v1753 = vsel %vm650, %v1722, 0
        %v1756 = vsel %vm650, %v1723, 0
        %v1759 = vsel %vm650, %v1724, 0
        %v1762 = vsel %vm650, %v1725, 0
        %v1765 = vsel %vm650, %v1726, 0
        %v1768 = vsel %vm650, %v1727, 0
        %v1771 = vsel %vm650, %v1728, 0
        %v1774 = vsel %vm650, %v1729, 0
        %v1777 = vsel %vm650, %v1730, 0
        %v1780 = vsel %vm699, %v1650, 0
        %1782 = vmatprep.subr.bf16.mxu0 0
        %1783 = vmatpush1.bf16.msra.mxu0 0
        %1784 = vmatprep.subr.bf16.mxu0 0
        %1785 = vmatpush1.bf16.msra.mxu0 0
        %1786 = vmatprep.subr.bf16.mxu0 0
        %1787 = vmatpush1.bf16.msra.mxu0 0
        %1788 = vmatprep.subr.bf16.mxu0 0
        %1789 = vmatpush1.bf16.msra.mxu0 0
        %1790 = vmatprep.subr.bf16.mxu0 0
        %1791 = vmatpush1.bf16.msra.mxu0 0
        %1792 = vmatprep.subr.bf16.mxu0 0
        %1793 = vmatpush1.bf16.msra.mxu0 0
        %1794 = vmatprep.subr.bf16.mxu0 0
        %1795 = vmatpush1.bf16.msra.mxu0 0
        %1796 = vmatprep.subr.bf16.mxu0 0
        %1797 = vmatpush1.bf16.msra.mxu0 %v1780
        %1798 = vmatprep.subr.bf16.mxu0 0
        %1799 = vmatpush2.bf16.msra.mxu0 0
        %1800 = vmatprep.subr.bf16.mxu0 0
        %1801 = vmatpush2.bf16.msra.mxu0 0
        %1802 = vmatprep.subr.bf16.mxu0 0
        %1803 = vmatpush2.bf16.msra.mxu0 0
        %1804 = vmatprep.subr.bf16.mxu0 0
        %1805 = vmatpush2.bf16.msra.mxu0 0
        %1806 = vmatprep.subr.bf16.mxu0 0
        %1807 = vmatpush2.bf16.msra.mxu0 0
        %1808 = vmatprep.subr.bf16.mxu0 0
        %1809 = vmatpush2.bf16.msra.mxu0 0
        %1810 = vmatprep.subr.bf16.mxu0 0
        %1811 = vmatpush2.bf16.msra.mxu0 0
        %1812 = vmatprep.subr.bf16.mxu0 0
        %1813 = vmatpush2.bf16.msra.mxu0 0
        %1814 = vmatprep.mubr.bf16.mxu0 0
        %1815 = vmatmul.mubr.bf16.gmra.mxu0 %v1732
        %v1816 = vpop.f32.mrf.mxu0
        %v1817 = vadd.f32 0.0, %v1816
        %v1818 = vpop.f32.mrf.mxu0
        %v1819 = vpop.f32.mrf.mxu0
        %v1820 = vadd.f32 0.0, %v1819
        %v1821 = vpop.f32.mrf.mxu0
        %1822 = vmatprep.mubr.bf16.mxu0 0
        %1823 = vmatmul.mubr.bf16.gmra.mxu0 %v1735
        %v1824 = vpop.f32.mrf.mxu0
        %v1825 = vadd.f32 0.0, %v1824
        %v1826 = vpop.f32.mrf.mxu0
        %v1827 = vpop.f32.mrf.mxu0
        %v1828 = vadd.f32 0.0, %v1827
        %v1829 = vpop.f32.mrf.mxu0
        %1830 = vmatprep.mubr.bf16.mxu0 0
        %1831 = vmatmul.mubr.bf16.gmra.mxu0 %v1738
        %v1832 = vpop.f32.mrf.mxu0
        %v1833 = vadd.f32 0.0, %v1832
        %v1834 = vpop.f32.mrf.mxu0
        %v1835 = vpop.f32.mrf.mxu0
        %v1836 = vadd.f32 0.0, %v1835
        %v1837 = vpop.f32.mrf.mxu0
        %1838 = vmatprep.mubr.bf16.mxu0 0
        %1839 = vmatmul.mubr.bf16.gmra.mxu0 %v1741
        %v1840 = vpop.f32.mrf.mxu0
        %v1841 = vadd.f32 0.0, %v1840
        %v1842 = vpop.f32.mrf.mxu0
        %v1843 = vpop.f32.mrf.mxu0
        %v1844 = vadd.f32 0.0, %v1843
        %v1845 = vpop.f32.mrf.mxu0
        %1846 = vmatprep.mubr.bf16.mxu0 0
        %1847 = vmatmul.mubr.bf16.gmra.mxu0 %v1744
        %v1848 = vpop.f32.mrf.mxu0
        %v1849 = vadd.f32 0.0, %v1848
        %v1850 = vpop.f32.mrf.mxu0
        %v1851 = vpop.f32.mrf.mxu0
        %v1852 = vadd.f32 0.0, %v1851
        %v1853 = vpop.f32.mrf.mxu0
        %1854 = vmatprep.mubr.bf16.mxu0 0
        %1855 = vmatmul.mubr.bf16.gmra.mxu0 %v1747
        %v1856 = vpop.f32.mrf.mxu0
        %v1857 = vadd.f32 0.0, %v1856
        %v1858 = vpop.f32.mrf.mxu0
        %v1859 = vpop.f32.mrf.mxu0
        %v1860 = vadd.f32 0.0, %v1859
        %v1861 = vpop.f32.mrf.mxu0
        %1862 = vmatprep.mubr.bf16.mxu0 0
        %1863 = vmatmul.mubr.bf16.gmra.mxu0 %v1750
        %v1864 = vpop.f32.mrf.mxu0
        %v1865 = vadd.f32 0.0, %v1864
        %v1866 = vpop.f32.mrf.mxu0
        %v1867 = vpop.f32.mrf.mxu0
        %v1868 = vadd.f32 0.0, %v1867
        %v1869 = vpop.f32.mrf.mxu0
        %1870 = vmatprep.mubr.bf16.mxu0 0
        %1871 = vmatmul.mubr.bf16.gmra.mxu0 %v1753
        %v1872 = vpop.f32.mrf.mxu0
        %v1873 = vadd.f32 0.0, %v1872
        %v1874 = vpop.f32.mrf.mxu0
        %v1875 = vpop.f32.mrf.mxu0
        %v1876 = vadd.f32 0.0, %v1875
        %v1877 = vpop.f32.mrf.mxu0
        %1878 = vmatprep.mubr.bf16.mxu0 0
        %1879 = vmatmul.mubr.bf16.gmra.mxu0 %v1756
        %v1880 = vpop.f32.mrf.mxu0
        %v1881 = vadd.f32 0.0, %v1880
        %v1882 = vpop.f32.mrf.mxu0
        %v1883 = vpop.f32.mrf.mxu0
        %v1884 = vadd.f32 0.0, %v1883
        %v1885 = vpop.f32.mrf.mxu0
        %1886 = vmatprep.mubr.bf16.mxu0 0
        %1887 = vmatmul.mubr.bf16.gmra.mxu0 %v1759
        %v1888 = vpop.f32.mrf.mxu0
        %v1889 = vadd.f32 0.0, %v1888
        %v1890 = vpop.f32.mrf.mxu0
        %v1891 = vpop.f32.mrf.mxu0
        %v1892 = vadd.f32 0.0, %v1891
        %v1893 = vpop.f32.mrf.mxu0
        %1894 = vmatprep.mubr.bf16.mxu0 0
        %1895 = vmatmul.mubr.bf16.gmra.mxu0 %v1762
        %v1896 = vpop.f32.mrf.mxu0
        %v1897 = vadd.f32 0.0, %v1896
        %v1898 = vpop.f32.mrf.mxu0
        %v1899 = vpop.f32.mrf.mxu0
        %v1900 = vadd.f32 0.0, %v1899
        %v1901 = vpop.f32.mrf.mxu0
        %1902 = vmatprep.mubr.bf16.mxu0 0
        %1903 = vmatmul.mubr.bf16.gmra.mxu0 %v1765
        %v1904 = vpop.f32.mrf.mxu0
        %v1905 = vadd.f32 0.0, %v1904
        %v1906 = vpop.f32.mrf.mxu0
        %v1907 = vpop.f32.mrf.mxu0
        %v1908 = vadd.f32 0.0, %v1907
        %v1909 = vpop.f32.mrf.mxu0
        %1910 = vmatprep.mubr.bf16.mxu0 0
        %1911 = vmatmul.mubr.bf16.gmra.mxu0 %v1768
        %v1912 = vpop.f32.mrf.mxu0
        %v1913 = vadd.f32 0.0, %v1912
        %v1914 = vpop.f32.mrf.mxu0
        %v1915 = vpop.f32.mrf.mxu0
        %v1916 = vadd.f32 0.0, %v1915
        %v1917 = vpop.f32.mrf.mxu0
        %1918 = vmatprep.mubr.bf16.mxu0 0
        %1919 = vmatmul.mubr.bf16.gmra.mxu0 %v1771
        %v1920 = vpop.f32.mrf.mxu0
        %v1921 = vadd.f32 0.0, %v1920
        %v1922 = vpop.f32.mrf.mxu0
        %v1923 = vpop.f32.mrf.mxu0
        %v1924 = vadd.f32 0.0, %v1923
        %v1925 = vpop.f32.mrf.mxu0
        %1926 = vmatprep.mubr.bf16.mxu0 0
        %1927 = vmatmul.mubr.bf16.gmra.mxu0 %v1774
        %v1928 = vpop.f32.mrf.mxu0
        %v1929 = vadd.f32 0.0, %v1928
        %v1930 = vpop.f32.mrf.mxu0
        %v1931 = vpop.f32.mrf.mxu0
        %v1932 = vadd.f32 0.0, %v1931
        %v1933 = vpop.f32.mrf.mxu0
        %1934 = vmatprep.mubr.bf16.mxu0 0
        %1935 = vmatmul.mubr.bf16.gmra.mxu0 %v1777
        %v1936 = vpop.f32.mrf.mxu0
        %v1937 = vadd.f32 0.0, %v1936
        %v1938 = vpop.f32.mrf.mxu0
        %v1939 = vpop.f32.mrf.mxu0
        %v1940 = vadd.f32 0.0, %v1939
        %v1941 = vpop.f32.mrf.mxu0
        %1942 = vdwg.mxu0
        %v1943 = vadd.f32 %v1581, %v1817
        %v1944 = vadd.f32 %v1582, %v1820
        %v1945 = vadd.f32 %v1583, %v1825
        %v1946 = vadd.f32 %v1584, %v1828
        %v1947 = vadd.f32 %v1585, %v1833
        %v1948 = vadd.f32 %v1586, %v1836
        %v1949 = vadd.f32 %v1587, %v1841
        %v1950 = vadd.f32 %v1588, %v1844
        %v1951 = vadd.f32 %v1589, %v1849
        %v1952 = vadd.f32 %v1590, %v1852
        %v1953 = vadd.f32 %v1591, %v1857
        %v1954 = vadd.f32 %v1592, %v1860
        %v1955 = vadd.f32 %v1593, %v1865
        %v1956 = vadd.f32 %v1594, %v1868
        %v1957 = vadd.f32 %v1595, %v1873
        %v1958 = vadd.f32 %v1596, %v1876
        %v1959 = vadd.f32 %v1597, %v1881
        %v1960 = vadd.f32 %v1598, %v1884
        %v1961 = vadd.f32 %v1599, %v1889
        %v1962 = vadd.f32 %v1600, %v1892
        %v1963 = vadd.f32 %v1601, %v1897
        %v1964 = vadd.f32 %v1602, %v1900
        %v1965 = vadd.f32 %v1603, %v1905
        %v1966 = vadd.f32 %v1604, %v1908
        %v1967 = vadd.f32 %v1605, %v1913
        %v1968 = vadd.f32 %v1606, %v1916
        %v1969 = vadd.f32 %v1607, %v1921
        %v1970 = vadd.f32 %v1608, %v1924
        %v1971 = vadd.f32 %v1609, %v1929
        %v1972 = vadd.f32 %v1610, %v1932
        %v1973 = vadd.f32 %v1611, %v1937
        %v1974 = vadd.f32 %v1612, %v1940
        %v1975 = vld [vmem:[%s1616] sm:$0xf]
        %v1976 = vld [vmem:[%s1616 + $0x4] sm:$0xf]
        %v1977 = vld [vmem:[%s1616 + $0x8] sm:$0x1]
        %v1978 = vld [vmem:[%s1616 + $0xc] sm:$0xf]
        %v1979 = vld [vmem:[%s1616 + $0x10] sm:$0xf]
        %v1980 = vld [vmem:[%s1616 + $0x14] sm:$0x1]
        %v1981 = vld [vmem:[%s1616 + $0x18] sm:$0xf]
        %v1982 = vld [vmem:[%s1616 + $0x1c] sm:$0xf]
        %v1983 = vld [vmem:[%s1616 + $0x20] sm:$0x1]
        %v1984 = vld [vmem:[%s1616 + $0x24] sm:$0xf]
        %v1985 = vld [vmem:[%s1616 + $0x28] sm:$0xf]
        %v1986 = vld [vmem:[%s1616 + $0x2c] sm:$0x1]
        %v1987 = vld [vmem:[%s1616 + $0x30] sm:$0xf]
        %v1988 = vld [vmem:[%s1616 + $0x34] sm:$0xf]
        %v1989 = vld [vmem:[%s1616 + $0x38] sm:$0x1]
        %v1990 = vld [vmem:[%s1616 + $0x3c] sm:$0xf]
        %v1991 = vld [vmem:[%s1616 + $0x40] sm:$0xf]
        %v1992 = vld [vmem:[%s1616 + $0x44] sm:$0x1]
        %v1993 = vld [vmem:[%s1616 + $0x48] sm:$0xf]
        %v1994 = vld [vmem:[%s1616 + $0x4c] sm:$0xf]
        %v1995 = vld [vmem:[%s1616 + $0x50] sm:$0x1]
        %v1996 = vld [vmem:[%s1616 + $0x54] sm:$0xf]
        %v1997 = vld [vmem:[%s1616 + $0x58] sm:$0xf]
        %v1998 = vld [vmem:[%s1616 + $0x5c] sm:$0x1]
        %v1999 = vld [vmem:[%s1616 + $0x60] sm:$0xf]
        %v2000 = vld [vmem:[%s1616 + $0x64] sm:$0xf]
        %v2001 = vld [vmem:[%s1616 + $0x68] sm:$0x1]
        %v2002 = vld [vmem:[%s1616 + $0x6c] sm:$0xf]
        %v2003 = vld [vmem:[%s1616 + $0x70] sm:$0xf]
        %v2004 = vld [vmem:[%s1616 + $0x74] sm:$0x1]
        %v2005 = vld [vmem:[%s1616 + $0x78] sm:$0xf]
        %v2006 = vld [vmem:[%s1616 + $0x7c] sm:$0xf]
        %v2007 = vld [vmem:[%s1616 + $0x80] sm:$0x1]
        %v2008 = vld [vmem:[%s1616 + $0x84] sm:$0xf]
        %v2009 = vld [vmem:[%s1616 + $0x88] sm:$0xf]
        %v2010 = vld [vmem:[%s1616 + $0x8c] sm:$0x1]
        %v2011 = vld [vmem:[%s1616 + $0x90] sm:$0xf]
        %v2012 = vld [vmem:[%s1616 + $0x94] sm:$0xf]
        %v2013 = vld [vmem:[%s1616 + $0x98] sm:$0x1]
        %v2014 = vld [vmem:[%s1616 + $0x9c] sm:$0xf]
        %v2015 = vld [vmem:[%s1616 + $0xa0] sm:$0xf]
        %v2016 = vld [vmem:[%s1616 + $0xa4] sm:$0x1]
        %v2017 = vld [vmem:[%s1616 + $0xa8] sm:$0xf]
        %v2018 = vld [vmem:[%s1616 + $0xac] sm:$0xf]
        %v2019 = vld [vmem:[%s1616 + $0xb0] sm:$0x1]
        %v2020 = vld [vmem:[%s1616 + $0xb4] sm:$0xf]
        %v2021 = vld [vmem:[%s1616 + $0xb8] sm:$0xf]
        %v2022 = vld [vmem:[%s1616 + $0xbc] sm:$0x1]
        %v2024 = vshrl.u32 %v1975, 16
        %v2026 = vrot.slane %v2024, 4
        %v2027 = vshll.u32 %v1975, 16
        %v2029 = vrot.slane %v2027, 5
        %v2030 = vor.u32 %v2026, %v2029
        %v2031 = vrot.slane %v2030, 4
        %v2033 = vshll.u32 %v1976, 16
        %v2035 = vrot.slane %v2033, 5
        %v2036 = vsel %vm215, %v2031, %v2035
        %v2037 = vshrl.u32 %v1976, 16
        %v2039 = vrot.slane %v2037, 4
        %v2040 = vor.u32 %v2039, %v2035
        %v2041 = vrot.slane %v2040, 4
        %v2043 = vshll.u32 %v1977, 16
        %v2045 = vrot.slane %v2043, 5
        %v2046 = vsel %vm215, %v2041, %v2045
        %v2048 = vshrl.u32 %v1978, 16
        %v2050 = vrot.slane %v2048, 4
        %v2051 = vshll.u32 %v1978, 16
        %v2053 = vrot.slane %v2051, 5
        %v2054 = vor.u32 %v2050, %v2053
        %v2055 = vrot.slane %v2054, 4
        %v2057 = vshll.u32 %v1979, 16
        %v2059 = vrot.slane %v2057, 5
        %v2060 = vsel %vm215, %v2055, %v2059
        %v2061 = vshrl.u32 %v1979, 16
        %v2063 = vrot.slane %v2061, 4
        %v2064 = vor.u32 %v2063, %v2059
        %v2065 = vrot.slane %v2064, 4
        %v2067 = vshll.u32 %v1980, 16
        %v2069 = vrot.slane %v2067, 5
        %v2070 = vsel %vm215, %v2065, %v2069
        %v2072 = vshrl.u32 %v1981, 16
        %v2074 = vrot.slane %v2072, 4
        %v2075 = vshll.u32 %v1981, 16
        %v2077 = vrot.slane %v2075, 5
        %v2078 = vor.u32 %v2074, %v2077
        %v2079 = vrot.slane %v2078, 4
        %v2081 = vshll.u32 %v1982, 16
        %v2083 = vrot.slane %v2081, 5
        %v2084 = vsel %vm215, %v2079, %v2083
        %v2085 = vshrl.u32 %v1982, 16
        %v2087 = vrot.slane %v2085, 4
        %v2088 = vor.u32 %v2087, %v2083
        %v2089 = vrot.slane %v2088, 4
        %v2091 = vshll.u32 %v1983, 16
        %v2093 = vrot.slane %v2091, 5
        %v2094 = vsel %vm215, %v2089, %v2093
        %v2096 = vshrl.u32 %v1984, 16
        %v2098 = vrot.slane %v2096, 4
        %v2099 = vshll.u32 %v1984, 16
        %v2101 = vrot.slane %v2099, 5
        %v2102 = vor.u32 %v2098, %v2101
        %v2103 = vrot.slane %v2102, 4
        %v2105 = vshll.u32 %v1985, 16
        %v2107 = vrot.slane %v2105, 5
        %v2108 = vsel %vm215, %v2103, %v2107
        %v2109 = vshrl.u32 %v1985, 16
        %v2111 = vrot.slane %v2109, 4
        %v2112 = vor.u32 %v2111, %v2107
        %v2113 = vrot.slane %v2112, 4
        %v2115 = vshll.u32 %v1986, 16
        %v2117 = vrot.slane %v2115, 5
        %v2118 = vsel %vm215, %v2113, %v2117
        %v2120 = vshrl.u32 %v1987, 16
        %v2122 = vrot.slane %v2120, 4
        %v2123 = vshll.u32 %v1987, 16
        %v2125 = vrot.slane %v2123, 5
        %v2126 = vor.u32 %v2122, %v2125
        %v2127 = vrot.slane %v2126, 4
        %v2129 = vshll.u32 %v1988, 16
        %v2131 = vrot.slane %v2129, 5
        %v2132 = vsel %vm215, %v2127, %v2131
        %v2133 = vshrl.u32 %v1988, 16
        %v2135 = vrot.slane %v2133, 4
        %v2136 = vor.u32 %v2135, %v2131
        %v2137 = vrot.slane %v2136, 4
        %v2139 = vshll.u32 %v1989, 16
        %v2141 = vrot.slane %v2139, 5
        %v2142 = vsel %vm215, %v2137, %v2141
        %v2144 = vshrl.u32 %v1990, 16
        %v2146 = vrot.slane %v2144, 4
        %v2147 = vshll.u32 %v1990, 16
        %v2149 = vrot.slane %v2147, 5
        %v2150 = vor.u32 %v2146, %v2149
        %v2151 = vrot.slane %v2150, 4
        %v2153 = vshll.u32 %v1991, 16
        %v2155 = vrot.slane %v2153, 5
        %v2156 = vsel %vm215, %v2151, %v2155
        %v2157 = vshrl.u32 %v1991, 16
        %v2159 = vrot.slane %v2157, 4
        %v2160 = vor.u32 %v2159, %v2155
        %v2161 = vrot.slane %v2160, 4
        %v2163 = vshll.u32 %v1992, 16
        %v2165 = vrot.slane %v2163, 5
        %v2166 = vsel %vm215, %v2161, %v2165
        %v2168 = vshrl.u32 %v1993, 16
        %v2170 = vrot.slane %v2168, 4
        %v2171 = vshll.u32 %v1993, 16
        %v2173 = vrot.slane %v2171, 5
        %v2174 = vor.u32 %v2170, %v2173
        %v2175 = vrot.slane %v2174, 4
        %v2177 = vshll.u32 %v1994, 16
        %v2179 = vrot.slane %v2177, 5
        %v2180 = vsel %vm215, %v2175, %v2179
        %v2181 = vshrl.u32 %v1994, 16
        %v2183 = vrot.slane %v2181, 4
        %v2184 = vor.u32 %v2183, %v2179
        %v2185 = vrot.slane %v2184, 4
        %v2187 = vshll.u32 %v1995, 16
        %v2189 = vrot.slane %v2187, 5
        %v2190 = vsel %vm215, %v2185, %v2189
        %v2192 = vshrl.u32 %v1996, 16
        %v2194 = vrot.slane %v2192, 4
        %v2195 = vshll.u32 %v1996, 16
        %v2197 = vrot.slane %v2195, 5
        %v2198 = vor.u32 %v2194, %v2197
        %v2199 = vrot.slane %v2198, 4
        %v2201 = vshll.u32 %v1997, 16
        %v2203 = vrot.slane %v2201, 5
        %v2204 = vsel %vm215, %v2199, %v2203
        %v2205 = vshrl.u32 %v1997, 16
        %v2207 = vrot.slane %v2205, 4
        %v2208 = vor.u32 %v2207, %v2203
        %v2209 = vrot.slane %v2208, 4
        %v2211 = vshll.u32 %v1998, 16
        %v2213 = vrot.slane %v2211, 5
        %v2214 = vsel %vm215, %v2209, %v2213
        %v2216 = vshrl.u32 %v1999, 16
        %v2218 = vrot.slane %v2216, 4
        %v2219 = vshll.u32 %v1999, 16
        %v2221 = vrot.slane %v2219, 5
        %v2222 = vor.u32 %v2218, %v2221
        %v2223 = vrot.slane %v2222, 4
        %v2225 = vshll.u32 %v2000, 16
        %v2227 = vrot.slane %v2225, 5
        %v2228 = vsel %vm215, %v2223, %v2227
        %v2229 = vshrl.u32 %v2000, 16
        %v2231 = vrot.slane %v2229, 4
        %v2232 = vor.u32 %v2231, %v2227
        %v2233 = vrot.slane %v2232, 4
        %v2235 = vshll.u32 %v2001, 16
        %v2237 = vrot.slane %v2235, 5
        %v2238 = vsel %vm215, %v2233, %v2237
        %v2240 = vshrl.u32 %v2002, 16
        %v2242 = vrot.slane %v2240, 4
        %v2243 = vshll.u32 %v2002, 16
        %v2245 = vrot.slane %v2243, 5
        %v2246 = vor.u32 %v2242, %v2245
        %v2247 = vrot.slane %v2246, 4
        %v2249 = vshll.u32 %v2003, 16
        %v2251 = vrot.slane %v2249, 5
        %v2252 = vsel %vm215, %v2247, %v2251
        %v2253 = vshrl.u32 %v2003, 16
        %v2255 = vrot.slane %v2253, 4
        %v2256 = vor.u32 %v2255, %v2251
        %v2257 = vrot.slane %v2256, 4
        %v2259 = vshll.u32 %v2004, 16
        %v2261 = vrot.slane %v2259, 5
        %v2262 = vsel %vm215, %v2257, %v2261
        %v2264 = vshrl.u32 %v2005, 16
        %v2266 = vrot.slane %v2264, 4
        %v2267 = vshll.u32 %v2005, 16
        %v2269 = vrot.slane %v2267, 5
        %v2270 = vor.u32 %v2266, %v2269
        %v2271 = vrot.slane %v2270, 4
        %v2273 = vshll.u32 %v2006, 16
        %v2275 = vrot.slane %v2273, 5
        %v2276 = vsel %vm215, %v2271, %v2275
        %v2277 = vshrl.u32 %v2006, 16
        %v2279 = vrot.slane %v2277, 4
        %v2280 = vor.u32 %v2279, %v2275
        %v2281 = vrot.slane %v2280, 4
        %v2283 = vshll.u32 %v2007, 16
        %v2285 = vrot.slane %v2283, 5
        %v2286 = vsel %vm215, %v2281, %v2285
        %v2288 = vshrl.u32 %v2008, 16
        %v2290 = vrot.slane %v2288, 4
        %v2291 = vshll.u32 %v2008, 16
        %v2293 = vrot.slane %v2291, 5
        %v2294 = vor.u32 %v2290, %v2293
        %v2295 = vrot.slane %v2294, 4
        %v2297 = vshll.u32 %v2009, 16
        %v2299 = vrot.slane %v2297, 5
        %v2300 = vsel %vm215, %v2295, %v2299
        %v2301 = vshrl.u32 %v2009, 16
        %v2303 = vrot.slane %v2301, 4
        %v2304 = vor.u32 %v2303, %v2299
        %v2305 = vrot.slane %v2304, 4
        %v2307 = vshll.u32 %v2010, 16
        %v2309 = vrot.slane %v2307, 5
        %v2310 = vsel %vm215, %v2305, %v2309
        %v2312 = vshrl.u32 %v2011, 16
        %v2314 = vrot.slane %v2312, 4
        %v2315 = vshll.u32 %v2011, 16
        %v2317 = vrot.slane %v2315, 5
        %v2318 = vor.u32 %v2314, %v2317
        %v2319 = vrot.slane %v2318, 4
        %v2321 = vshll.u32 %v2012, 16
        %v2323 = vrot.slane %v2321, 5
        %v2324 = vsel %vm215, %v2319, %v2323
        %v2325 = vshrl.u32 %v2012, 16
        %v2327 = vrot.slane %v2325, 4
        %v2328 = vor.u32 %v2327, %v2323
        %v2329 = vrot.slane %v2328, 4
        %v2331 = vshll.u32 %v2013, 16
        %v2333 = vrot.slane %v2331, 5
        %v2334 = vsel %vm215, %v2329, %v2333
        %v2336 = vshrl.u32 %v2014, 16
        %v2338 = vrot.slane %v2336, 4
        %v2339 = vshll.u32 %v2014, 16
        %v2341 = vrot.slane %v2339, 5
        %v2342 = vor.u32 %v2338, %v2341
        %v2343 = vrot.slane %v2342, 4
        %v2345 = vshll.u32 %v2015, 16
        %v2347 = vrot.slane %v2345, 5
        %v2348 = vsel %vm215, %v2343, %v2347
        %v2349 = vshrl.u32 %v2015, 16
        %v2351 = vrot.slane %v2349, 4
        %v2352 = vor.u32 %v2351, %v2347
        %v2353 = vrot.slane %v2352, 4
        %v2355 = vshll.u32 %v2016, 16
        %v2357 = vrot.slane %v2355, 5
        %v2358 = vsel %vm215, %v2353, %v2357
        %v2360 = vshrl.u32 %v2017, 16
        %v2362 = vrot.slane %v2360, 4
        %v2363 = vshll.u32 %v2017, 16
        %v2365 = vrot.slane %v2363, 5
        %v2366 = vor.u32 %v2362, %v2365
        %v2367 = vrot.slane %v2366, 4
        %v2369 = vshll.u32 %v2018, 16
        %v2371 = vrot.slane %v2369, 5
        %v2372 = vsel %vm215, %v2367, %v2371
        %v2373 = vshrl.u32 %v2018, 16
        %v2375 = vrot.slane %v2373, 4
        %v2376 = vor.u32 %v2375, %v2371
        %v2377 = vrot.slane %v2376, 4
        %v2379 = vshll.u32 %v2019, 16
        %v2381 = vrot.slane %v2379, 5
        %v2382 = vsel %vm215, %v2377, %v2381
        %v2384 = vshrl.u32 %v2020, 16
        %v2386 = vrot.slane %v2384, 4
        %v2387 = vshll.u32 %v2020, 16
        %v2389 = vrot.slane %v2387, 5
        %v2390 = vor.u32 %v2386, %v2389
        %v2391 = vrot.slane %v2390, 4
        %v2393 = vshll.u32 %v2021, 16
        %v2395 = vrot.slane %v2393, 5
        %v2396 = vsel %vm215, %v2391, %v2395
        %v2397 = vshrl.u32 %v2021, 16
        %v2399 = vrot.slane %v2397, 4
        %v2400 = vor.u32 %v2399, %v2395
        %v2401 = vrot.slane %v2400, 4
        %v2403 = vshll.u32 %v2022, 16
        %v2405 = vrot.slane %v2403, 5
        %v2406 = vsel %vm215, %v2401, %v2405
        %s2407 = scalar_lea.vmem %s1, 8
        %v2408 = vld [vmem:[%s2407] sm:$0x3]
        %v2409 = vunpack.c.l.b16 %v2036
        %v2410 = vunpack.c.l.b16 %v2046
        %v2411 = vunpack.c.l.b16 %v2060
        %v2412 = vunpack.c.l.b16 %v2070
        %v2413 = vunpack.c.l.b16 %v2084
        %v2414 = vunpack.c.l.b16 %v2094
        %v2415 = vunpack.c.l.b16 %v2108
        %v2416 = vunpack.c.l.b16 %v2118
        %v2417 = vunpack.c.l.b16 %v2132
        %v2418 = vunpack.c.l.b16 %v2142
        %v2419 = vunpack.c.l.b16 %v2156
        %v2420 = vunpack.c.l.b16 %v2166
        %v2421 = vunpack.c.l.b16 %v2180
        %v2422 = vunpack.c.l.b16 %v2190
        %v2423 = vunpack.c.l.b16 %v2204
        %v2424 = vunpack.c.l.b16 %v2214
        %v2425 = vunpack.c.l.b16 %v2228
        %v2426 = vunpack.c.l.b16 %v2238
        %v2427 = vunpack.c.l.b16 %v2252
        %v2428 = vunpack.c.l.b16 %v2262
        %v2429 = vunpack.c.l.b16 %v2276
        %v2430 = vunpack.c.l.b16 %v2286
        %v2431 = vunpack.c.l.b16 %v2300
        %v2432 = vunpack.c.l.b16 %v2310
        %v2433 = vunpack.c.l.b16 %v2324
        %v2434 = vunpack.c.l.b16 %v2334
        %v2435 = vunpack.c.l.b16 %v2348
        %v2436 = vunpack.c.l.b16 %v2358
        %v2437 = vunpack.c.l.b16 %v2372
        %v2438 = vunpack.c.l.b16 %v2382
        %v2439 = vunpack.c.l.b16 %v2396
        %v2440 = vunpack.c.l.b16 %v2406
        %v2441 = vpack.c.b16 %v2410, %v2409
        %v2442 = vpack.c.b16 %v2412, %v2411
        %v2443 = vpack.c.b16 %v2414, %v2413
        %v2444 = vpack.c.b16 %v2416, %v2415
        %v2445 = vpack.c.b16 %v2418, %v2417
        %v2446 = vpack.c.b16 %v2420, %v2419
        %v2447 = vpack.c.b16 %v2422, %v2421
        %v2448 = vpack.c.b16 %v2424, %v2423
        %v2449 = vpack.c.b16 %v2426, %v2425
        %v2450 = vpack.c.b16 %v2428, %v2427
        %v2451 = vpack.c.b16 %v2430, %v2429
        %v2452 = vpack.c.b16 %v2432, %v2431
        %v2453 = vpack.c.b16 %v2434, %v2433
        %v2454 = vpack.c.b16 %v2436, %v2435
        %v2455 = vpack.c.b16 %v2438, %v2437
        %v2456 = vpack.c.b16 %v2440, %v2439
        %v2458 = vsel %vm650, %v2441, 0
        %v2461 = vsel %vm650, %v2442, 0
        %v2464 = vsel %vm650, %v2443, 0
        %v2467 = vsel %vm650, %v2444, 0
        %v2470 = vsel %vm650, %v2445, 0
        %v2473 = vsel %vm650, %v2446, 0
        %v2476 = vsel %vm650, %v2447, 0
        %v2479 = vsel %vm650, %v2448, 0
        %v2482 = vsel %vm650, %v2449, 0
        %v2485 = vsel %vm650, %v2450, 0
        %v2488 = vsel %vm650, %v2451, 0
        %v2491 = vsel %vm650, %v2452, 0
        %v2494 = vsel %vm650, %v2453, 0
        %v2497 = vsel %vm650, %v2454, 0
        %v2500 = vsel %vm650, %v2455, 0
        %v2503 = vsel %vm650, %v2456, 0
        %v2506 = vsel %vm699, %v2408, 0
        %2508 = vmatprep.subr.bf16.mxu0 0
        %2509 = vmatpush1.bf16.msra.mxu0 0
        %2510 = vmatprep.subr.bf16.mxu0 0
        %2511 = vmatpush1.bf16.msra.mxu0 0
        %2512 = vmatprep.subr.bf16.mxu0 0
        %2513 = vmatpush1.bf16.msra.mxu0 0
        %2514 = vmatprep.subr.bf16.mxu0 0
        %2515 = vmatpush1.bf16.msra.mxu0 0
        %2516 = vmatprep.subr.bf16.mxu0 0
        %2517 = vmatpush1.bf16.msra.mxu0 0
        %2518 = vmatprep.subr.bf16.mxu0 0
        %2519 = vmatpush1.bf16.msra.mxu0 0
        %2520 = vmatprep.subr.bf16.mxu0 0
        %2521 = vmatpush1.bf16.msra.mxu0 0
        %2522 = vmatprep.subr.bf16.mxu0 0
        %2523 = vmatpush1.bf16.msra.mxu0 %v2506
        %2524 = vmatprep.subr.bf16.mxu0 0
        %2525 = vmatpush2.bf16.msra.mxu0 0
        %2526 = vmatprep.subr.bf16.mxu0 0
        %2527 = vmatpush2.bf16.msra.mxu0 0
        %2528 = vmatprep.subr.bf16.mxu0 0
        %2529 = vmatpush2.bf16.msra.mxu0 0
        %2530 = vmatprep.subr.bf16.mxu0 0
        %2531 = vmatpush2.bf16.msra.mxu0 0
        %2532 = vmatprep.subr.bf16.mxu0 0
        %2533 = vmatpush2.bf16.msra.mxu0 0
        %2534 = vmatprep.subr.bf16.mxu0 0
        %2535 = vmatpush2.bf16.msra.mxu0 0
        %2536 = vmatprep.subr.bf16.mxu0 0
        %2537 = vmatpush2.bf16.msra.mxu0 0
        %2538 = vmatprep.subr.bf16.mxu0 0
        %2539 = vmatpush2.bf16.msra.mxu0 0
        %2540 = vmatprep.mubr.bf16.mxu0 0
        %2541 = vmatmul.mubr.bf16.gmra.mxu0 %v2458
        %v2542 = vpop.f32.mrf.mxu0
        %v2543 = vadd.f32 0.0, %v2542
        %v2544 = vpop.f32.mrf.mxu0
        %v2545 = vpop.f32.mrf.mxu0
        %v2546 = vadd.f32 0.0, %v2545
        %v2547 = vpop.f32.mrf.mxu0
        %2548 = vmatprep.mubr.bf16.mxu0 0
        %2549 = vmatmul.mubr.bf16.gmra.mxu0 %v2461
        %v2550 = vpop.f32.mrf.mxu0
        %v2551 = vadd.f32 0.0, %v2550
        %v2552 = vpop.f32.mrf.mxu0
        %v2553 = vpop.f32.mrf.mxu0
        %v2554 = vadd.f32 0.0, %v2553
        %v2555 = vpop.f32.mrf.mxu0
        %2556 = vmatprep.mubr.bf16.mxu0 0
        %2557 = vmatmul.mubr.bf16.gmra.mxu0 %v2464
        %v2558 = vpop.f32.mrf.mxu0
        %v2559 = vadd.f32 0.0, %v2558
        %v2560 = vpop.f32.mrf.mxu0
        %v2561 = vpop.f32.mrf.mxu0
        %v2562 = vadd.f32 0.0, %v2561
        %v2563 = vpop.f32.mrf.mxu0
        %2564 = vmatprep.mubr.bf16.mxu0 0
        %2565 = vmatmul.mubr.bf16.gmra.mxu0 %v2467
        %v2566 = vpop.f32.mrf.mxu0
        %v2567 = vadd.f32 0.0, %v2566
        %v2568 = vpop.f32.mrf.mxu0
        %v2569 = vpop.f32.mrf.mxu0
        %v2570 = vadd.f32 0.0, %v2569
        %v2571 = vpop.f32.mrf.mxu0
        %2572 = vmatprep.mubr.bf16.mxu0 0
        %2573 = vmatmul.mubr.bf16.gmra.mxu0 %v2470
        %v2574 = vpop.f32.mrf.mxu0
        %v2575 = vadd.f32 0.0, %v2574
        %v2576 = vpop.f32.mrf.mxu0
        %v2577 = vpop.f32.mrf.mxu0
        %v2578 = vadd.f32 0.0, %v2577
        %v2579 = vpop.f32.mrf.mxu0
        %2580 = vmatprep.mubr.bf16.mxu0 0
        %2581 = vmatmul.mubr.bf16.gmra.mxu0 %v2473
        %v2582 = vpop.f32.mrf.mxu0
        %v2583 = vadd.f32 0.0, %v2582
        %v2584 = vpop.f32.mrf.mxu0
        %v2585 = vpop.f32.mrf.mxu0
        %v2586 = vadd.f32 0.0, %v2585
        %v2587 = vpop.f32.mrf.mxu0
        %2588 = vmatprep.mubr.bf16.mxu0 0
        %2589 = vmatmul.mubr.bf16.gmra.mxu0 %v2476
        %v2590 = vpop.f32.mrf.mxu0
        %v2591 = vadd.f32 0.0, %v2590
        %v2592 = vpop.f32.mrf.mxu0
        %v2593 = vpop.f32.mrf.mxu0
        %v2594 = vadd.f32 0.0, %v2593
        %v2595 = vpop.f32.mrf.mxu0
        %2596 = vmatprep.mubr.bf16.mxu0 0
        %2597 = vmatmul.mubr.bf16.gmra.mxu0 %v2479
        %v2598 = vpop.f32.mrf.mxu0
        %v2599 = vadd.f32 0.0, %v2598
        %v2600 = vpop.f32.mrf.mxu0
        %v2601 = vpop.f32.mrf.mxu0
        %v2602 = vadd.f32 0.0, %v2601
        %v2603 = vpop.f32.mrf.mxu0
        %2604 = vmatprep.mubr.bf16.mxu0 0
        %2605 = vmatmul.mubr.bf16.gmra.mxu0 %v2482
        %v2606 = vpop.f32.mrf.mxu0
        %v2607 = vadd.f32 0.0, %v2606
        %v2608 = vpop.f32.mrf.mxu0
        %v2609 = vpop.f32.mrf.mxu0
        %v2610 = vadd.f32 0.0, %v2609
        %v2611 = vpop.f32.mrf.mxu0
        %2612 = vmatprep.mubr.bf16.mxu0 0
        %2613 = vmatmul.mubr.bf16.gmra.mxu0 %v2485
        %v2614 = vpop.f32.mrf.mxu0
        %v2615 = vadd.f32 0.0, %v2614
        %v2616 = vpop.f32.mrf.mxu0
        %v2617 = vpop.f32.mrf.mxu0
        %v2618 = vadd.f32 0.0, %v2617
        %v2619 = vpop.f32.mrf.mxu0
        %2620 = vmatprep.mubr.bf16.mxu0 0
        %2621 = vmatmul.mubr.bf16.gmra.mxu0 %v2488
        %v2622 = vpop.f32.mrf.mxu0
        %v2623 = vadd.f32 0.0, %v2622
        %v2624 = vpop.f32.mrf.mxu0
        %v2625 = vpop.f32.mrf.mxu0
        %v2626 = vadd.f32 0.0, %v2625
        %v2627 = vpop.f32.mrf.mxu0
        %2628 = vmatprep.mubr.bf16.mxu0 0
        %2629 = vmatmul.mubr.bf16.gmra.mxu0 %v2491
        %v2630 = vpop.f32.mrf.mxu0
        %v2631 = vadd.f32 0.0, %v2630
        %v2632 = vpop.f32.mrf.mxu0
        %v2633 = vpop.f32.mrf.mxu0
        %v2634 = vadd.f32 0.0, %v2633
        %v2635 = vpop.f32.mrf.mxu0
        %2636 = vmatprep.mubr.bf16.mxu0 0
        %2637 = vmatmul.mubr.bf16.gmra.mxu0 %v2494
        %v2638 = vpop.f32.mrf.mxu0
        %v2639 = vadd.f32 0.0, %v2638
        %v2640 = vpop.f32.mrf.mxu0
        %v2641 = vpop.f32.mrf.mxu0
        %v2642 = vadd.f32 0.0, %v2641
        %v2643 = vpop.f32.mrf.mxu0
        %2644 = vmatprep.mubr.bf16.mxu0 0
        %2645 = vmatmul.mubr.bf16.gmra.mxu0 %v2497
        %v2646 = vpop.f32.mrf.mxu0
        %v2647 = vadd.f32 0.0, %v2646
        %v2648 = vpop.f32.mrf.mxu0
        %v2649 = vpop.f32.mrf.mxu0
        %v2650 = vadd.f32 0.0, %v2649
        %v2651 = vpop.f32.mrf.mxu0
        %2652 = vmatprep.mubr.bf16.mxu0 0
        %2653 = vmatmul.mubr.bf16.gmra.mxu0 %v2500
        %v2654 = vpop.f32.mrf.mxu0
        %v2655 = vadd.f32 0.0, %v2654
        %v2656 = vpop.f32.mrf.mxu0
        %v2657 = vpop.f32.mrf.mxu0
        %v2658 = vadd.f32 0.0, %v2657
        %v2659 = vpop.f32.mrf.mxu0
        %2660 = vmatprep.mubr.bf16.mxu0 0
        %2661 = vmatmul.mubr.bf16.gmra.mxu0 %v2503
        %v2662 = vpop.f32.mrf.mxu0
        %v2663 = vadd.f32 0.0, %v2662
        %v2664 = vpop.f32.mrf.mxu0
        %v2665 = vpop.f32.mrf.mxu0
        %v2666 = vadd.f32 0.0, %v2665
        %v2667 = vpop.f32.mrf.mxu0
        %2668 = vdwg.mxu0
        %v2669 = vadd.f32 %v1943, %v2543
        %v2670 = vadd.f32 %v1944, %v2546
        %v2671 = vadd.f32 %v1945, %v2551
        %v2672 = vadd.f32 %v1946, %v2554
        %v2673 = vadd.f32 %v1947, %v2559
        %v2674 = vadd.f32 %v1948, %v2562
        %v2675 = vadd.f32 %v1949, %v2567
        %v2676 = vadd.f32 %v1950, %v2570
        %v2677 = vadd.f32 %v1951, %v2575
        %v2678 = vadd.f32 %v1952, %v2578
        %v2679 = vadd.f32 %v1953, %v2583
        %v2680 = vadd.f32 %v1954, %v2586
        %v2681 = vadd.f32 %v1955, %v2591
        %v2682 = vadd.f32 %v1956, %v2594
        %v2683 = vadd.f32 %v1957, %v2599
        %v2684 = vadd.f32 %v1958, %v2602
        %v2685 = vadd.f32 %v1959, %v2607
        %v2686 = vadd.f32 %v1960, %v2610
        %v2687 = vadd.f32 %v1961, %v2615
        %v2688 = vadd.f32 %v1962, %v2618
        %v2689 = vadd.f32 %v1963, %v2623
        %v2690 = vadd.f32 %v1964, %v2626
        %v2691 = vadd.f32 %v1965, %v2631
        %v2692 = vadd.f32 %v1966, %v2634
        %v2693 = vadd.f32 %v1967, %v2639
        %v2694 = vadd.f32 %v1968, %v2642
        %v2695 = vadd.f32 %v1969, %v2647
        %v2696 = vadd.f32 %v1970, %v2650
        %v2697 = vadd.f32 %v1971, %v2655
        %v2698 = vadd.f32 %v1972, %v2658
        %v2699 = vadd.f32 %v1973, %v2663
        %v2700 = vadd.f32 %v1974, %v2666
        %v2701 = vld [vmem:[%s1616] sm:$0xe]
        %v2702 = vld [vmem:[%s1616 + $0xc] sm:$0xe]
        %v2703 = vld [vmem:[%s1616 + $0x18] sm:$0xe]
        %v2704 = vld [vmem:[%s1616 + $0x24] sm:$0xe]
        %v2705 = vld [vmem:[%s1616 + $0x30] sm:$0xe]
        %v2706 = vld [vmem:[%s1616 + $0x3c] sm:$0xe]
        %v2707 = vld [vmem:[%s1616 + $0x48] sm:$0xe]
        %v2708 = vld [vmem:[%s1616 + $0x54] sm:$0xe]
        %v2709 = vld [vmem:[%s1616 + $0x60] sm:$0xe]
        %v2710 = vld [vmem:[%s1616 + $0x6c] sm:$0xe]
        %v2711 = vld [vmem:[%s1616 + $0x78] sm:$0xe]
        %v2712 = vld [vmem:[%s1616 + $0x84] sm:$0xe]
        %v2713 = vld [vmem:[%s1616 + $0x90] sm:$0xe]
        %v2714 = vld [vmem:[%s1616 + $0x9c] sm:$0xe]
        %v2715 = vld [vmem:[%s1616 + $0xa8] sm:$0xe]
        %v2716 = vld [vmem:[%s1616 + $0xb4] sm:$0xe]
        %v2765 = vrot.slane %v2701, 5
        %v2766 = vrot.slane %v2765, 4
        %v2767 = vrot.slane %v1976, 5
        %v2768 = vsel %vm1206, %v2766, %v2767
        %v2769 = vrot.slane %v2767, 4
        %v2770 = vrot.slane %v1977, 5
        %v2771 = vsel %vm1206, %v2769, %v2770
        %v2772 = vrot.slane %v2702, 5
        %v2773 = vrot.slane %v2772, 4
        %v2774 = vrot.slane %v1979, 5
        %v2775 = vsel %vm1206, %v2773, %v2774
        %v2776 = vrot.slane %v2774, 4
        %v2777 = vrot.slane %v1980, 5
        %v2778 = vsel %vm1206, %v2776, %v2777
        %v2779 = vrot.slane %v2703, 5
        %v2780 = vrot.slane %v2779, 4
        %v2781 = vrot.slane %v1982, 5
        %v2782 = vsel %vm1206, %v2780, %v2781
        %v2783 = vrot.slane %v2781, 4
        %v2784 = vrot.slane %v1983, 5
        %v2785 = vsel %vm1206, %v2783, %v2784
        %v2786 = vrot.slane %v2704, 5
        %v2787 = vrot.slane %v2786, 4
        %v2788 = vrot.slane %v1985, 5
        %v2789 = vsel %vm1206, %v2787, %v2788
        %v2790 = vrot.slane %v2788, 4
        %v2791 = vrot.slane %v1986, 5
        %v2792 = vsel %vm1206, %v2790, %v2791
        %v2793 = vrot.slane %v2705, 5
        %v2794 = vrot.slane %v2793, 4
        %v2795 = vrot.slane %v1988, 5
        %v2796 = vsel %vm1206, %v2794, %v2795
        %v2797 = vrot.slane %v2795, 4
        %v2798 = vrot.slane %v1989, 5
        %v2799 = vsel %vm1206, %v2797, %v2798
        %v2800 = vrot.slane %v2706, 5
        %v2801 = vrot.slane %v2800, 4
        %v2802 = vrot.slane %v1991, 5
        %v2803 = vsel %vm1206, %v2801, %v2802
        %v2804 = vrot.slane %v2802, 4
        %v2805 = vrot.slane %v1992, 5
        %v2806 = vsel %vm1206, %v2804, %v2805
        %v2807 = vrot.slane %v2707, 5
        %v2808 = vrot.slane %v2807, 4
        %v2809 = vrot.slane %v1994, 5
        %v2810 = vsel %vm1206, %v2808, %v2809
        %v2811 = vrot.slane %v2809, 4
        %v2812 = vrot.slane %v1995, 5
        %v2813 = vsel %vm1206, %v2811, %v2812
        %v2814 = vrot.slane %v2708, 5
        %v2815 = vrot.slane %v2814, 4
        %v2816 = vrot.slane %v1997, 5
        %v2817 = vsel %vm1206, %v2815, %v2816
        %v2818 = vrot.slane %v2816, 4
        %v2819 = vrot.slane %v1998, 5
        %v2820 = vsel %vm1206, %v2818, %v2819
        %v2821 = vrot.slane %v2709, 5
        %v2822 = vrot.slane %v2821, 4
        %v2823 = vrot.slane %v2000, 5
        %v2824 = vsel %vm1206, %v2822, %v2823
        %v2825 = vrot.slane %v2823, 4
        %v2826 = vrot.slane %v2001, 5
        %v2827 = vsel %vm1206, %v2825, %v2826
        %v2828 = vrot.slane %v2710, 5
        %v2829 = vrot.slane %v2828, 4
        %v2830 = vrot.slane %v2003, 5
        %v2831 = vsel %vm1206, %v2829, %v2830
        %v2832 = vrot.slane %v2830, 4
        %v2833 = vrot.slane %v2004, 5
        %v2834 = vsel %vm1206, %v2832, %v2833
        %v2835 = vrot.slane %v2711, 5
        %v2836 = vrot.slane %v2835, 4
        %v2837 = vrot.slane %v2006, 5
        %v2838 = vsel %vm1206, %v2836, %v2837
        %v2839 = vrot.slane %v2837, 4
        %v2840 = vrot.slane %v2007, 5
        %v2841 = vsel %vm1206, %v2839, %v2840
        %v2842 = vrot.slane %v2712, 5
        %v2843 = vrot.slane %v2842, 4
        %v2844 = vrot.slane %v2009, 5
        %v2845 = vsel %vm1206, %v2843, %v2844
        %v2846 = vrot.slane %v2844, 4
        %v2847 = vrot.slane %v2010, 5
        %v2848 = vsel %vm1206, %v2846, %v2847
        %v2849 = vrot.slane %v2713, 5
        %v2850 = vrot.slane %v2849, 4
        %v2851 = vrot.slane %v2012, 5
        %v2852 = vsel %vm1206, %v2850, %v2851
        %v2853 = vrot.slane %v2851, 4
        %v2854 = vrot.slane %v2013, 5
        %v2855 = vsel %vm1206, %v2853, %v2854
        %v2856 = vrot.slane %v2714, 5
        %v2857 = vrot.slane %v2856, 4
        %v2858 = vrot.slane %v2015, 5
        %v2859 = vsel %vm1206, %v2857, %v2858
        %v2860 = vrot.slane %v2858, 4
        %v2861 = vrot.slane %v2016, 5
        %v2862 = vsel %vm1206, %v2860, %v2861
        %v2863 = vrot.slane %v2715, 5
        %v2864 = vrot.slane %v2863, 4
        %v2865 = vrot.slane %v2018, 5
        %v2866 = vsel %vm1206, %v2864, %v2865
        %v2867 = vrot.slane %v2865, 4
        %v2868 = vrot.slane %v2019, 5
        %v2869 = vsel %vm1206, %v2867, %v2868
        %v2870 = vrot.slane %v2716, 5
        %v2871 = vrot.slane %v2870, 4
        %v2872 = vrot.slane %v2021, 5
        %v2873 = vsel %vm1206, %v2871, %v2872
        %v2874 = vrot.slane %v2872, 4
        %v2875 = vrot.slane %v2022, 5
        %v2876 = vsel %vm1206, %v2874, %v2875
        %s2877 = scalar_lea.vmem %s1, 10
        %v2878 = vld [vmem:[%s2877] sm:$0x3]
        %v2879 = vunpack.c.l.b16 %v2768
        %v2880 = vunpack.c.l.b16 %v2771
        %v2881 = vunpack.c.l.b16 %v2775
        %v2882 = vunpack.c.l.b16 %v2778
        %v2883 = vunpack.c.l.b16 %v2782
        %v2884 = vunpack.c.l.b16 %v2785
        %v2885 = vunpack.c.l.b16 %v2789
        %v2886 = vunpack.c.l.b16 %v2792
        %v2887 = vunpack.c.l.b16 %v2796
        %v2888 = vunpack.c.l.b16 %v2799
        %v2889 = vunpack.c.l.b16 %v2803
        %v2890 = vunpack.c.l.b16 %v2806
        %v2891 = vunpack.c.l.b16 %v2810
        %v2892 = vunpack.c.l.b16 %v2813
        %v2893 = vunpack.c.l.b16 %v2817
        %v2894 = vunpack.c.l.b16 %v2820
        %v2895 = vunpack.c.l.b16 %v2824
        %v2896 = vunpack.c.l.b16 %v2827
        %v2897 = vunpack.c.l.b16 %v2831
        %v2898 = vunpack.c.l.b16 %v2834
        %v2899 = vunpack.c.l.b16 %v2838
        %v2900 = vunpack.c.l.b16 %v2841
        %v2901 = vunpack.c.l.b16 %v2845
        %v2902 = vunpack.c.l.b16 %v2848
        %v2903 = vunpack.c.l.b16 %v2852
        %v2904 = vunpack.c.l.b16 %v2855
        %v2905 = vunpack.c.l.b16 %v2859
        %v2906 = vunpack.c.l.b16 %v2862
        %v2907 = vunpack.c.l.b16 %v2866
        %v2908 = vunpack.c.l.b16 %v2869
        %v2909 = vunpack.c.l.b16 %v2873
        %v2910 = vunpack.c.l.b16 %v2876
        %v2911 = vpack.c.b16 %v2880, %v2879
        %v2912 = vpack.c.b16 %v2882, %v2881
        %v2913 = vpack.c.b16 %v2884, %v2883
        %v2914 = vpack.c.b16 %v2886, %v2885
        %v2915 = vpack.c.b16 %v2888, %v2887
        %v2916 = vpack.c.b16 %v2890, %v2889
        %v2917 = vpack.c.b16 %v2892, %v2891
        %v2918 = vpack.c.b16 %v2894, %v2893
        %v2919 = vpack.c.b16 %v2896, %v2895
        %v2920 = vpack.c.b16 %v2898, %v2897
        %v2921 = vpack.c.b16 %v2900, %v2899
        %v2922 = vpack.c.b16 %v2902, %v2901
        %v2923 = vpack.c.b16 %v2904, %v2903
        %v2924 = vpack.c.b16 %v2906, %v2905
        %v2925 = vpack.c.b16 %v2908, %v2907
        %v2926 = vpack.c.b16 %v2910, %v2909
        %v2928 = vsel %vm650, %v2911, 0
        %v2931 = vsel %vm650, %v2912, 0
        %v2934 = vsel %vm650, %v2913, 0
        %v2937 = vsel %vm650, %v2914, 0
        %v2940 = vsel %vm650, %v2915, 0
        %v2943 = vsel %vm650, %v2916, 0
        %v2946 = vsel %vm650, %v2917, 0
        %v2949 = vsel %vm650, %v2918, 0
        %v2952 = vsel %vm650, %v2919, 0
        %v2955 = vsel %vm650, %v2920, 0
        %v2958 = vsel %vm650, %v2921, 0
        %v2961 = vsel %vm650, %v2922, 0
        %v2964 = vsel %vm650, %v2923, 0
        %v2967 = vsel %vm650, %v2924, 0
        %v2970 = vsel %vm650, %v2925, 0
        %v2973 = vsel %vm650, %v2926, 0
        %v2976 = vsel %vm699, %v2878, 0
        %2978 = vmatprep.subr.bf16.mxu0 0
        %2979 = vmatpush1.bf16.msra.mxu0 0
        %2980 = vmatprep.subr.bf16.mxu0 0
        %2981 = vmatpush1.bf16.msra.mxu0 0
        %2982 = vmatprep.subr.bf16.mxu0 0
        %2983 = vmatpush1.bf16.msra.mxu0 0
        %2984 = vmatprep.subr.bf16.mxu0 0
        %2985 = vmatpush1.bf16.msra.mxu0 0
        %2986 = vmatprep.subr.bf16.mxu0 0
        %2987 = vmatpush1.bf16.msra.mxu0 0
        %2988 = vmatprep.subr.bf16.mxu0 0
        %2989 = vmatpush1.bf16.msra.mxu0 0
        %2990 = vmatprep.subr.bf16.mxu0 0
        %2991 = vmatpush1.bf16.msra.mxu0 0
        %2992 = vmatprep.subr.bf16.mxu0 0
        %2993 = vmatpush1.bf16.msra.mxu0 %v2976
        %2994 = vmatprep.subr.bf16.mxu0 0
        %2995 = vmatpush2.bf16.msra.mxu0 0
        %2996 = vmatprep.subr.bf16.mxu0 0
        %2997 = vmatpush2.bf16.msra.mxu0 0
        %2998 = vmatprep.subr.bf16.mxu0 0
        %2999 = vmatpush2.bf16.msra.mxu0 0
        %3000 = vmatprep.subr.bf16.mxu0 0
        %3001 = vmatpush2.bf16.msra.mxu0 0
        %3002 = vmatprep.subr.bf16.mxu0 0
        %3003 = vmatpush2.bf16.msra.mxu0 0
        %3004 = vmatprep.subr.bf16.mxu0 0
        %3005 = vmatpush2.bf16.msra.mxu0 0
        %3006 = vmatprep.subr.bf16.mxu0 0
        %3007 = vmatpush2.bf16.msra.mxu0 0
        %3008 = vmatprep.subr.bf16.mxu0 0
        %3009 = vmatpush2.bf16.msra.mxu0 0
        %3010 = vmatprep.mubr.bf16.mxu0 0
        %3011 = vmatmul.mubr.bf16.gmra.mxu0 %v2928
        %v3012 = vpop.f32.mrf.mxu0
        %v3013 = vadd.f32 0.0, %v3012
        %v3014 = vpop.f32.mrf.mxu0
        %v3015 = vpop.f32.mrf.mxu0
        %v3016 = vadd.f32 0.0, %v3015
        %v3017 = vpop.f32.mrf.mxu0
        %3018 = vmatprep.mubr.bf16.mxu0 0
        %3019 = vmatmul.mubr.bf16.gmra.mxu0 %v2931
        %v3020 = vpop.f32.mrf.mxu0
        %v3021 = vadd.f32 0.0, %v3020
        %v3022 = vpop.f32.mrf.mxu0
        %v3023 = vpop.f32.mrf.mxu0
        %v3024 = vadd.f32 0.0, %v3023
        %v3025 = vpop.f32.mrf.mxu0
        %3026 = vmatprep.mubr.bf16.mxu0 0
        %3027 = vmatmul.mubr.bf16.gmra.mxu0 %v2934
        %v3028 = vpop.f32.mrf.mxu0
        %v3029 = vadd.f32 0.0, %v3028
        %v3030 = vpop.f32.mrf.mxu0
        %v3031 = vpop.f32.mrf.mxu0
        %v3032 = vadd.f32 0.0, %v3031
        %v3033 = vpop.f32.mrf.mxu0
        %3034 = vmatprep.mubr.bf16.mxu0 0
        %3035 = vmatmul.mubr.bf16.gmra.mxu0 %v2937
        %v3036 = vpop.f32.mrf.mxu0
        %v3037 = vadd.f32 0.0, %v3036
        %v3038 = vpop.f32.mrf.mxu0
        %v3039 = vpop.f32.mrf.mxu0
        %v3040 = vadd.f32 0.0, %v3039
        %v3041 = vpop.f32.mrf.mxu0
        %3042 = vmatprep.mubr.bf16.mxu0 0
        %3043 = vmatmul.mubr.bf16.gmra.mxu0 %v2940
        %v3044 = vpop.f32.mrf.mxu0
        %v3045 = vadd.f32 0.0, %v3044
        %v3046 = vpop.f32.mrf.mxu0
        %v3047 = vpop.f32.mrf.mxu0
        %v3048 = vadd.f32 0.0, %v3047
        %v3049 = vpop.f32.mrf.mxu0
        %3050 = vmatprep.mubr.bf16.mxu0 0
        %3051 = vmatmul.mubr.bf16.gmra.mxu0 %v2943
        %v3052 = vpop.f32.mrf.mxu0
        %v3053 = vadd.f32 0.0, %v3052
        %v3054 = vpop.f32.mrf.mxu0
        %v3055 = vpop.f32.mrf.mxu0
        %v3056 = vadd.f32 0.0, %v3055
        %v3057 = vpop.f32.mrf.mxu0
        %3058 = vmatprep.mubr.bf16.mxu0 0
        %3059 = vmatmul.mubr.bf16.gmra.mxu0 %v2946
        %v3060 = vpop.f32.mrf.mxu0
        %v3061 = vadd.f32 0.0, %v3060
        %v3062 = vpop.f32.mrf.mxu0
        %v3063 = vpop.f32.mrf.mxu0
        %v3064 = vadd.f32 0.0, %v3063
        %v3065 = vpop.f32.mrf.mxu0
        %3066 = vmatprep.mubr.bf16.mxu0 0
        %3067 = vmatmul.mubr.bf16.gmra.mxu0 %v2949
        %v3068 = vpop.f32.mrf.mxu0
        %v3069 = vadd.f32 0.0, %v3068
        %v3070 = vpop.f32.mrf.mxu0
        %v3071 = vpop.f32.mrf.mxu0
        %v3072 = vadd.f32 0.0, %v3071
        %v3073 = vpop.f32.mrf.mxu0
        %3074 = vmatprep.mubr.bf16.mxu0 0
        %3075 = vmatmul.mubr.bf16.gmra.mxu0 %v2952
        %v3076 = vpop.f32.mrf.mxu0
        %v3077 = vadd.f32 0.0, %v3076
        %v3078 = vpop.f32.mrf.mxu0
        %v3079 = vpop.f32.mrf.mxu0
        %v3080 = vadd.f32 0.0, %v3079
        %v3081 = vpop.f32.mrf.mxu0
        %3082 = vmatprep.mubr.bf16.mxu0 0
        %3083 = vmatmul.mubr.bf16.gmra.mxu0 %v2955
        %v3084 = vpop.f32.mrf.mxu0
        %v3085 = vadd.f32 0.0, %v3084
        %v3086 = vpop.f32.mrf.mxu0
        %v3087 = vpop.f32.mrf.mxu0
        %v3088 = vadd.f32 0.0, %v3087
        %v3089 = vpop.f32.mrf.mxu0
        %3090 = vmatprep.mubr.bf16.mxu0 0
        %3091 = vmatmul.mubr.bf16.gmra.mxu0 %v2958
        %v3092 = vpop.f32.mrf.mxu0
        %v3093 = vadd.f32 0.0, %v3092
        %v3094 = vpop.f32.mrf.mxu0
        %v3095 = vpop.f32.mrf.mxu0
        %v3096 = vadd.f32 0.0, %v3095
        %v3097 = vpop.f32.mrf.mxu0
        %3098 = vmatprep.mubr.bf16.mxu0 0
        %3099 = vmatmul.mubr.bf16.gmra.mxu0 %v2961
        %v3100 = vpop.f32.mrf.mxu0
        %v3101 = vadd.f32 0.0, %v3100
        %v3102 = vpop.f32.mrf.mxu0
        %v3103 = vpop.f32.mrf.mxu0
        %v3104 = vadd.f32 0.0, %v3103
        %v3105 = vpop.f32.mrf.mxu0
        %3106 = vmatprep.mubr.bf16.mxu0 0
        %3107 = vmatmul.mubr.bf16.gmra.mxu0 %v2964
        %v3108 = vpop.f32.mrf.mxu0
        %v3109 = vadd.f32 0.0, %v3108
        %v3110 = vpop.f32.mrf.mxu0
        %v3111 = vpop.f32.mrf.mxu0
        %v3112 = vadd.f32 0.0, %v3111
        %v3113 = vpop.f32.mrf.mxu0
        %3114 = vmatprep.mubr.bf16.mxu0 0
        %3115 = vmatmul.mubr.bf16.gmra.mxu0 %v2967
        %v3116 = vpop.f32.mrf.mxu0
        %v3117 = vadd.f32 0.0, %v3116
        %v3118 = vpop.f32.mrf.mxu0
        %v3119 = vpop.f32.mrf.mxu0
        %v3120 = vadd.f32 0.0, %v3119
        %v3121 = vpop.f32.mrf.mxu0
        %3122 = vmatprep.mubr.bf16.mxu0 0
        %3123 = vmatmul.mubr.bf16.gmra.mxu0 %v2970
        %v3124 = vpop.f32.mrf.mxu0
        %v3125 = vadd.f32 0.0, %v3124
        %v3126 = vpop.f32.mrf.mxu0
        %v3127 = vpop.f32.mrf.mxu0
        %v3128 = vadd.f32 0.0, %v3127
        %v3129 = vpop.f32.mrf.mxu0
        %3130 = vmatprep.mubr.bf16.mxu0 0
        %3131 = vmatmul.mubr.bf16.gmra.mxu0 %v2973
        %v3132 = vpop.f32.mrf.mxu0
        %v3133 = vadd.f32 0.0, %v3132
        %v3134 = vpop.f32.mrf.mxu0
        %v3135 = vpop.f32.mrf.mxu0
        %v3136 = vadd.f32 0.0, %v3135
        %v3137 = vpop.f32.mrf.mxu0
        %3138 = vdwg.mxu0
        %v3139 = vadd.f32 %v2669, %v3013
        %v3140 = vadd.f32 %v2670, %v3016
        %v3141 = vadd.f32 %v2671, %v3021
        %v3142 = vadd.f32 %v2672, %v3024
        %v3143 = vadd.f32 %v2673, %v3029
        %v3144 = vadd.f32 %v2674, %v3032
        %v3145 = vadd.f32 %v2675, %v3037
        %v3146 = vadd.f32 %v2676, %v3040
        %v3147 = vadd.f32 %v2677, %v3045
        %v3148 = vadd.f32 %v2678, %v3048
        %v3149 = vadd.f32 %v2679, %v3053
        %v3150 = vadd.f32 %v2680, %v3056
        %v3151 = vadd.f32 %v2681, %v3061
        %v3152 = vadd.f32 %v2682, %v3064
        %v3153 = vadd.f32 %v2683, %v3069
        %v3154 = vadd.f32 %v2684, %v3072
        %v3155 = vadd.f32 %v2685, %v3077
        %v3156 = vadd.f32 %v2686, %v3080
        %v3157 = vadd.f32 %v2687, %v3085
        %v3158 = vadd.f32 %v2688, %v3088
        %v3159 = vadd.f32 %v2689, %v3093
        %v3160 = vadd.f32 %v2690, %v3096
        %v3161 = vadd.f32 %v2691, %v3101
        %v3162 = vadd.f32 %v2692, %v3104
        %v3163 = vadd.f32 %v2693, %v3109
        %v3164 = vadd.f32 %v2694, %v3112
        %v3165 = vadd.f32 %v2695, %v3117
        %v3166 = vadd.f32 %v2696, %v3120
        %v3167 = vadd.f32 %v2697, %v3125
        %v3168 = vadd.f32 %v2698, %v3128
        %v3169 = vadd.f32 %v2699, %v3133
        %v3170 = vadd.f32 %v2700, %v3136
        %s3171 = sadd.s32 %s160, 2
        %s3172 = smul.u32 %s3171, 3
        %s3173 = smul.addr %s3172, 4
        %s3174 = scalar_lea.vmem %s153, %s3173
        %v3175 = vld [vmem:[%s3174] sm:$0xf]
        %v3176 = vld [vmem:[%s3174 + $0x4] sm:$0xf]
        %v3177 = vld [vmem:[%s3174 + $0xc] sm:$0xf]
        %v3178 = vld [vmem:[%s3174 + $0x10] sm:$0xf]
        %v3179 = vld [vmem:[%s3174 + $0x18] sm:$0xf]
        %v3180 = vld [vmem:[%s3174 + $0x1c] sm:$0xf]
        %v3181 = vld [vmem:[%s3174 + $0x24] sm:$0xf]
        %v3182 = vld [vmem:[%s3174 + $0x28] sm:$0xf]
        %v3183 = vld [vmem:[%s3174 + $0x30] sm:$0xf]
        %v3184 = vld [vmem:[%s3174 + $0x34] sm:$0xf]
        %v3185 = vld [vmem:[%s3174 + $0x3c] sm:$0xf]
        %v3186 = vld [vmem:[%s3174 + $0x40] sm:$0xf]
        %v3187 = vld [vmem:[%s3174 + $0x48] sm:$0xf]
        %v3188 = vld [vmem:[%s3174 + $0x4c] sm:$0xf]
        %v3189 = vld [vmem:[%s3174 + $0x54] sm:$0xf]
        %v3190 = vld [vmem:[%s3174 + $0x58] sm:$0xf]
        %v3191 = vld [vmem:[%s3174 + $0x60] sm:$0xf]
        %v3192 = vld [vmem:[%s3174 + $0x64] sm:$0xf]
        %v3193 = vld [vmem:[%s3174 + $0x6c] sm:$0xf]
        %v3194 = vld [vmem:[%s3174 + $0x70] sm:$0xf]
        %v3195 = vld [vmem:[%s3174 + $0x78] sm:$0xf]
        %v3196 = vld [vmem:[%s3174 + $0x7c] sm:$0xf]
        %v3197 = vld [vmem:[%s3174 + $0x84] sm:$0xf]
        %v3198 = vld [vmem:[%s3174 + $0x88] sm:$0xf]
        %v3199 = vld [vmem:[%s3174 + $0x90] sm:$0xf]
        %v3200 = vld [vmem:[%s3174 + $0x94] sm:$0xf]
        %v3201 = vld [vmem:[%s3174 + $0x9c] sm:$0xf]
        %v3202 = vld [vmem:[%s3174 + $0xa0] sm:$0xf]
        %v3203 = vld [vmem:[%s3174 + $0xa8] sm:$0xf]
        %v3204 = vld [vmem:[%s3174 + $0xac] sm:$0xf]
        %v3205 = vld [vmem:[%s3174 + $0xb4] sm:$0xf]
        %v3206 = vld [vmem:[%s3174 + $0xb8] sm:$0xf]
        %s3207 = scalar_lea.vmem %s1, 12
        %v3208 = vld [vmem:[%s3207] sm:$0x3]
        %v3241 = vunpack.c.l.b16 %v3175
        %v3242 = vunpack.c.l.b16 %v3176
        %v3243 = vunpack.c.l.b16 %v3177
        %v3244 = vunpack.c.l.b16 %v3178
        %v3245 = vunpack.c.l.b16 %v3179
        %v3246 = vunpack.c.l.b16 %v3180
        %v3247 = vunpack.c.l.b16 %v3181
        %v3248 = vunpack.c.l.b16 %v3182
        %v3249 = vunpack.c.l.b16 %v3183
        %v3250 = vunpack.c.l.b16 %v3184
        %v3251 = vunpack.c.l.b16 %v3185
        %v3252 = vunpack.c.l.b16 %v3186
        %v3253 = vunpack.c.l.b16 %v3187
        %v3254 = vunpack.c.l.b16 %v3188
        %v3255 = vunpack.c.l.b16 %v3189
        %v3256 = vunpack.c.l.b16 %v3190
        %v3257 = vunpack.c.l.b16 %v3191
        %v3258 = vunpack.c.l.b16 %v3192
        %v3259 = vunpack.c.l.b16 %v3193
        %v3260 = vunpack.c.l.b16 %v3194
        %v3261 = vunpack.c.l.b16 %v3195
        %v3262 = vunpack.c.l.b16 %v3196
        %v3263 = vunpack.c.l.b16 %v3197
        %v3264 = vunpack.c.l.b16 %v3198
        %v3265 = vunpack.c.l.b16 %v3199
        %v3266 = vunpack.c.l.b16 %v3200
        %v3267 = vunpack.c.l.b16 %v3201
        %v3268 = vunpack.c.l.b16 %v3202
        %v3269 = vunpack.c.l.b16 %v3203
        %v3270 = vunpack.c.l.b16 %v3204
        %v3271 = vunpack.c.l.b16 %v3205
        %v3272 = vunpack.c.l.b16 %v3206
        %v3273 = vpack.c.b16 %v3242, %v3241
        %v3274 = vpack.c.b16 %v3244, %v3243
        %v3275 = vpack.c.b16 %v3246, %v3245
        %v3276 = vpack.c.b16 %v3248, %v3247
        %v3277 = vpack.c.b16 %v3250, %v3249
        %v3278 = vpack.c.b16 %v3252, %v3251
        %v3279 = vpack.c.b16 %v3254, %v3253
        %v3280 = vpack.c.b16 %v3256, %v3255
        %v3281 = vpack.c.b16 %v3258, %v3257
        %v3282 = vpack.c.b16 %v3260, %v3259
        %v3283 = vpack.c.b16 %v3262, %v3261
        %v3284 = vpack.c.b16 %v3264, %v3263
        %v3285 = vpack.c.b16 %v3266, %v3265
        %v3286 = vpack.c.b16 %v3268, %v3267
        %v3287 = vpack.c.b16 %v3270, %v3269
        %v3288 = vpack.c.b16 %v3272, %v3271
        %v3290 = vsel %vm650, %v3273, 0
        %v3293 = vsel %vm650, %v3274, 0
        %v3296 = vsel %vm650, %v3275, 0
        %v3299 = vsel %vm650, %v3276, 0
        %v3302 = vsel %vm650, %v3277, 0
        %v3305 = vsel %vm650, %v3278, 0
        %v3308 = vsel %vm650, %v3279, 0
        %v3311 = vsel %vm650, %v3280, 0
        %v3314 = vsel %vm650, %v3281, 0
        %v3317 = vsel %vm650, %v3282, 0
        %v3320 = vsel %vm650, %v3283, 0
        %v3323 = vsel %vm650, %v3284, 0
        %v3326 = vsel %vm650, %v3285, 0
        %v3329 = vsel %vm650, %v3286, 0
        %v3332 = vsel %vm650, %v3287, 0
        %v3335 = vsel %vm650, %v3288, 0
        %v3338 = vsel %vm699, %v3208, 0
        %3340 = vmatprep.subr.bf16.mxu0 0
        %3341 = vmatpush1.bf16.msra.mxu0 0
        %3342 = vmatprep.subr.bf16.mxu0 0
        %3343 = vmatpush1.bf16.msra.mxu0 0
        %3344 = vmatprep.subr.bf16.mxu0 0
        %3345 = vmatpush1.bf16.msra.mxu0 0
        %3346 = vmatprep.subr.bf16.mxu0 0
        %3347 = vmatpush1.bf16.msra.mxu0 0
        %3348 = vmatprep.subr.bf16.mxu0 0
        %3349 = vmatpush1.bf16.msra.mxu0 0
        %3350 = vmatprep.subr.bf16.mxu0 0
        %3351 = vmatpush1.bf16.msra.mxu0 0
        %3352 = vmatprep.subr.bf16.mxu0 0
        %3353 = vmatpush1.bf16.msra.mxu0 0
        %3354 = vmatprep.subr.bf16.mxu0 0
        %3355 = vmatpush1.bf16.msra.mxu0 %v3338
        %3356 = vmatprep.subr.bf16.mxu0 0
        %3357 = vmatpush2.bf16.msra.mxu0 0
        %3358 = vmatprep.subr.bf16.mxu0 0
        %3359 = vmatpush2.bf16.msra.mxu0 0
        %3360 = vmatprep.subr.bf16.mxu0 0
        %3361 = vmatpush2.bf16.msra.mxu0 0
        %3362 = vmatprep.subr.bf16.mxu0 0
        %3363 = vmatpush2.bf16.msra.mxu0 0
        %3364 = vmatprep.subr.bf16.mxu0 0
        %3365 = vmatpush2.bf16.msra.mxu0 0
        %3366 = vmatprep.subr.bf16.mxu0 0
        %3367 = vmatpush2.bf16.msra.mxu0 0
        %3368 = vmatprep.subr.bf16.mxu0 0
        %3369 = vmatpush2.bf16.msra.mxu0 0
        %3370 = vmatprep.subr.bf16.mxu0 0
        %3371 = vmatpush2.bf16.msra.mxu0 0
        %3372 = vmatprep.mubr.bf16.mxu0 0
        %3373 = vmatmul.mubr.bf16.gmra.mxu0 %v3290
        %v3374 = vpop.f32.mrf.mxu0
        %v3375 = vadd.f32 0.0, %v3374
        %v3376 = vpop.f32.mrf.mxu0
        %v3377 = vpop.f32.mrf.mxu0
        %v3378 = vadd.f32 0.0, %v3377
        %v3379 = vpop.f32.mrf.mxu0
        %3380 = vmatprep.mubr.bf16.mxu0 0
        %3381 = vmatmul.mubr.bf16.gmra.mxu0 %v3293
        %v3382 = vpop.f32.mrf.mxu0
        %v3383 = vadd.f32 0.0, %v3382
        %v3384 = vpop.f32.mrf.mxu0
        %v3385 = vpop.f32.mrf.mxu0
        %v3386 = vadd.f32 0.0, %v3385
        %v3387 = vpop.f32.mrf.mxu0
        %3388 = vmatprep.mubr.bf16.mxu0 0
        %3389 = vmatmul.mubr.bf16.gmra.mxu0 %v3296
        %v3390 = vpop.f32.mrf.mxu0
        %v3391 = vadd.f32 0.0, %v3390
        %v3392 = vpop.f32.mrf.mxu0
        %v3393 = vpop.f32.mrf.mxu0
        %v3394 = vadd.f32 0.0, %v3393
        %v3395 = vpop.f32.mrf.mxu0
        %3396 = vmatprep.mubr.bf16.mxu0 0
        %3397 = vmatmul.mubr.bf16.gmra.mxu0 %v3299
        %v3398 = vpop.f32.mrf.mxu0
        %v3399 = vadd.f32 0.0, %v3398
        %v3400 = vpop.f32.mrf.mxu0
        %v3401 = vpop.f32.mrf.mxu0
        %v3402 = vadd.f32 0.0, %v3401
        %v3403 = vpop.f32.mrf.mxu0
        %3404 = vmatprep.mubr.bf16.mxu0 0
        %3405 = vmatmul.mubr.bf16.gmra.mxu0 %v3302
        %v3406 = vpop.f32.mrf.mxu0
        %v3407 = vadd.f32 0.0, %v3406
        %v3408 = vpop.f32.mrf.mxu0
        %v3409 = vpop.f32.mrf.mxu0
        %v3410 = vadd.f32 0.0, %v3409
        %v3411 = vpop.f32.mrf.mxu0
        %3412 = vmatprep.mubr.bf16.mxu0 0
        %3413 = vmatmul.mubr.bf16.gmra.mxu0 %v3305
        %v3414 = vpop.f32.mrf.mxu0
        %v3415 = vadd.f32 0.0, %v3414
        %v3416 = vpop.f32.mrf.mxu0
        %v3417 = vpop.f32.mrf.mxu0
        %v3418 = vadd.f32 0.0, %v3417
        %v3419 = vpop.f32.mrf.mxu0
        %3420 = vmatprep.mubr.bf16.mxu0 0
        %3421 = vmatmul.mubr.bf16.gmra.mxu0 %v3308
        %v3422 = vpop.f32.mrf.mxu0
        %v3423 = vadd.f32 0.0, %v3422
        %v3424 = vpop.f32.mrf.mxu0
        %v3425 = vpop.f32.mrf.mxu0
        %v3426 = vadd.f32 0.0, %v3425
        %v3427 = vpop.f32.mrf.mxu0
        %3428 = vmatprep.mubr.bf16.mxu0 0
        %3429 = vmatmul.mubr.bf16.gmra.mxu0 %v3311
        %v3430 = vpop.f32.mrf.mxu0
        %v3431 = vadd.f32 0.0, %v3430
        %v3432 = vpop.f32.mrf.mxu0
        %v3433 = vpop.f32.mrf.mxu0
        %v3434 = vadd.f32 0.0, %v3433
        %v3435 = vpop.f32.mrf.mxu0
        %3436 = vmatprep.mubr.bf16.mxu0 0
        %3437 = vmatmul.mubr.bf16.gmra.mxu0 %v3314
        %v3438 = vpop.f32.mrf.mxu0
        %v3439 = vadd.f32 0.0, %v3438
        %v3440 = vpop.f32.mrf.mxu0
        %v3441 = vpop.f32.mrf.mxu0
        %v3442 = vadd.f32 0.0, %v3441
        %v3443 = vpop.f32.mrf.mxu0
        %3444 = vmatprep.mubr.bf16.mxu0 0
        %3445 = vmatmul.mubr.bf16.gmra.mxu0 %v3317
        %v3446 = vpop.f32.mrf.mxu0
        %v3447 = vadd.f32 0.0, %v3446
        %v3448 = vpop.f32.mrf.mxu0
        %v3449 = vpop.f32.mrf.mxu0
        %v3450 = vadd.f32 0.0, %v3449
        %v3451 = vpop.f32.mrf.mxu0
        %3452 = vmatprep.mubr.bf16.mxu0 0
        %3453 = vmatmul.mubr.bf16.gmra.mxu0 %v3320
        %v3454 = vpop.f32.mrf.mxu0
        %v3455 = vadd.f32 0.0, %v3454
        %v3456 = vpop.f32.mrf.mxu0
        %v3457 = vpop.f32.mrf.mxu0
        %v3458 = vadd.f32 0.0, %v3457
        %v3459 = vpop.f32.mrf.mxu0
        %3460 = vmatprep.mubr.bf16.mxu0 0
        %3461 = vmatmul.mubr.bf16.gmra.mxu0 %v3323
        %v3462 = vpop.f32.mrf.mxu0
        %v3463 = vadd.f32 0.0, %v3462
        %v3464 = vpop.f32.mrf.mxu0
        %v3465 = vpop.f32.mrf.mxu0
        %v3466 = vadd.f32 0.0, %v3465
        %v3467 = vpop.f32.mrf.mxu0
        %3468 = vmatprep.mubr.bf16.mxu0 0
        %3469 = vmatmul.mubr.bf16.gmra.mxu0 %v3326
        %v3470 = vpop.f32.mrf.mxu0
        %v3471 = vadd.f32 0.0, %v3470
        %v3472 = vpop.f32.mrf.mxu0
        %v3473 = vpop.f32.mrf.mxu0
        %v3474 = vadd.f32 0.0, %v3473
        %v3475 = vpop.f32.mrf.mxu0
        %3476 = vmatprep.mubr.bf16.mxu0 0
        %3477 = vmatmul.mubr.bf16.gmra.mxu0 %v3329
        %v3478 = vpop.f32.mrf.mxu0
        %v3479 = vadd.f32 0.0, %v3478
        %v3480 = vpop.f32.mrf.mxu0
        %v3481 = vpop.f32.mrf.mxu0
        %v3482 = vadd.f32 0.0, %v3481
        %v3483 = vpop.f32.mrf.mxu0
        %3484 = vmatprep.mubr.bf16.mxu0 0
        %3485 = vmatmul.mubr.bf16.gmra.mxu0 %v3332
        %v3486 = vpop.f32.mrf.mxu0
        %v3487 = vadd.f32 0.0, %v3486
        %v3488 = vpop.f32.mrf.mxu0
        %v3489 = vpop.f32.mrf.mxu0
        %v3490 = vadd.f32 0.0, %v3489
        %v3491 = vpop.f32.mrf.mxu0
        %3492 = vmatprep.mubr.bf16.mxu0 0
        %3493 = vmatmul.mubr.bf16.gmra.mxu0 %v3335
        %v3494 = vpop.f32.mrf.mxu0
        %v3495 = vadd.f32 0.0, %v3494
        %v3496 = vpop.f32.mrf.mxu0
        %v3497 = vpop.f32.mrf.mxu0
        %v3498 = vadd.f32 0.0, %v3497
        %v3499 = vpop.f32.mrf.mxu0
        %3500 = vdwg.mxu0
        %v3501 = vadd.f32 %v3139, %v3375
        %v3502 = vadd.f32 %v3140, %v3378
        %v3503 = vadd.f32 %v3141, %v3383
        %v3504 = vadd.f32 %v3142, %v3386
        %v3505 = vadd.f32 %v3143, %v3391
        %v3506 = vadd.f32 %v3144, %v3394
        %v3507 = vadd.f32 %v3145, %v3399
        %v3508 = vadd.f32 %v3146, %v3402
        %v3509 = vadd.f32 %v3147, %v3407
        %v3510 = vadd.f32 %v3148, %v3410
        %v3511 = vadd.f32 %v3149, %v3415
        %v3512 = vadd.f32 %v3150, %v3418
        %v3513 = vadd.f32 %v3151, %v3423
        %v3514 = vadd.f32 %v3152, %v3426
        %v3515 = vadd.f32 %v3153, %v3431
        %v3516 = vadd.f32 %v3154, %v3434
        %v3517 = vadd.f32 %v3155, %v3439
        %v3518 = vadd.f32 %v3156, %v3442
        %v3519 = vadd.f32 %v3157, %v3447
        %v3520 = vadd.f32 %v3158, %v3450
        %v3521 = vadd.f32 %v3159, %v3455
        %v3522 = vadd.f32 %v3160, %v3458
        %v3523 = vadd.f32 %v3161, %v3463
        %v3524 = vadd.f32 %v3162, %v3466
        %v3525 = vadd.f32 %v3163, %v3471
        %v3526 = vadd.f32 %v3164, %v3474
        %v3527 = vadd.f32 %v3165, %v3479
        %v3528 = vadd.f32 %v3166, %v3482
        %v3529 = vadd.f32 %v3167, %v3487
        %v3530 = vadd.f32 %v3168, %v3490
        %v3531 = vadd.f32 %v3169, %v3495
        %v3532 = vadd.f32 %v3170, %v3498
        %v3533 = vld [vmem:[%s3174] sm:$0xf]
        %v3534 = vld [vmem:[%s3174 + $0x4] sm:$0xf]
        %v3535 = vld [vmem:[%s3174 + $0x8] sm:$0x1]
        %v3536 = vld [vmem:[%s3174 + $0xc] sm:$0xf]
        %v3537 = vld [vmem:[%s3174 + $0x10] sm:$0xf]
        %v3538 = vld [vmem:[%s3174 + $0x14] sm:$0x1]
        %v3539 = vld [vmem:[%s3174 + $0x18] sm:$0xf]
        %v3540 = vld [vmem:[%s3174 + $0x1c] sm:$0xf]
        %v3541 = vld [vmem:[%s3174 + $0x20] sm:$0x1]
        %v3542 = vld [vmem:[%s3174 + $0x24] sm:$0xf]
        %v3543 = vld [vmem:[%s3174 + $0x28] sm:$0xf]
        %v3544 = vld [vmem:[%s3174 + $0x2c] sm:$0x1]
        %v3545 = vld [vmem:[%s3174 + $0x30] sm:$0xf]
        %v3546 = vld [vmem:[%s3174 + $0x34] sm:$0xf]
        %v3547 = vld [vmem:[%s3174 + $0x38] sm:$0x1]
        %v3548 = vld [vmem:[%s3174 + $0x3c] sm:$0xf]
        %v3549 = vld [vmem:[%s3174 + $0x40] sm:$0xf]
        %v3550 = vld [vmem:[%s3174 + $0x44] sm:$0x1]
        %v3551 = vld [vmem:[%s3174 + $0x48] sm:$0xf]
        %v3552 = vld [vmem:[%s3174 + $0x4c] sm:$0xf]
        %v3553 = vld [vmem:[%s3174 + $0x50] sm:$0x1]
        %v3554 = vld [vmem:[%s3174 + $0x54] sm:$0xf]
        %v3555 = vld [vmem:[%s3174 + $0x58] sm:$0xf]
        %v3556 = vld [vmem:[%s3174 + $0x5c] sm:$0x1]
        %v3557 = vld [vmem:[%s3174 + $0x60] sm:$0xf]
        %v3558 = vld [vmem:[%s3174 + $0x64] sm:$0xf]
        %v3559 = vld [vmem:[%s3174 + $0x68] sm:$0x1]
        %v3560 = vld [vmem:[%s3174 + $0x6c] sm:$0xf]
        %v3561 = vld [vmem:[%s3174 + $0x70] sm:$0xf]
        %v3562 = vld [vmem:[%s3174 + $0x74] sm:$0x1]
        %v3563 = vld [vmem:[%s3174 + $0x78] sm:$0xf]
        %v3564 = vld [vmem:[%s3174 + $0x7c] sm:$0xf]
        %v3565 = vld [vmem:[%s3174 + $0x80] sm:$0x1]
        %v3566 = vld [vmem:[%s3174 + $0x84] sm:$0xf]
        %v3567 = vld [vmem:[%s3174 + $0x88] sm:$0xf]
        %v3568 = vld [vmem:[%s3174 + $0x8c] sm:$0x1]
        %v3569 = vld [vmem:[%s3174 + $0x90] sm:$0xf]
        %v3570 = vld [vmem:[%s3174 + $0x94] sm:$0xf]
        %v3571 = vld [vmem:[%s3174 + $0x98] sm:$0x1]
        %v3572 = vld [vmem:[%s3174 + $0x9c] sm:$0xf]
        %v3573 = vld [vmem:[%s3174 + $0xa0] sm:$0xf]
        %v3574 = vld [vmem:[%s3174 + $0xa4] sm:$0x1]
        %v3575 = vld [vmem:[%s3174 + $0xa8] sm:$0xf]
        %v3576 = vld [vmem:[%s3174 + $0xac] sm:$0xf]
        %v3577 = vld [vmem:[%s3174 + $0xb0] sm:$0x1]
        %v3578 = vld [vmem:[%s3174 + $0xb4] sm:$0xf]
        %v3579 = vld [vmem:[%s3174 + $0xb8] sm:$0xf]
        %v3580 = vld [vmem:[%s3174 + $0xbc] sm:$0x1]
        %v3582 = vshrl.u32 %v3533, 16
        %v3584 = vrot.slane %v3582, 4
        %v3585 = vshll.u32 %v3533, 16
        %v3587 = vrot.slane %v3585, 5
        %v3588 = vor.u32 %v3584, %v3587
        %v3589 = vrot.slane %v3588, 4
        %v3591 = vshll.u32 %v3534, 16
        %v3593 = vrot.slane %v3591, 5
        %v3594 = vsel %vm215, %v3589, %v3593
        %v3595 = vshrl.u32 %v3534, 16
        %v3597 = vrot.slane %v3595, 4
        %v3598 = vor.u32 %v3597, %v3593
        %v3599 = vrot.slane %v3598, 4
        %v3601 = vshll.u32 %v3535, 16
        %v3603 = vrot.slane %v3601, 5
        %v3604 = vsel %vm215, %v3599, %v3603
        %v3606 = vshrl.u32 %v3536, 16
        %v3608 = vrot.slane %v3606, 4
        %v3609 = vshll.u32 %v3536, 16
        %v3611 = vrot.slane %v3609, 5
        %v3612 = vor.u32 %v3608, %v3611
        %v3613 = vrot.slane %v3612, 4
        %v3615 = vshll.u32 %v3537, 16
        %v3617 = vrot.slane %v3615, 5
        %v3618 = vsel %vm215, %v3613, %v3617
        %v3619 = vshrl.u32 %v3537, 16
        %v3621 = vrot.slane %v3619, 4
        %v3622 = vor.u32 %v3621, %v3617
        %v3623 = vrot.slane %v3622, 4
        %v3625 = vshll.u32 %v3538, 16
        %v3627 = vrot.slane %v3625, 5
        %v3628 = vsel %vm215, %v3623, %v3627
        %v3630 = vshrl.u32 %v3539, 16
        %v3632 = vrot.slane %v3630, 4
        %v3633 = vshll.u32 %v3539, 16
        %v3635 = vrot.slane %v3633, 5
        %v3636 = vor.u32 %v3632, %v3635
        %v3637 = vrot.slane %v3636, 4
        %v3639 = vshll.u32 %v3540, 16
        %v3641 = vrot.slane %v3639, 5
        %v3642 = vsel %vm215, %v3637, %v3641
        %v3643 = vshrl.u32 %v3540, 16
        %v3645 = vrot.slane %v3643, 4
        %v3646 = vor.u32 %v3645, %v3641
        %v3647 = vrot.slane %v3646, 4
        %v3649 = vshll.u32 %v3541, 16
        %v3651 = vrot.slane %v3649, 5
        %v3652 = vsel %vm215, %v3647, %v3651
        %v3654 = vshrl.u32 %v3542, 16
        %v3656 = vrot.slane %v3654, 4
        %v3657 = vshll.u32 %v3542, 16
        %v3659 = vrot.slane %v3657, 5
        %v3660 = vor.u32 %v3656, %v3659
        %v3661 = vrot.slane %v3660, 4
        %v3663 = vshll.u32 %v3543, 16
        %v3665 = vrot.slane %v3663, 5
        %v3666 = vsel %vm215, %v3661, %v3665
        %v3667 = vshrl.u32 %v3543, 16
        %v3669 = vrot.slane %v3667, 4
        %v3670 = vor.u32 %v3669, %v3665
        %v3671 = vrot.slane %v3670, 4
        %v3673 = vshll.u32 %v3544, 16
        %v3675 = vrot.slane %v3673, 5
        %v3676 = vsel %vm215, %v3671, %v3675
        %v3678 = vshrl.u32 %v3545, 16
        %v3680 = vrot.slane %v3678, 4
        %v3681 = vshll.u32 %v3545, 16
        %v3683 = vrot.slane %v3681, 5
        %v3684 = vor.u32 %v3680, %v3683
        %v3685 = vrot.slane %v3684, 4
        %v3687 = vshll.u32 %v3546, 16
        %v3689 = vrot.slane %v3687, 5
        %v3690 = vsel %vm215, %v3685, %v3689
        %v3691 = vshrl.u32 %v3546, 16
        %v3693 = vrot.slane %v3691, 4
        %v3694 = vor.u32 %v3693, %v3689
        %v3695 = vrot.slane %v3694, 4
        %v3697 = vshll.u32 %v3547, 16
        %v3699 = vrot.slane %v3697, 5
        %v3700 = vsel %vm215, %v3695, %v3699
        %v3702 = vshrl.u32 %v3548, 16
        %v3704 = vrot.slane %v3702, 4
        %v3705 = vshll.u32 %v3548, 16
        %v3707 = vrot.slane %v3705, 5
        %v3708 = vor.u32 %v3704, %v3707
        %v3709 = vrot.slane %v3708, 4
        %v3711 = vshll.u32 %v3549, 16
        %v3713 = vrot.slane %v3711, 5
        %v3714 = vsel %vm215, %v3709, %v3713
        %v3715 = vshrl.u32 %v3549, 16
        %v3717 = vrot.slane %v3715, 4
        %v3718 = vor.u32 %v3717, %v3713
        %v3719 = vrot.slane %v3718, 4
        %v3721 = vshll.u32 %v3550, 16
        %v3723 = vrot.slane %v3721, 5
        %v3724 = vsel %vm215, %v3719, %v3723
        %v3726 = vshrl.u32 %v3551, 16
        %v3728 = vrot.slane %v3726, 4
        %v3729 = vshll.u32 %v3551, 16
        %v3731 = vrot.slane %v3729, 5
        %v3732 = vor.u32 %v3728, %v3731
        %v3733 = vrot.slane %v3732, 4
        %v3735 = vshll.u32 %v3552, 16
        %v3737 = vrot.slane %v3735, 5
        %v3738 = vsel %vm215, %v3733, %v3737
        %v3739 = vshrl.u32 %v3552, 16
        %v3741 = vrot.slane %v3739, 4
        %v3742 = vor.u32 %v3741, %v3737
        %v3743 = vrot.slane %v3742, 4
        %v3745 = vshll.u32 %v3553, 16
        %v3747 = vrot.slane %v3745, 5
        %v3748 = vsel %vm215, %v3743, %v3747
        %v3750 = vshrl.u32 %v3554, 16
        %v3752 = vrot.slane %v3750, 4
        %v3753 = vshll.u32 %v3554, 16
        %v3755 = vrot.slane %v3753, 5
        %v3756 = vor.u32 %v3752, %v3755
        %v3757 = vrot.slane %v3756, 4
        %v3759 = vshll.u32 %v3555, 16
        %v3761 = vrot.slane %v3759, 5
        %v3762 = vsel %vm215, %v3757, %v3761
        %v3763 = vshrl.u32 %v3555, 16
        %v3765 = vrot.slane %v3763, 4
        %v3766 = vor.u32 %v3765, %v3761
        %v3767 = vrot.slane %v3766, 4
        %v3769 = vshll.u32 %v3556, 16
        %v3771 = vrot.slane %v3769, 5
        %v3772 = vsel %vm215, %v3767, %v3771
        %v3774 = vshrl.u32 %v3557, 16
        %v3776 = vrot.slane %v3774, 4
        %v3777 = vshll.u32 %v3557, 16
        %v3779 = vrot.slane %v3777, 5
        %v3780 = vor.u32 %v3776, %v3779
        %v3781 = vrot.slane %v3780, 4
        %v3783 = vshll.u32 %v3558, 16
        %v3785 = vrot.slane %v3783, 5
        %v3786 = vsel %vm215, %v3781, %v3785
        %v3787 = vshrl.u32 %v3558, 16
        %v3789 = vrot.slane %v3787, 4
        %v3790 = vor.u32 %v3789, %v3785
        %v3791 = vrot.slane %v3790, 4
        %v3793 = vshll.u32 %v3559, 16
        %v3795 = vrot.slane %v3793, 5
        %v3796 = vsel %vm215, %v3791, %v3795
        %v3798 = vshrl.u32 %v3560, 16
        %v3800 = vrot.slane %v3798, 4
        %v3801 = vshll.u32 %v3560, 16
        %v3803 = vrot.slane %v3801, 5
        %v3804 = vor.u32 %v3800, %v3803
        %v3805 = vrot.slane %v3804, 4
        %v3807 = vshll.u32 %v3561, 16
        %v3809 = vrot.slane %v3807, 5
        %v3810 = vsel %vm215, %v3805, %v3809
        %v3811 = vshrl.u32 %v3561, 16
        %v3813 = vrot.slane %v3811, 4
        %v3814 = vor.u32 %v3813, %v3809
        %v3815 = vrot.slane %v3814, 4
        %v3817 = vshll.u32 %v3562, 16
        %v3819 = vrot.slane %v3817, 5
        %v3820 = vsel %vm215, %v3815, %v3819
        %v3822 = vshrl.u32 %v3563, 16
        %v3824 = vrot.slane %v3822, 4
        %v3825 = vshll.u32 %v3563, 16
        %v3827 = vrot.slane %v3825, 5
        %v3828 = vor.u32 %v3824, %v3827
        %v3829 = vrot.slane %v3828, 4
        %v3831 = vshll.u32 %v3564, 16
        %v3833 = vrot.slane %v3831, 5
        %v3834 = vsel %vm215, %v3829, %v3833
        %v3835 = vshrl.u32 %v3564, 16
        %v3837 = vrot.slane %v3835, 4
        %v3838 = vor.u32 %v3837, %v3833
        %v3839 = vrot.slane %v3838, 4
        %v3841 = vshll.u32 %v3565, 16
        %v3843 = vrot.slane %v3841, 5
        %v3844 = vsel %vm215, %v3839, %v3843
        %v3846 = vshrl.u32 %v3566, 16
        %v3848 = vrot.slane %v3846, 4
        %v3849 = vshll.u32 %v3566, 16
        %v3851 = vrot.slane %v3849, 5
        %v3852 = vor.u32 %v3848, %v3851
        %v3853 = vrot.slane %v3852, 4
        %v3855 = vshll.u32 %v3567, 16
        %v3857 = vrot.slane %v3855, 5
        %v3858 = vsel %vm215, %v3853, %v3857
        %v3859 = vshrl.u32 %v3567, 16
        %v3861 = vrot.slane %v3859, 4
        %v3862 = vor.u32 %v3861, %v3857
        %v3863 = vrot.slane %v3862, 4
        %v3865 = vshll.u32 %v3568, 16
        %v3867 = vrot.slane %v3865, 5
        %v3868 = vsel %vm215, %v3863, %v3867
        %v3870 = vshrl.u32 %v3569, 16
        %v3872 = vrot.slane %v3870, 4
        %v3873 = vshll.u32 %v3569, 16
        %v3875 = vrot.slane %v3873, 5
        %v3876 = vor.u32 %v3872, %v3875
        %v3877 = vrot.slane %v3876, 4
        %v3879 = vshll.u32 %v3570, 16
        %v3881 = vrot.slane %v3879, 5
        %v3882 = vsel %vm215, %v3877, %v3881
        %v3883 = vshrl.u32 %v3570, 16
        %v3885 = vrot.slane %v3883, 4
        %v3886 = vor.u32 %v3885, %v3881
        %v3887 = vrot.slane %v3886, 4
        %v3889 = vshll.u32 %v3571, 16
        %v3891 = vrot.slane %v3889, 5
        %v3892 = vsel %vm215, %v3887, %v3891
        %v3894 = vshrl.u32 %v3572, 16
        %v3896 = vrot.slane %v3894, 4
        %v3897 = vshll.u32 %v3572, 16
        %v3899 = vrot.slane %v3897, 5
        %v3900 = vor.u32 %v3896, %v3899
        %v3901 = vrot.slane %v3900, 4
        %v3903 = vshll.u32 %v3573, 16
        %v3905 = vrot.slane %v3903, 5
        %v3906 = vsel %vm215, %v3901, %v3905
        %v3907 = vshrl.u32 %v3573, 16
        %v3909 = vrot.slane %v3907, 4
        %v3910 = vor.u32 %v3909, %v3905
        %v3911 = vrot.slane %v3910, 4
        %v3913 = vshll.u32 %v3574, 16
        %v3915 = vrot.slane %v3913, 5
        %v3916 = vsel %vm215, %v3911, %v3915
        %v3918 = vshrl.u32 %v3575, 16
        %v3920 = vrot.slane %v3918, 4
        %v3921 = vshll.u32 %v3575, 16
        %v3923 = vrot.slane %v3921, 5
        %v3924 = vor.u32 %v3920, %v3923
        %v3925 = vrot.slane %v3924, 4
        %v3927 = vshll.u32 %v3576, 16
        %v3929 = vrot.slane %v3927, 5
        %v3930 = vsel %vm215, %v3925, %v3929
        %v3931 = vshrl.u32 %v3576, 16
        %v3933 = vrot.slane %v3931, 4
        %v3934 = vor.u32 %v3933, %v3929
        %v3935 = vrot.slane %v3934, 4
        %v3937 = vshll.u32 %v3577, 16
        %v3939 = vrot.slane %v3937, 5
        %v3940 = vsel %vm215, %v3935, %v3939
        %v3942 = vshrl.u32 %v3578, 16
        %v3944 = vrot.slane %v3942, 4
        %v3945 = vshll.u32 %v3578, 16
        %v3947 = vrot.slane %v3945, 5
        %v3948 = vor.u32 %v3944, %v3947
        %v3949 = vrot.slane %v3948, 4
        %v3951 = vshll.u32 %v3579, 16
        %v3953 = vrot.slane %v3951, 5
        %v3954 = vsel %vm215, %v3949, %v3953
        %v3955 = vshrl.u32 %v3579, 16
        %v3957 = vrot.slane %v3955, 4
        %v3958 = vor.u32 %v3957, %v3953
        %v3959 = vrot.slane %v3958, 4
        %v3961 = vshll.u32 %v3580, 16
        %v3963 = vrot.slane %v3961, 5
        %v3964 = vsel %vm215, %v3959, %v3963
        %s3965 = scalar_lea.vmem %s1, 14
        %v3966 = vld [vmem:[%s3965] sm:$0x3]
        %v3967 = vunpack.c.l.b16 %v3594
        %v3968 = vunpack.c.l.b16 %v3604
        %v3969 = vunpack.c.l.b16 %v3618
        %v3970 = vunpack.c.l.b16 %v3628
        %v3971 = vunpack.c.l.b16 %v3642
        %v3972 = vunpack.c.l.b16 %v3652
        %v3973 = vunpack.c.l.b16 %v3666
        %v3974 = vunpack.c.l.b16 %v3676
        %v3975 = vunpack.c.l.b16 %v3690
        %v3976 = vunpack.c.l.b16 %v3700
        %v3977 = vunpack.c.l.b16 %v3714
        %v3978 = vunpack.c.l.b16 %v3724
        %v3979 = vunpack.c.l.b16 %v3738
        %v3980 = vunpack.c.l.b16 %v3748
        %v3981 = vunpack.c.l.b16 %v3762
        %v3982 = vunpack.c.l.b16 %v3772
        %v3983 = vunpack.c.l.b16 %v3786
        %v3984 = vunpack.c.l.b16 %v3796
        %v3985 = vunpack.c.l.b16 %v3810
        %v3986 = vunpack.c.l.b16 %v3820
        %v3987 = vunpack.c.l.b16 %v3834
        %v3988 = vunpack.c.l.b16 %v3844
        %v3989 = vunpack.c.l.b16 %v3858
        %v3990 = vunpack.c.l.b16 %v3868
        %v3991 = vunpack.c.l.b16 %v3882
        %v3992 = vunpack.c.l.b16 %v3892
        %v3993 = vunpack.c.l.b16 %v3906
        %v3994 = vunpack.c.l.b16 %v3916
        %v3995 = vunpack.c.l.b16 %v3930
        %v3996 = vunpack.c.l.b16 %v3940
        %v3997 = vunpack.c.l.b16 %v3954
        %v3998 = vunpack.c.l.b16 %v3964
        %v3999 = vpack.c.b16 %v3968, %v3967
        %v4000 = vpack.c.b16 %v3970, %v3969
        %v4001 = vpack.c.b16 %v3972, %v3971
        %v4002 = vpack.c.b16 %v3974, %v3973
        %v4003 = vpack.c.b16 %v3976, %v3975
        %v4004 = vpack.c.b16 %v3978, %v3977
        %v4005 = vpack.c.b16 %v3980, %v3979
        %v4006 = vpack.c.b16 %v3982, %v3981
        %v4007 = vpack.c.b16 %v3984, %v3983
        %v4008 = vpack.c.b16 %v3986, %v3985
        %v4009 = vpack.c.b16 %v3988, %v3987
        %v4010 = vpack.c.b16 %v3990, %v3989
        %v4011 = vpack.c.b16 %v3992, %v3991
        %v4012 = vpack.c.b16 %v3994, %v3993
        %v4013 = vpack.c.b16 %v3996, %v3995
        %v4014 = vpack.c.b16 %v3998, %v3997
        %v4016 = vsel %vm650, %v3999, 0
        %v4019 = vsel %vm650, %v4000, 0
        %v4022 = vsel %vm650, %v4001, 0
        %v4025 = vsel %vm650, %v4002, 0
        %v4028 = vsel %vm650, %v4003, 0
        %v4031 = vsel %vm650, %v4004, 0
        %v4034 = vsel %vm650, %v4005, 0
        %v4037 = vsel %vm650, %v4006, 0
        %v4040 = vsel %vm650, %v4007, 0
        %v4043 = vsel %vm650, %v4008, 0
        %v4046 = vsel %vm650, %v4009, 0
        %v4049 = vsel %vm650, %v4010, 0
        %v4052 = vsel %vm650, %v4011, 0
        %v4055 = vsel %vm650, %v4012, 0
        %v4058 = vsel %vm650, %v4013, 0
        %v4061 = vsel %vm650, %v4014, 0
        %v4064 = vsel %vm699, %v3966, 0
        %4066 = vmatprep.subr.bf16.mxu0 0
        %4067 = vmatpush1.bf16.msra.mxu0 0
        %4068 = vmatprep.subr.bf16.mxu0 0
        %4069 = vmatpush1.bf16.msra.mxu0 0
        %4070 = vmatprep.subr.bf16.mxu0 0
        %4071 = vmatpush1.bf16.msra.mxu0 0
        %4072 = vmatprep.subr.bf16.mxu0 0
        %4073 = vmatpush1.bf16.msra.mxu0 0
        %4074 = vmatprep.subr.bf16.mxu0 0
        %4075 = vmatpush1.bf16.msra.mxu0 0
        %4076 = vmatprep.subr.bf16.mxu0 0
        %4077 = vmatpush1.bf16.msra.mxu0 0
        %4078 = vmatprep.subr.bf16.mxu0 0
        %4079 = vmatpush1.bf16.msra.mxu0 0
        %4080 = vmatprep.subr.bf16.mxu0 0
        %4081 = vmatpush1.bf16.msra.mxu0 %v4064
        %4082 = vmatprep.subr.bf16.mxu0 0
        %4083 = vmatpush2.bf16.msra.mxu0 0
        %4084 = vmatprep.subr.bf16.mxu0 0
        %4085 = vmatpush2.bf16.msra.mxu0 0
        %4086 = vmatprep.subr.bf16.mxu0 0
        %4087 = vmatpush2.bf16.msra.mxu0 0
        %4088 = vmatprep.subr.bf16.mxu0 0
        %4089 = vmatpush2.bf16.msra.mxu0 0
        %4090 = vmatprep.subr.bf16.mxu0 0
        %4091 = vmatpush2.bf16.msra.mxu0 0
        %4092 = vmatprep.subr.bf16.mxu0 0
        %4093 = vmatpush2.bf16.msra.mxu0 0
        %4094 = vmatprep.subr.bf16.mxu0 0
        %4095 = vmatpush2.bf16.msra.mxu0 0
        %4096 = vmatprep.subr.bf16.mxu0 0
        %4097 = vmatpush2.bf16.msra.mxu0 0
        %4098 = vmatprep.mubr.bf16.mxu0 0
        %4099 = vmatmul.mubr.bf16.gmra.mxu0 %v4016
        %v4100 = vpop.f32.mrf.mxu0
        %v4101 = vadd.f32 0.0, %v4100
        %v4102 = vpop.f32.mrf.mxu0
        %v4103 = vpop.f32.mrf.mxu0
        %v4104 = vadd.f32 0.0, %v4103
        %v4105 = vpop.f32.mrf.mxu0
        %4106 = vmatprep.mubr.bf16.mxu0 0
        %4107 = vmatmul.mubr.bf16.gmra.mxu0 %v4019
        %v4108 = vpop.f32.mrf.mxu0
        %v4109 = vadd.f32 0.0, %v4108
        %v4110 = vpop.f32.mrf.mxu0
        %v4111 = vpop.f32.mrf.mxu0
        %v4112 = vadd.f32 0.0, %v4111
        %v4113 = vpop.f32.mrf.mxu0
        %4114 = vmatprep.mubr.bf16.mxu0 0
        %4115 = vmatmul.mubr.bf16.gmra.mxu0 %v4022
        %v4116 = vpop.f32.mrf.mxu0
        %v4117 = vadd.f32 0.0, %v4116
        %v4118 = vpop.f32.mrf.mxu0
        %v4119 = vpop.f32.mrf.mxu0
        %v4120 = vadd.f32 0.0, %v4119
        %v4121 = vpop.f32.mrf.mxu0
        %4122 = vmatprep.mubr.bf16.mxu0 0
        %4123 = vmatmul.mubr.bf16.gmra.mxu0 %v4025
        %v4124 = vpop.f32.mrf.mxu0
        %v4125 = vadd.f32 0.0, %v4124
        %v4126 = vpop.f32.mrf.mxu0
        %v4127 = vpop.f32.mrf.mxu0
        %v4128 = vadd.f32 0.0, %v4127
        %v4129 = vpop.f32.mrf.mxu0
        %4130 = vmatprep.mubr.bf16.mxu0 0
        %4131 = vmatmul.mubr.bf16.gmra.mxu0 %v4028
        %v4132 = vpop.f32.mrf.mxu0
        %v4133 = vadd.f32 0.0, %v4132
        %v4134 = vpop.f32.mrf.mxu0
        %v4135 = vpop.f32.mrf.mxu0
        %v4136 = vadd.f32 0.0, %v4135
        %v4137 = vpop.f32.mrf.mxu0
        %4138 = vmatprep.mubr.bf16.mxu0 0
        %4139 = vmatmul.mubr.bf16.gmra.mxu0 %v4031
        %v4140 = vpop.f32.mrf.mxu0
        %v4141 = vadd.f32 0.0, %v4140
        %v4142 = vpop.f32.mrf.mxu0
        %v4143 = vpop.f32.mrf.mxu0
        %v4144 = vadd.f32 0.0, %v4143
        %v4145 = vpop.f32.mrf.mxu0
        %4146 = vmatprep.mubr.bf16.mxu0 0
        %4147 = vmatmul.mubr.bf16.gmra.mxu0 %v4034
        %v4148 = vpop.f32.mrf.mxu0
        %v4149 = vadd.f32 0.0, %v4148
        %v4150 = vpop.f32.mrf.mxu0
        %v4151 = vpop.f32.mrf.mxu0
        %v4152 = vadd.f32 0.0, %v4151
        %v4153 = vpop.f32.mrf.mxu0
        %4154 = vmatprep.mubr.bf16.mxu0 0
        %4155 = vmatmul.mubr.bf16.gmra.mxu0 %v4037
        %v4156 = vpop.f32.mrf.mxu0
        %v4157 = vadd.f32 0.0, %v4156
        %v4158 = vpop.f32.mrf.mxu0
        %v4159 = vpop.f32.mrf.mxu0
        %v4160 = vadd.f32 0.0, %v4159
        %v4161 = vpop.f32.mrf.mxu0
        %4162 = vmatprep.mubr.bf16.mxu0 0
        %4163 = vmatmul.mubr.bf16.gmra.mxu0 %v4040
        %v4164 = vpop.f32.mrf.mxu0
        %v4165 = vadd.f32 0.0, %v4164
        %v4166 = vpop.f32.mrf.mxu0
        %v4167 = vpop.f32.mrf.mxu0
        %v4168 = vadd.f32 0.0, %v4167
        %v4169 = vpop.f32.mrf.mxu0
        %4170 = vmatprep.mubr.bf16.mxu0 0
        %4171 = vmatmul.mubr.bf16.gmra.mxu0 %v4043
        %v4172 = vpop.f32.mrf.mxu0
        %v4173 = vadd.f32 0.0, %v4172
        %v4174 = vpop.f32.mrf.mxu0
        %v4175 = vpop.f32.mrf.mxu0
        %v4176 = vadd.f32 0.0, %v4175
        %v4177 = vpop.f32.mrf.mxu0
        %4178 = vmatprep.mubr.bf16.mxu0 0
        %4179 = vmatmul.mubr.bf16.gmra.mxu0 %v4046
        %v4180 = vpop.f32.mrf.mxu0
        %v4181 = vadd.f32 0.0, %v4180
        %v4182 = vpop.f32.mrf.mxu0
        %v4183 = vpop.f32.mrf.mxu0
        %v4184 = vadd.f32 0.0, %v4183
        %v4185 = vpop.f32.mrf.mxu0
        %4186 = vmatprep.mubr.bf16.mxu0 0
        %4187 = vmatmul.mubr.bf16.gmra.mxu0 %v4049
        %v4188 = vpop.f32.mrf.mxu0
        %v4189 = vadd.f32 0.0, %v4188
        %v4190 = vpop.f32.mrf.mxu0
        %v4191 = vpop.f32.mrf.mxu0
        %v4192 = vadd.f32 0.0, %v4191
        %v4193 = vpop.f32.mrf.mxu0
        %4194 = vmatprep.mubr.bf16.mxu0 0
        %4195 = vmatmul.mubr.bf16.gmra.mxu0 %v4052
        %v4196 = vpop.f32.mrf.mxu0
        %v4197 = vadd.f32 0.0, %v4196
        %v4198 = vpop.f32.mrf.mxu0
        %v4199 = vpop.f32.mrf.mxu0
        %v4200 = vadd.f32 0.0, %v4199
        %v4201 = vpop.f32.mrf.mxu0
        %4202 = vmatprep.mubr.bf16.mxu0 0
        %4203 = vmatmul.mubr.bf16.gmra.mxu0 %v4055
        %v4204 = vpop.f32.mrf.mxu0
        %v4205 = vadd.f32 0.0, %v4204
        %v4206 = vpop.f32.mrf.mxu0
        %v4207 = vpop.f32.mrf.mxu0
        %v4208 = vadd.f32 0.0, %v4207
        %v4209 = vpop.f32.mrf.mxu0
        %4210 = vmatprep.mubr.bf16.mxu0 0
        %4211 = vmatmul.mubr.bf16.gmra.mxu0 %v4058
        %v4212 = vpop.f32.mrf.mxu0
        %v4213 = vadd.f32 0.0, %v4212
        %v4214 = vpop.f32.mrf.mxu0
        %v4215 = vpop.f32.mrf.mxu0
        %v4216 = vadd.f32 0.0, %v4215
        %v4217 = vpop.f32.mrf.mxu0
        %4218 = vmatprep.mubr.bf16.mxu0 0
        %4219 = vmatmul.mubr.bf16.gmra.mxu0 %v4061
        %v4220 = vpop.f32.mrf.mxu0
        %v4221 = vadd.f32 0.0, %v4220
        %v4222 = vpop.f32.mrf.mxu0
        %v4223 = vpop.f32.mrf.mxu0
        %v4224 = vadd.f32 0.0, %v4223
        %v4225 = vpop.f32.mrf.mxu0
        %4226 = vdwg.mxu0
        %v4227 = vadd.f32 %v3501, %v4101
        %v4228 = vadd.f32 %v3502, %v4104
        %v4229 = vadd.f32 %v3503, %v4109
        %v4230 = vadd.f32 %v3504, %v4112
        %v4231 = vadd.f32 %v3505, %v4117
        %v4232 = vadd.f32 %v3506, %v4120
        %v4233 = vadd.f32 %v3507, %v4125
        %v4234 = vadd.f32 %v3508, %v4128
        %v4235 = vadd.f32 %v3509, %v4133
        %v4236 = vadd.f32 %v3510, %v4136
        %v4237 = vadd.f32 %v3511, %v4141
        %v4238 = vadd.f32 %v3512, %v4144
        %v4239 = vadd.f32 %v3513, %v4149
        %v4240 = vadd.f32 %v3514, %v4152
        %v4241 = vadd.f32 %v3515, %v4157
        %v4242 = vadd.f32 %v3516, %v4160
        %v4243 = vadd.f32 %v3517, %v4165
        %v4244 = vadd.f32 %v3518, %v4168
        %v4245 = vadd.f32 %v3519, %v4173
        %v4246 = vadd.f32 %v3520, %v4176
        %v4247 = vadd.f32 %v3521, %v4181
        %v4248 = vadd.f32 %v3522, %v4184
        %v4249 = vadd.f32 %v3523, %v4189
        %v4250 = vadd.f32 %v3524, %v4192
        %v4251 = vadd.f32 %v3525, %v4197
        %v4252 = vadd.f32 %v3526, %v4200
        %v4253 = vadd.f32 %v3527, %v4205
        %v4254 = vadd.f32 %v3528, %v4208
        %v4255 = vadd.f32 %v3529, %v4213
        %v4256 = vadd.f32 %v3530, %v4216
        %v4257 = vadd.f32 %v3531, %v4221
        %v4258 = vadd.f32 %v3532, %v4224
        %v4259 = vld [vmem:[%s3174] sm:$0xe]
        %v4260 = vld [vmem:[%s3174 + $0xc] sm:$0xe]
        %v4261 = vld [vmem:[%s3174 + $0x18] sm:$0xe]
        %v4262 = vld [vmem:[%s3174 + $0x24] sm:$0xe]
        %v4263 = vld [vmem:[%s3174 + $0x30] sm:$0xe]
        %v4264 = vld [vmem:[%s3174 + $0x3c] sm:$0xe]
        %v4265 = vld [vmem:[%s3174 + $0x48] sm:$0xe]
        %v4266 = vld [vmem:[%s3174 + $0x54] sm:$0xe]
        %v4267 = vld [vmem:[%s3174 + $0x60] sm:$0xe]
        %v4268 = vld [vmem:[%s3174 + $0x6c] sm:$0xe]
        %v4269 = vld [vmem:[%s3174 + $0x78] sm:$0xe]
        %v4270 = vld [vmem:[%s3174 + $0x84] sm:$0xe]
        %v4271 = vld [vmem:[%s3174 + $0x90] sm:$0xe]
        %v4272 = vld [vmem:[%s3174 + $0x9c] sm:$0xe]
        %v4273 = vld [vmem:[%s3174 + $0xa8] sm:$0xe]
        %v4274 = vld [vmem:[%s3174 + $0xb4] sm:$0xe]
        %v4323 = vrot.slane %v4259, 5
        %v4324 = vrot.slane %v4323, 4
        %v4325 = vrot.slane %v3534, 5
        %v4326 = vsel %vm1206, %v4324, %v4325
        %v4327 = vrot.slane %v4325, 4
        %v4328 = vrot.slane %v3535, 5
        %v4329 = vsel %vm1206, %v4327, %v4328
        %v4330 = vrot.slane %v4260, 5
        %v4331 = vrot.slane %v4330, 4
        %v4332 = vrot.slane %v3537, 5
        %v4333 = vsel %vm1206, %v4331, %v4332
        %v4334 = vrot.slane %v4332, 4
        %v4335 = vrot.slane %v3538, 5
        %v4336 = vsel %vm1206, %v4334, %v4335
        %v4337 = vrot.slane %v4261, 5
        %v4338 = vrot.slane %v4337, 4
        %v4339 = vrot.slane %v3540, 5
        %v4340 = vsel %vm1206, %v4338, %v4339
        %v4341 = vrot.slane %v4339, 4
        %v4342 = vrot.slane %v3541, 5
        %v4343 = vsel %vm1206, %v4341, %v4342
        %v4344 = vrot.slane %v4262, 5
        %v4345 = vrot.slane %v4344, 4
        %v4346 = vrot.slane %v3543, 5
        %v4347 = vsel %vm1206, %v4345, %v4346
        %v4348 = vrot.slane %v4346, 4
        %v4349 = vrot.slane %v3544, 5
        %v4350 = vsel %vm1206, %v4348, %v4349
        %v4351 = vrot.slane %v4263, 5
        %v4352 = vrot.slane %v4351, 4
        %v4353 = vrot.slane %v3546, 5
        %v4354 = vsel %vm1206, %v4352, %v4353
        %v4355 = vrot.slane %v4353, 4
        %v4356 = vrot.slane %v3547, 5
        %v4357 = vsel %vm1206, %v4355, %v4356
        %v4358 = vrot.slane %v4264, 5
        %v4359 = vrot.slane %v4358, 4
        %v4360 = vrot.slane %v3549, 5
        %v4361 = vsel %vm1206, %v4359, %v4360
        %v4362 = vrot.slane %v4360, 4
        %v4363 = vrot.slane %v3550, 5
        %v4364 = vsel %vm1206, %v4362, %v4363
        %v4365 = vrot.slane %v4265, 5
        %v4366 = vrot.slane %v4365, 4
        %v4367 = vrot.slane %v3552, 5
        %v4368 = vsel %vm1206, %v4366, %v4367
        %v4369 = vrot.slane %v4367, 4
        %v4370 = vrot.slane %v3553, 5
        %v4371 = vsel %vm1206, %v4369, %v4370
        %v4372 = vrot.slane %v4266, 5
        %v4373 = vrot.slane %v4372, 4
        %v4374 = vrot.slane %v3555, 5
        %v4375 = vsel %vm1206, %v4373, %v4374
        %v4376 = vrot.slane %v4374, 4
        %v4377 = vrot.slane %v3556, 5
        %v4378 = vsel %vm1206, %v4376, %v4377
        %v4379 = vrot.slane %v4267, 5
        %v4380 = vrot.slane %v4379, 4
        %v4381 = vrot.slane %v3558, 5
        %v4382 = vsel %vm1206, %v4380, %v4381
        %v4383 = vrot.slane %v4381, 4
        %v4384 = vrot.slane %v3559, 5
        %v4385 = vsel %vm1206, %v4383, %v4384
        %v4386 = vrot.slane %v4268, 5
        %v4387 = vrot.slane %v4386, 4
        %v4388 = vrot.slane %v3561, 5
        %v4389 = vsel %vm1206, %v4387, %v4388
        %v4390 = vrot.slane %v4388, 4
        %v4391 = vrot.slane %v3562, 5
        %v4392 = vsel %vm1206, %v4390, %v4391
        %v4393 = vrot.slane %v4269, 5
        %v4394 = vrot.slane %v4393, 4
        %v4395 = vrot.slane %v3564, 5
        %v4396 = vsel %vm1206, %v4394, %v4395
        %v4397 = vrot.slane %v4395, 4
        %v4398 = vrot.slane %v3565, 5
        %v4399 = vsel %vm1206, %v4397, %v4398
        %v4400 = vrot.slane %v4270, 5
        %v4401 = vrot.slane %v4400, 4
        %v4402 = vrot.slane %v3567, 5
        %v4403 = vsel %vm1206, %v4401, %v4402
        %v4404 = vrot.slane %v4402, 4
        %v4405 = vrot.slane %v3568, 5
        %v4406 = vsel %vm1206, %v4404, %v4405
        %v4407 = vrot.slane %v4271, 5
        %v4408 = vrot.slane %v4407, 4
        %v4409 = vrot.slane %v3570, 5
        %v4410 = vsel %vm1206, %v4408, %v4409
        %v4411 = vrot.slane %v4409, 4
        %v4412 = vrot.slane %v3571, 5
        %v4413 = vsel %vm1206, %v4411, %v4412
        %v4414 = vrot.slane %v4272, 5
        %v4415 = vrot.slane %v4414, 4
        %v4416 = vrot.slane %v3573, 5
        %v4417 = vsel %vm1206, %v4415, %v4416
        %v4418 = vrot.slane %v4416, 4
        %v4419 = vrot.slane %v3574, 5
        %v4420 = vsel %vm1206, %v4418, %v4419
        %v4421 = vrot.slane %v4273, 5
        %v4422 = vrot.slane %v4421, 4
        %v4423 = vrot.slane %v3576, 5
        %v4424 = vsel %vm1206, %v4422, %v4423
        %v4425 = vrot.slane %v4423, 4
        %v4426 = vrot.slane %v3577, 5
        %v4427 = vsel %vm1206, %v4425, %v4426
        %v4428 = vrot.slane %v4274, 5
        %v4429 = vrot.slane %v4428, 4
        %v4430 = vrot.slane %v3579, 5
        %v4431 = vsel %vm1206, %v4429, %v4430
        %v4432 = vrot.slane %v4430, 4
        %v4433 = vrot.slane %v3580, 5
        %v4434 = vsel %vm1206, %v4432, %v4433
        %s4435 = scalar_lea.vmem %s1, 16
        %v4436 = vld [vmem:[%s4435] sm:$0x3]
        %v4437 = vunpack.c.l.b16 %v4326
        %v4438 = vunpack.c.l.b16 %v4329
        %v4439 = vunpack.c.l.b16 %v4333
        %v4440 = vunpack.c.l.b16 %v4336
        %v4441 = vunpack.c.l.b16 %v4340
        %v4442 = vunpack.c.l.b16 %v4343
        %v4443 = vunpack.c.l.b16 %v4347
        %v4444 = vunpack.c.l.b16 %v4350
        %v4445 = vunpack.c.l.b16 %v4354
        %v4446 = vunpack.c.l.b16 %v4357
        %v4447 = vunpack.c.l.b16 %v4361
        %v4448 = vunpack.c.l.b16 %v4364
        %v4449 = vunpack.c.l.b16 %v4368
        %v4450 = vunpack.c.l.b16 %v4371
        %v4451 = vunpack.c.l.b16 %v4375
        %v4452 = vunpack.c.l.b16 %v4378
        %v4453 = vunpack.c.l.b16 %v4382
        %v4454 = vunpack.c.l.b16 %v4385
        %v4455 = vunpack.c.l.b16 %v4389
        %v4456 = vunpack.c.l.b16 %v4392
        %v4457 = vunpack.c.l.b16 %v4396
        %v4458 = vunpack.c.l.b16 %v4399
        %v4459 = vunpack.c.l.b16 %v4403
        %v4460 = vunpack.c.l.b16 %v4406
        %v4461 = vunpack.c.l.b16 %v4410
        %v4462 = vunpack.c.l.b16 %v4413
        %v4463 = vunpack.c.l.b16 %v4417
        %v4464 = vunpack.c.l.b16 %v4420
        %v4465 = vunpack.c.l.b16 %v4424
        %v4466 = vunpack.c.l.b16 %v4427
        %v4467 = vunpack.c.l.b16 %v4431
        %v4468 = vunpack.c.l.b16 %v4434
        %v4469 = vpack.c.b16 %v4438, %v4437
        %v4470 = vpack.c.b16 %v4440, %v4439
        %v4471 = vpack.c.b16 %v4442, %v4441
        %v4472 = vpack.c.b16 %v4444, %v4443
        %v4473 = vpack.c.b16 %v4446, %v4445
        %v4474 = vpack.c.b16 %v4448, %v4447
        %v4475 = vpack.c.b16 %v4450, %v4449
        %v4476 = vpack.c.b16 %v4452, %v4451
        %v4477 = vpack.c.b16 %v4454, %v4453
        %v4478 = vpack.c.b16 %v4456, %v4455
        %v4479 = vpack.c.b16 %v4458, %v4457
        %v4480 = vpack.c.b16 %v4460, %v4459
        %v4481 = vpack.c.b16 %v4462, %v4461
        %v4482 = vpack.c.b16 %v4464, %v4463
        %v4483 = vpack.c.b16 %v4466, %v4465
        %v4484 = vpack.c.b16 %v4468, %v4467
        %v4486 = vsel %vm650, %v4469, 0
        %v4489 = vsel %vm650, %v4470, 0
        %v4492 = vsel %vm650, %v4471, 0
        %v4495 = vsel %vm650, %v4472, 0
        %v4498 = vsel %vm650, %v4473, 0
        %v4501 = vsel %vm650, %v4474, 0
        %v4504 = vsel %vm650, %v4475, 0
        %v4507 = vsel %vm650, %v4476, 0
        %v4510 = vsel %vm650, %v4477, 0
        %v4513 = vsel %vm650, %v4478, 0
        %v4516 = vsel %vm650, %v4479, 0
        %v4519 = vsel %vm650, %v4480, 0
        %v4522 = vsel %vm650, %v4481, 0
        %v4525 = vsel %vm650, %v4482, 0
        %v4528 = vsel %vm650, %v4483, 0
        %v4531 = vsel %vm650, %v4484, 0
        %v4534 = vsel %vm699, %v4436, 0
        %4536 = vmatprep.subr.bf16.mxu0 0
        %4537 = vmatpush1.bf16.msra.mxu0 0
        %4538 = vmatprep.subr.bf16.mxu0 0
        %4539 = vmatpush1.bf16.msra.mxu0 0
        %4540 = vmatprep.subr.bf16.mxu0 0
        %4541 = vmatpush1.bf16.msra.mxu0 0
        %4542 = vmatprep.subr.bf16.mxu0 0
        %4543 = vmatpush1.bf16.msra.mxu0 0
        %4544 = vmatprep.subr.bf16.mxu0 0
        %4545 = vmatpush1.bf16.msra.mxu0 0
        %4546 = vmatprep.subr.bf16.mxu0 0
        %4547 = vmatpush1.bf16.msra.mxu0 0
        %4548 = vmatprep.subr.bf16.mxu0 0
        %4549 = vmatpush1.bf16.msra.mxu0 0
        %4550 = vmatprep.subr.bf16.mxu0 0
        %4551 = vmatpush1.bf16.msra.mxu0 %v4534
        %4552 = vmatprep.subr.bf16.mxu0 0
        %4553 = vmatpush2.bf16.msra.mxu0 0
        %4554 = vmatprep.subr.bf16.mxu0 0
        %4555 = vmatpush2.bf16.msra.mxu0 0
        %4556 = vmatprep.subr.bf16.mxu0 0
        %4557 = vmatpush2.bf16.msra.mxu0 0
        %4558 = vmatprep.subr.bf16.mxu0 0
        %4559 = vmatpush2.bf16.msra.mxu0 0
        %4560 = vmatprep.subr.bf16.mxu0 0
        %4561 = vmatpush2.bf16.msra.mxu0 0
        %4562 = vmatprep.subr.bf16.mxu0 0
        %4563 = vmatpush2.bf16.msra.mxu0 0
        %4564 = vmatprep.subr.bf16.mxu0 0
        %4565 = vmatpush2.bf16.msra.mxu0 0
        %4566 = vmatprep.subr.bf16.mxu0 0
        %4567 = vmatpush2.bf16.msra.mxu0 0
        %4568 = vmatprep.mubr.bf16.mxu0 0
        %4569 = vmatmul.mubr.bf16.gmra.mxu0 %v4486
        %v4570 = vpop.f32.mrf.mxu0
        %v4571 = vadd.f32 0.0, %v4570
        %v4572 = vpop.f32.mrf.mxu0
        %v4573 = vpop.f32.mrf.mxu0
        %v4574 = vadd.f32 0.0, %v4573
        %v4575 = vpop.f32.mrf.mxu0
        %4576 = vmatprep.mubr.bf16.mxu0 0
        %4577 = vmatmul.mubr.bf16.gmra.mxu0 %v4489
        %v4578 = vpop.f32.mrf.mxu0
        %v4579 = vadd.f32 0.0, %v4578
        %v4580 = vpop.f32.mrf.mxu0
        %v4581 = vpop.f32.mrf.mxu0
        %v4582 = vadd.f32 0.0, %v4581
        %v4583 = vpop.f32.mrf.mxu0
        %4584 = vmatprep.mubr.bf16.mxu0 0
        %4585 = vmatmul.mubr.bf16.gmra.mxu0 %v4492
        %v4586 = vpop.f32.mrf.mxu0
        %v4587 = vadd.f32 0.0, %v4586
        %v4588 = vpop.f32.mrf.mxu0
        %v4589 = vpop.f32.mrf.mxu0
        %v4590 = vadd.f32 0.0, %v4589
        %v4591 = vpop.f32.mrf.mxu0
        %4592 = vmatprep.mubr.bf16.mxu0 0
        %4593 = vmatmul.mubr.bf16.gmra.mxu0 %v4495
        %v4594 = vpop.f32.mrf.mxu0
        %v4595 = vadd.f32 0.0, %v4594
        %v4596 = vpop.f32.mrf.mxu0
        %v4597 = vpop.f32.mrf.mxu0
        %v4598 = vadd.f32 0.0, %v4597
        %v4599 = vpop.f32.mrf.mxu0
        %4600 = vmatprep.mubr.bf16.mxu0 0
        %4601 = vmatmul.mubr.bf16.gmra.mxu0 %v4498
        %v4602 = vpop.f32.mrf.mxu0
        %v4603 = vadd.f32 0.0, %v4602
        %v4604 = vpop.f32.mrf.mxu0
        %v4605 = vpop.f32.mrf.mxu0
        %v4606 = vadd.f32 0.0, %v4605
        %v4607 = vpop.f32.mrf.mxu0
        %4608 = vmatprep.mubr.bf16.mxu0 0
        %4609 = vmatmul.mubr.bf16.gmra.mxu0 %v4501
        %v4610 = vpop.f32.mrf.mxu0
        %v4611 = vadd.f32 0.0, %v4610
        %v4612 = vpop.f32.mrf.mxu0
        %v4613 = vpop.f32.mrf.mxu0
        %v4614 = vadd.f32 0.0, %v4613
        %v4615 = vpop.f32.mrf.mxu0
        %4616 = vmatprep.mubr.bf16.mxu0 0
        %4617 = vmatmul.mubr.bf16.gmra.mxu0 %v4504
        %v4618 = vpop.f32.mrf.mxu0
        %v4619 = vadd.f32 0.0, %v4618
        %v4620 = vpop.f32.mrf.mxu0
        %v4621 = vpop.f32.mrf.mxu0
        %v4622 = vadd.f32 0.0, %v4621
        %v4623 = vpop.f32.mrf.mxu0
        %4624 = vmatprep.mubr.bf16.mxu0 0
        %4625 = vmatmul.mubr.bf16.gmra.mxu0 %v4507
        %v4626 = vpop.f32.mrf.mxu0
        %v4627 = vadd.f32 0.0, %v4626
        %v4628 = vpop.f32.mrf.mxu0
        %v4629 = vpop.f32.mrf.mxu0
        %v4630 = vadd.f32 0.0, %v4629
        %v4631 = vpop.f32.mrf.mxu0
        %4632 = vmatprep.mubr.bf16.mxu0 0
        %4633 = vmatmul.mubr.bf16.gmra.mxu0 %v4510
        %v4634 = vpop.f32.mrf.mxu0
        %v4635 = vadd.f32 0.0, %v4634
        %v4636 = vpop.f32.mrf.mxu0
        %v4637 = vpop.f32.mrf.mxu0
        %v4638 = vadd.f32 0.0, %v4637
        %v4639 = vpop.f32.mrf.mxu0
        %4640 = vmatprep.mubr.bf16.mxu0 0
        %4641 = vmatmul.mubr.bf16.gmra.mxu0 %v4513
        %v4642 = vpop.f32.mrf.mxu0
        %v4643 = vadd.f32 0.0, %v4642
        %v4644 = vpop.f32.mrf.mxu0
        %v4645 = vpop.f32.mrf.mxu0
        %v4646 = vadd.f32 0.0, %v4645
        %v4647 = vpop.f32.mrf.mxu0
        %4648 = vmatprep.mubr.bf16.mxu0 0
        %4649 = vmatmul.mubr.bf16.gmra.mxu0 %v4516
        %v4650 = vpop.f32.mrf.mxu0
        %v4651 = vadd.f32 0.0, %v4650
        %v4652 = vpop.f32.mrf.mxu0
        %v4653 = vpop.f32.mrf.mxu0
        %v4654 = vadd.f32 0.0, %v4653
        %v4655 = vpop.f32.mrf.mxu0
        %4656 = vmatprep.mubr.bf16.mxu0 0
        %4657 = vmatmul.mubr.bf16.gmra.mxu0 %v4519
        %v4658 = vpop.f32.mrf.mxu0
        %v4659 = vadd.f32 0.0, %v4658
        %v4660 = vpop.f32.mrf.mxu0
        %v4661 = vpop.f32.mrf.mxu0
        %v4662 = vadd.f32 0.0, %v4661
        %v4663 = vpop.f32.mrf.mxu0
        %4664 = vmatprep.mubr.bf16.mxu0 0
        %4665 = vmatmul.mubr.bf16.gmra.mxu0 %v4522
        %v4666 = vpop.f32.mrf.mxu0
        %v4667 = vadd.f32 0.0, %v4666
        %v4668 = vpop.f32.mrf.mxu0
        %v4669 = vpop.f32.mrf.mxu0
        %v4670 = vadd.f32 0.0, %v4669
        %v4671 = vpop.f32.mrf.mxu0
        %4672 = vmatprep.mubr.bf16.mxu0 0
        %4673 = vmatmul.mubr.bf16.gmra.mxu0 %v4525
        %v4674 = vpop.f32.mrf.mxu0
        %v4675 = vadd.f32 0.0, %v4674
        %v4676 = vpop.f32.mrf.mxu0
        %v4677 = vpop.f32.mrf.mxu0
        %v4678 = vadd.f32 0.0, %v4677
        %v4679 = vpop.f32.mrf.mxu0
        %4680 = vmatprep.mubr.bf16.mxu0 0
        %4681 = vmatmul.mubr.bf16.gmra.mxu0 %v4528
        %v4682 = vpop.f32.mrf.mxu0
        %v4683 = vadd.f32 0.0, %v4682
        %v4684 = vpop.f32.mrf.mxu0
        %v4685 = vpop.f32.mrf.mxu0
        %v4686 = vadd.f32 0.0, %v4685
        %v4687 = vpop.f32.mrf.mxu0
        %4688 = vmatprep.mubr.bf16.mxu0 0
        %4689 = vmatmul.mubr.bf16.gmra.mxu0 %v4531
        %v4690 = vpop.f32.mrf.mxu0
        %v4691 = vadd.f32 0.0, %v4690
        %v4692 = vpop.f32.mrf.mxu0
        %v4693 = vpop.f32.mrf.mxu0
        %v4694 = vadd.f32 0.0, %v4693
        %v4695 = vpop.f32.mrf.mxu0
        %4696 = vdwg.mxu0
        %v4697 = vadd.f32 %v4227, %v4571
        %v4698 = vadd.f32 %v4228, %v4574
        %v4699 = vadd.f32 %v4229, %v4579
        %v4700 = vadd.f32 %v4230, %v4582
        %v4701 = vadd.f32 %v4231, %v4587
        %v4702 = vadd.f32 %v4232, %v4590
        %v4703 = vadd.f32 %v4233, %v4595
        %v4704 = vadd.f32 %v4234, %v4598
        %v4705 = vadd.f32 %v4235, %v4603
        %v4706 = vadd.f32 %v4236, %v4606
        %v4707 = vadd.f32 %v4237, %v4611
        %v4708 = vadd.f32 %v4238, %v4614
        %v4709 = vadd.f32 %v4239, %v4619
        %v4710 = vadd.f32 %v4240, %v4622
        %v4711 = vadd.f32 %v4241, %v4627
        %v4712 = vadd.f32 %v4242, %v4630
        %v4713 = vadd.f32 %v4243, %v4635
        %v4714 = vadd.f32 %v4244, %v4638
        %v4715 = vadd.f32 %v4245, %v4643
        %v4716 = vadd.f32 %v4246, %v4646
        %v4717 = vadd.f32 %v4247, %v4651
        %v4718 = vadd.f32 %v4248, %v4654
        %v4719 = vadd.f32 %v4249, %v4659
        %v4720 = vadd.f32 %v4250, %v4662
        %v4721 = vadd.f32 %v4251, %v4667
        %v4722 = vadd.f32 %v4252, %v4670
        %v4723 = vadd.f32 %v4253, %v4675
        %v4724 = vadd.f32 %v4254, %v4678
        %v4725 = vadd.f32 %v4255, %v4683
        %v4726 = vadd.f32 %v4256, %v4686
        %v4727 = vadd.f32 %v4257, %v4691
        %v4728 = vadd.f32 %v4258, %v4694
        %v4729 = vld [vmem:[%s148] sm:$0x1]
        %v4730 = vadd.f32 %v4697, %v4698
        %v4731 = vadd.f32 %v4730, %v4699
        %v4732 = vadd.f32 %v4731, %v4700
        %v4733 = vadd.f32 %v4732, %v4701
        %v4734 = vadd.f32 %v4733, %v4702
        %v4735 = vadd.f32 %v4734, %v4703
        %v4736 = vadd.f32 %v4735, %v4704
        %v4737 = vadd.f32 %v4736, %v4705
        %v4738 = vadd.f32 %v4737, %v4706
        %v4739 = vadd.f32 %v4738, %v4707
        %v4740 = vadd.f32 %v4739, %v4708
        %v4741 = vadd.f32 %v4740, %v4709
        %v4742 = vadd.f32 %v4741, %v4710
        %v4743 = vadd.f32 %v4742, %v4711
        %v4744 = vadd.f32 %v4743, %v4712
        %v4745 = vadd.f32 %v4744, %v4713
        %v4746 = vadd.f32 %v4745, %v4714
        %v4747 = vadd.f32 %v4746, %v4715
        %v4748 = vadd.f32 %v4747, %v4716
        %v4749 = vadd.f32 %v4748, %v4717
        %v4750 = vadd.f32 %v4749, %v4718
        %v4751 = vadd.f32 %v4750, %v4719
        %v4752 = vadd.f32 %v4751, %v4720
        %v4753 = vadd.f32 %v4752, %v4721
        %v4754 = vadd.f32 %v4753, %v4722
        %v4755 = vadd.f32 %v4754, %v4723
        %v4756 = vadd.f32 %v4755, %v4724
        %v4757 = vadd.f32 %v4756, %v4725
        %v4758 = vadd.f32 %v4757, %v4726
        %v4759 = vadd.f32 %v4758, %v4727
        %v4760 = vadd.f32 %v4759, %v4728
        %v4761 = vrot.slane %v4760, 4
        %v4762 = vadd.f32 %v4760, %v4761
        %v4763 = vrot.slane %v4762, 2
        %v4764 = vadd.f32 %v4762, %v4763
        %v4765 = vrot.slane %v4764, 1
        %v4766 = vadd.f32 %v4764, %v4765
        %v4767 = vadd.f32 %v4729, %v4766
        %4768 = vst [vmem:[%s148] sm:$0x1] %v4767
        %v4769 = vld [vmem:[%s148 + $0x1] sm:$0x1]
        %v4770 = vmul.f32 %v4697, %v4697
        %v4771 = vmul.f32 %v4698, %v4698
        %v4772 = vmul.f32 %v4699, %v4699
        %v4773 = vmul.f32 %v4700, %v4700
        %v4774 = vmul.f32 %v4701, %v4701
        %v4775 = vmul.f32 %v4702, %v4702
        %v4776 = vmul.f32 %v4703, %v4703
        %v4777 = vmul.f32 %v4704, %v4704
        %v4778 = vmul.f32 %v4705, %v4705
        %v4779 = vmul.f32 %v4706, %v4706
        %v4780 = vmul.f32 %v4707, %v4707
        %v4781 = vmul.f32 %v4708, %v4708
        %v4782 = vmul.f32 %v4709, %v4709
        %v4783 = vmul.f32 %v4710, %v4710
        %v4784 = vmul.f32 %v4711, %v4711
        %v4785 = vmul.f32 %v4712, %v4712
        %v4786 = vmul.f32 %v4713, %v4713
        %v4787 = vmul.f32 %v4714, %v4714
        %v4788 = vmul.f32 %v4715, %v4715
        %v4789 = vmul.f32 %v4716, %v4716
        %v4790 = vmul.f32 %v4717, %v4717
        %v4791 = vmul.f32 %v4718, %v4718
        %v4792 = vmul.f32 %v4719, %v4719
        %v4793 = vmul.f32 %v4720, %v4720
        %v4794 = vmul.f32 %v4721, %v4721
        %v4795 = vmul.f32 %v4722, %v4722
        %v4796 = vmul.f32 %v4723, %v4723
        %v4797 = vmul.f32 %v4724, %v4724
        %v4798 = vmul.f32 %v4725, %v4725
        %v4799 = vmul.f32 %v4726, %v4726
        %v4800 = vmul.f32 %v4727, %v4727
        %v4801 = vmul.f32 %v4728, %v4728
        %v4802 = vadd.f32 %v4770, %v4771
        %v4803 = vadd.f32 %v4802, %v4772
        %v4804 = vadd.f32 %v4803, %v4773
        %v4805 = vadd.f32 %v4804, %v4774
        %v4806 = vadd.f32 %v4805, %v4775
        %v4807 = vadd.f32 %v4806, %v4776
        %v4808 = vadd.f32 %v4807, %v4777
        %v4809 = vadd.f32 %v4808, %v4778
        %v4810 = vadd.f32 %v4809, %v4779
        %v4811 = vadd.f32 %v4810, %v4780
        %v4812 = vadd.f32 %v4811, %v4781
        %v4813 = vadd.f32 %v4812, %v4782
        %v4814 = vadd.f32 %v4813, %v4783
        %v4815 = vadd.f32 %v4814, %v4784
        %v4816 = vadd.f32 %v4815, %v4785
        %v4817 = vadd.f32 %v4816, %v4786
        %v4818 = vadd.f32 %v4817, %v4787
        %v4819 = vadd.f32 %v4818, %v4788
        %v4820 = vadd.f32 %v4819, %v4789
        %v4821 = vadd.f32 %v4820, %v4790
        %v4822 = vadd.f32 %v4821, %v4791
        %v4823 = vadd.f32 %v4822, %v4792
        %v4824 = vadd.f32 %v4823, %v4793
        %v4825 = vadd.f32 %v4824, %v4794
        %v4826 = vadd.f32 %v4825, %v4795
        %v4827 = vadd.f32 %v4826, %v4796
        %v4828 = vadd.f32 %v4827, %v4797
        %v4829 = vadd.f32 %v4828, %v4798
        %v4830 = vadd.f32 %v4829, %v4799
        %v4831 = vadd.f32 %v4830, %v4800
        %v4832 = vadd.f32 %v4831, %v4801
        %v4833 = vrot.slane %v4832, 4
        %v4834 = vadd.f32 %v4832, %v4833
        %v4835 = vrot.slane %v4834, 2
        %v4836 = vadd.f32 %v4834, %v4835
        %v4837 = vrot.slane %v4836, 1
        %v4838 = vadd.f32 %v4836, %v4837
        %v4839 = vadd.f32 %v4769, %v4838
        %4840 = vst [vmem:[%s148 + $0x1] sm:$0x1] %v4839
        %s4841 = sand.u32 %s83, 1
        %s4842 = scalar_lea.sflag [#allocation3], %s4841
        %s4843 = sand.u32 %s83, 1
        %s4844 = smul.addr %s4843, 8
        %s4845 = scalar_lea.vmem [#allocation2], %s4844
        // Predicated region
        $region33: #{tpu_custom_call.1} parent=27 // pred_check
          %p4846 = pneg %p93
        $region34: #{tpu_custom_call.1} parent=27 // pred_check_branch
          %4848 = sbr.rel (%p4846) target = $region36
        $region35: #{tpu_custom_call.1} parent=27 // pred_region
          %s4850 = ssub.s32 128, 128
          %4851 = vsyncadd %s4842, %s4850
          %s4852 = smul.addr %s20, 128
          %s4853 = scalar_lea.hbm %s2, %s4852
          %s4855 = sshll.u32 %s4845, 4
          %s4856 = int_to_ptr.vmem [resolvable:$true] %s4855
          %4858 = dma.vmem_to_hbm [thread:$0]  %s4856, 128, %s4853, %s4842
        $region36: #{tpu_custom_call.1} parent=27 // pred_fallthru
          _
      $region28: #{tpu_custom_call.1} parent=5 // pred_fallthru
        _
      %p4859 = scmp.le.s32.totalorder 2, %s11
      // Predicated region
      $region37: #{tpu_custom_call.1} parent=5 // pred_check
        %p4860 = pneg %p4859
      $region38: #{tpu_custom_call.1} parent=5 // pred_check_branch
        %4862 = sbr.rel (%p4860) target = $region40
      $region39: #{tpu_custom_call.1} parent=5 // pred_region
        %s4863 = ssub.s32 %s11, 2
        // Predicated region
        $region41: #{tpu_custom_call.1} parent=39 // pred_check
          %p4864 = pneg %p99
        $region42: #{tpu_custom_call.1} parent=39 // pred_check_branch
          %4866 = sbr.rel (%p4864) target = $region44
        $region43: #{tpu_custom_call.1} parent=39 // pred_region
          %s4867 = sand.u32 %s84, 1
          %s4868 = scalar_lea.sflag [#allocation3], %s4867
          %s4869 = sand.u32 %s84, 1
          %s4870 = smul.addr %s4869, 8
          %s4871 = scalar_lea.vmem [#allocation2], %s4870
          %4872 = dma.done %s4868, 128
        $region44: #{tpu_custom_call.1} parent=39 // pred_fallthru
          _
      $region40: #{tpu_custom_call.1} parent=5 // pred_fallthru
        _
    $region6: #{tpu_custom_call.1} parent=1 // loop_footer
      %s15 = sadd.s32 1, %s11
    $region7: #{tpu_custom_call.1} parent=1 // loop_footer_branch
      %10 = sbr.rel target = $region3
    $region8: #{tpu_custom_call.1} parent=1 // loop_exit
      _
    %4873 = vsyncpa [#allocation3], 1
    %s4874 = scalar_lea.sflag [#allocation3], 1
    %4875 = vsyncpa %s4874, 1

</llo_original>
